<compile_context>
chip_gen: v7x
topology: tpu7x:2x2x1
jax: 0.10.0
libtpu: 0.0.40
codegen_flags: <defaults>
</compile_context>

<pallas_src>
from functools import partial

import jax
import jax.numpy as jnp
from jax.experimental import pallas as pl
from jax.experimental.pallas import tpu as pltpu

B = 8            # example batch per domain
D_IN = 5120      # fc1_*_1 input
D_H1 = 1024      # fc1_*_1 output / bn1
D_H2 = 512       # fc1_*_2 output / bn2 / mid features
D_SS1 = 100      # fc2_a_1 output (true width)
D_SS1_PAD = 128  # fc2_a_1 output padded lane-dense
D_SS2 = 2        # fc2_a_2 output (ss_logits)
D_CLS = 8        # fc2_b_* output (class_logits)
TK = 640         # K-tile for the 5120 -> 1024 streaming matmuls (8 k-steps)
BN_EPS = 1e-5

assert D_IN % TK == 0


# ---------------------------------------------------------------------------
# Stage 1: fc1_*_1 (int8 weight stream) -> relu -> bn1 -> fc1_*_2 -> relu -> bn2
# ---------------------------------------------------------------------------
def _stage1_kernel(x_ref, w1_ref, b1f_ref, bn1s_ref, bn1b_ref,
                   w2_ref, b2_ref, bn2s_ref, bn2b_ref,
                   mid_ref, acc_ref):
    """Grid = (stream, K).  One stream (rgb or flow) per grid row."""
    k = pl.program_id(1)

    @pl.when(k == 0)
    def _():
        # fc1_*_1 bias folded into the accumulator init (pre-divided by the
        # int8 quant scale host-side).
        acc_ref[...] = jnp.broadcast_to(b1f_ref[...], acc_ref.shape)

    # int8 -> bf16 dequant (|values| <= 127, exact in bf16); bf16 MXU matmul
    # with f32 accumulation.  The per-channel quant scale is applied via the
    # folded bn1 scale in the epilogue.
    w1 = w1_ref[...].astype(jnp.float32).astype(jnp.bfloat16)
    acc_ref[...] += jnp.dot(x_ref[...], w1, preferred_element_type=jnp.float32)

    @pl.when(k == pl.num_programs(1) - 1)
    def _():
        # bn1s already contains (w1 quant scale * bn1 scale); since the quant
        # scale is positive, relu commutes with it, so this equals
        # bn1(relu(fc1_*_1(x))).
        h1 = jnp.maximum(acc_ref[...], 0.0) * bn1s_ref[...] + bn1b_ref[...]
        # Fused fc1_*_2 (bf16 weights, f32 accumulation), relu, bn2.
        m = jnp.dot(h1.astype(jnp.bfloat16), w2_ref[...],
                    preferred_element_type=jnp.float32)
        m = jnp.maximum(m + b2_ref[...], 0.0) * bn2s_ref[...] + bn2b_ref[...]
        mid_ref[...] = m.astype(mid_ref.dtype)


# ---------------------------------------------------------------------------
# Stage 2: tiny resident head (fc2_a_1 -> relu -> fc2_a_2, fc2_b_rgb + fc2_b_flow)
# ---------------------------------------------------------------------------
def _head_kernel(mid_ref, wa1_rgb, wa1_flow, ba1, wa2, ba2,
                 wb_rgb, bb_rgb, wb_flow, bb_flow,
                 class_ref, ss_ref):
    m_rgb = mid_ref[0].astype(jnp.bfloat16)
    m_flow = mid_ref[1].astype(jnp.bfloat16)

    # fc2_a_1 on concat([rgb, flow], -1) == rgb @ W_top + flow @ W_bottom
    # (weight split host-side; avoids an in-kernel lane concat).  The ss
    # hidden dim is padded to 128 so ss_h is lane-dense.
    ss_h = (jnp.dot(m_rgb, wa1_rgb[...], preferred_element_type=jnp.float32)
            + jnp.dot(m_flow, wa1_flow[...], preferred_element_type=jnp.float32))
    ss_h = jnp.maximum(ss_h + ba1[...], 0.0)
    ss = jnp.dot(ss_h, wa2[...], preferred_element_type=jnp.float32) + ba2[...]

    cls = (jnp.dot(m_rgb, wb_rgb[...], preferred_element_type=jnp.float32)
           + jnp.dot(m_flow, wb_flow[...], preferred_element_type=jnp.float32)
           + bb_rgb[...] + bb_flow[...])

    # Dropout(p=0.5) is identity in eval mode.
    class_ref[...] = cls.astype(class_ref.dtype)
    ss_ref[...] = ss.astype(ss_ref.dtype)


# ---------------------------------------------------------------------------
# Host-side parameter prep
# ---------------------------------------------------------------------------
def prepare_params(p):
    """One-time prep: int8-quantize stage-1 weights (scale folded into bn1),
    bf16 stage-2/head weights, pad the ss hidden dim to 128."""
    kp = {}

    def quant_int8(w):  # w: (n_in, n_out), per-output-channel symmetric int8
        amax = jnp.max(jnp.abs(w), axis=0)
        scale = jnp.where(amax > 0, amax / 127.0, 1.0)
        w_q = jnp.clip(jnp.round(w / scale[None, :]), -127, 127).astype(jnp.int8)
        return w_q, scale

    w1q_rgb, s_rgb = quant_int8(p["w1_rgb"])
    w1q_flow, s_flow = quant_int8(p["w1_flow"])
    kp["w1_q"] = jnp.stack([w1q_rgb, w1q_flow])           # (2, D_IN, D_H1) int8
    w1_scale = jnp.stack([s_rgb, s_flow])                 # (2, D_H1) f32
    kp["w1_scale"] = w1_scale
    # Bias folded into the acc init, pre-divided by the quant scale so the
    # (scale * bn1-scale) multiply in the epilogue rescales it back.
    kp["b1_folded"] = (jnp.stack([p["b1_rgb"], p["b1_flow"]]) / w1_scale)[:, None, :]

    # fc1_*_2 (fused into the stage-1 epilogue): bf16 weights, f32 bias.
    kp["w2"] = jnp.stack([p["w2_rgb"], p["w2_flow"]]).astype(jnp.bfloat16)
    kp["b2"] = jnp.stack([p["b2_rgb"], p["b2_flow"]])[:, None, :]

    for tag in ("src", "trg"):
        bn1s = jnp.stack([p[f"bn1_{tag}_rgb"][0], p[f"bn1_{tag}_flow"][0]])
        bn1b = jnp.stack([p[f"bn1_{tag}_rgb"][1], p[f"bn1_{tag}_flow"][1]])
        kp[f"bn1_{tag}"] = (bn1s * w1_scale, bn1b)         # fold quant scale
        bn2s = jnp.stack([p[f"bn2_{tag}_rgb"][0], p[f"bn2_{tag}_flow"][0]])
        bn2b = jnp.stack([p[f"bn2_{tag}_rgb"][1], p[f"bn2_{tag}_flow"][1]])
        kp[f"bn2_{tag}"] = (bn2s, bn2b)

    # Head: bf16 weights, ss hidden dim padded 100 -> 128 (zeros contribute 0
    # through relu and the zero-padded wa2 rows).
    row = lambda v: v.reshape(1, -1)
    pad = D_SS1_PAD - D_SS1
    kp["wa1_rgb"] = jnp.pad(p["wa1"][:D_H2], ((0, 0), (0, pad))).astype(jnp.bfloat16)
    kp["wa1_flow"] = jnp.pad(p["wa1"][D_H2:], ((0, 0), (0, pad))).astype(jnp.bfloat16)
    kp["ba1"] = jnp.pad(row(p["ba1"]), ((0, 0), (0, pad)))
    kp["wa2"] = jnp.pad(p["wa2"], ((0, pad), (0, 0)))      # f32, tiny
    kp["ba2"] = row(p["ba2"])
    kp["wb_rgb"] = p["wb_rgb"].astype(jnp.bfloat16)
    kp["bb_rgb"] = row(p["bb_rgb"])
    kp["wb_flow"] = p["wb_flow"].astype(jnp.bfloat16)
    kp["bb_flow"] = row(p["bb_flow"])
    return kp


# ---------------------------------------------------------------------------
# Pallas drivers
# ---------------------------------------------------------------------------
def _forward_stacked(x, bn1s_rows, bn1b_rows, bn2s_rows, bn2b_rows, kp):
    """x: (2, M, D_IN) bf16 (stream-major); bn*_rows: per-row eval-mode affines."""
    m_rows = x.shape[1]
    k_steps = D_IN // TK

    mid = pl.pallas_call(
        _stage1_kernel,
        out_shape=jax.ShapeDtypeStruct((2, m_rows, D_H2), jnp.float32),
        grid_spec=pltpu.PrefetchScalarGridSpec(
            num_scalar_prefetch=0,
            grid=(2, k_steps),                      # (stream, K) — K last
            in_specs=[
                pl.BlockSpec((None, m_rows, TK), lambda s, k: (s, 0, k)),      # x
                pl.BlockSpec((None, TK, D_H1), lambda s, k: (s, k, 0)),        # w1 int8
                pl.BlockSpec((None, 1, D_H1), lambda s, k: (s, 0, 0)),         # b1/scale
                pl.BlockSpec((None, m_rows, D_H1), lambda s, k: (s, 0, 0)),    # bn1 scale
                pl.BlockSpec((None, m_rows, D_H1), lambda s, k: (s, 0, 0)),    # bn1 shift
                pl.BlockSpec((None, D_H1, D_H2), lambda s, k: (s, 0, 0)),      # w2 bf16
                pl.BlockSpec((None, 1, D_H2), lambda s, k: (s, 0, 0)),         # b2
                pl.BlockSpec((None, m_rows, D_H2), lambda s, k: (s, 0, 0)),    # bn2 scale
                pl.BlockSpec((None, m_rows, D_H2), lambda s, k: (s, 0, 0)),    # bn2 shift
            ],
            out_specs=pl.BlockSpec((None, m_rows, D_H2), lambda s, k: (s, 0, 0)),
            scratch_shapes=[pltpu.VMEM((m_rows, D_H1), jnp.float32)],
        ),
        compiler_params=pltpu.CompilerParams(
            # stream axis parallel -> both TensorCores on v7x; K reduction last.
            dimension_semantics=("parallel", "arbitrary"),
            # actual need ~4 MiB; 32 MiB fits v7x (64 MiB) and v5e/v6e.
            vmem_limit_bytes=32 * 1024 * 1024,
        ),
    )(x, kp["w1_q"], kp["b1_folded"], bn1s_rows, bn1b_rows,
      kp["w2"], kp["b2"], bn2s_rows, bn2b_rows)

    class_logits, ss_logits = pl.pallas_call(
        _head_kernel,
        out_shape=[jax.ShapeDtypeStruct((m_rows, D_CLS), jnp.float32),
                   jax.ShapeDtypeStruct((m_rows, D_SS2), jnp.float32)],
        compiler_params=pltpu.CompilerParams(
            # whole-array VMEM residency; total head footprint < 1 MiB.
            vmem_limit_bytes=16 * 1024 * 1024),
    )(mid, kp["wa1_rgb"], kp["wa1_flow"], kp["ba1"], kp["wa2"], kp["ba2"],
      kp["wb_rgb"], kp["bb_rgb"], kp["wb_flow"], kp["bb_flow"])

    return mid, class_logits, ss_logits


def _rows(per_feature, n_rows):
    """(2, D) per-stream feature vector -> (2, n_rows, D) per-row array."""
    d = per_feature.shape[-1]
    return jnp.broadcast_to(per_feature[:, None, :], (2, n_rows, d))


@partial(jax.jit, static_argnames=("is_target",))
def concat_features_net(x_rgb, x_flow, kp, is_target):
    """Pallas implementation of ConcatFeaturesNet.forward (eval mode)."""
    n = x_rgb.shape[0]
    tag = "trg" if is_target else "src"
    bn1s, bn1b = kp[f"bn1_{tag}"]
    bn2s, bn2b = kp[f"bn2_{tag}"]
    x = jnp.stack([x_rgb, x_flow]).astype(jnp.bfloat16)    # (2, n, D_IN)
    mid, cls, ss = _forward_stacked(
        x, _rows(bn1s, n), _rows(bn1b, n), _rows(bn2s, n), _rows(bn2b, n), kp)
    return mid[0], mid[1], cls, ss


@jax.jit
def concat_features_net_dual(x_rgb_src, x_flow_src, x_rgb_trg, x_flow_trg, kp):
    """Both domains in one call: the fc1 weight stream is read only once and
    the MXU M dim becomes 2*B (fills the bf16 (16, 128) sublane tile)."""
    ns, nt = x_rgb_src.shape[0], x_rgb_trg.shape[0]
    x = jnp.stack([jnp.concatenate([x_rgb_src, x_rgb_trg], axis=0),
                   jnp.concatenate([x_flow_src, x_flow_trg], axis=0)]
                  ).astype(jnp.bfloat16)                   # (2, ns+nt, D_IN)

    def per_row(name):
        s_src, b_src = kp[f"{name}_src"]
        s_trg, b_trg = kp[f"{name}_trg"]
        s = jnp.concatenate([_rows(s_src, ns), _rows(s_trg, nt)], axis=1)
        b = jnp.concatenate([_rows(b_src, ns), _rows(b_trg, nt)], axis=1)
        return s, b

    bn1s, bn1b = per_row("bn1")
    bn2s, bn2b = per_row("bn2")
    mid, cls, ss = _forward_stacked(x, bn1s, bn1b, bn2s, bn2b, kp)
    out_src = (mid[0, :ns], mid[1, :ns], cls[:ns], ss[:ns])
    out_trg = (mid[0, ns:], mid[1, ns:], cls[ns:], ss[ns:])
    return out_src, out_trg


# ---------------------------------------------------------------------------
# Synthetic parameters + plain-JAX reference
# ---------------------------------------------------------------------------
def init_params(key):
    """Deterministic synthetic parameters (eval-mode BN folded to scale/shift)."""
    def linear(k, n_in, n_out):
        kw, kb = jax.random.split(k)
        w = jax.random.normal(kw, (n_in, n_out), jnp.float32) / jnp.sqrt(
            jnp.float32(n_in))
        bias = 0.01 * jax.random.normal(kb, (n_out,), jnp.float32)
        return w, bias

    def batchnorm(k, n):
        k1, k2, k3, k4 = jax.random.split(k, 4)
        gamma = 1.0 + 0.1 * jax.random.normal(k1, (n,), jnp.float32)
        beta = 0.1 * jax.random.normal(k2, (n,), jnp.float32)
        mean = 0.1 * jax.random.normal(k3, (n,), jnp.float32)
        var = 0.5 + jax.random.uniform(k4, (n,), jnp.float32)
        scale = gamma / jnp.sqrt(var + BN_EPS)
        shift = beta - mean * scale
        return scale, shift

    keys = jax.random.split(key, 17)
    p = {}
    p["w1_rgb"], p["b1_rgb"] = linear(keys[0], D_IN, D_H1)
    p["w1_flow"], p["b1_flow"] = linear(keys[1], D_IN, D_H1)
    p["w2_rgb"], p["b2_rgb"] = linear(keys[2], D_H1, D_H2)
    p["w2_flow"], p["b2_flow"] = linear(keys[3], D_H1, D_H2)
    p["wa1"], p["ba1"] = linear(keys[4], 2 * D_H2, D_SS1)
    p["wa2"], p["ba2"] = linear(keys[5], D_SS1, D_SS2)
    p["wb_rgb"], p["bb_rgb"] = linear(keys[6], D_H2, D_CLS)
    p["wb_flow"], p["bb_flow"] = linear(keys[7], D_H2, D_CLS)
    p["bn1_src_rgb"] = batchnorm(keys[8], D_H1)
    p["bn1_src_flow"] = batchnorm(keys[9], D_H1)
    p["bn1_trg_rgb"] = batchnorm(keys[10], D_H1)
    p["bn1_trg_flow"] = batchnorm(keys[11], D_H1)
    p["bn2_src_rgb"] = batchnorm(keys[12], D_H2)
    p["bn2_src_flow"] = batchnorm(keys[13], D_H2)
    p["bn2_trg_rgb"] = batchnorm(keys[14], D_H2)
    p["bn2_trg_flow"] = batchnorm(keys[15], D_H2)
    return p


def ref_forward(x_rgb, x_flow, p, is_target):
    """Plain-JAX reference matching the PyTorch forward (eval mode)."""
    tag = "trg" if is_target else "src"
    bn = lambda x, ss: x * ss[0] + ss[1]
    h_rgb = bn(jax.nn.relu(x_rgb @ p["w1_rgb"] + p["b1_rgb"]), p[f"bn1_{tag}_rgb"])
    h_flow = bn(jax.nn.relu(x_flow @ p["w1_flow"] + p["b1_flow"]),
                p[f"bn1_{tag}_flow"])
    mid_rgb = bn(jax.nn.relu(h_rgb @ p["w2_rgb"] + p["b2_rgb"]),
                 p[f"bn2_{tag}_rgb"])
    mid_flow = bn(jax.nn.relu(h_flow @ p["w2_flow"] + p["b2_flow"]),
                  p[f"bn2_{tag}_flow"])
    concat = jnp.concatenate([mid_rgb, mid_flow], axis=-1)
    mid_ss = jax.nn.relu(concat @ p["wa1"] + p["ba1"])
    ss_logits = mid_ss @ p["wa2"] + p["ba2"]
    class_logits = (mid_rgb @ p["wb_rgb"] + p["bb_rgb"]
                    + mid_flow @ p["wb_flow"] + p["bb_flow"])
    return mid_rgb, mid_flow, class_logits, ss_logits


if __name__ == "__main__":
    key = jax.random.PRNGKey(0)
    k_params, k1, k2, k3, k4 = jax.random.split(key, 5)
    params = init_params(k_params)
    kparams = prepare_params(params)

    x_rgb_src = jax.random.normal(k1, (B, D_IN), jnp.float32)
    x_flow_src = jax.random.normal(k2, (B, D_IN), jnp.float32)
    x_rgb_trg = jax.random.normal(k3, (B, D_IN), jnp.float32)
    x_flow_trg = jax.random.normal(k4, (B, D_IN), jnp.float32)

    # The reference uses the same quantized operands as the kernel (dequantized
    # int8 w1, bf16-rounded stage-2/head weights, bf16-rounded activations) so
    # the check validates the kernel math rather than the intentional
    # quantization; tolerance covers bf16 MXU rounding of intermediates.
    q = lambda a: a.astype(jnp.bfloat16).astype(jnp.float32)
    deq = lambda wq, s: wq.astype(jnp.float32) * s[None, :]
    ref_params = dict(params)
    ref_params["w1_rgb"] = deq(kparams["w1_q"][0], kparams["w1_scale"][0])
    ref_params["w1_flow"] = deq(kparams["w1_q"][1], kparams["w1_scale"][1])
    for name in ("w2_rgb", "w2_flow", "wa1", "wb_rgb", "wb_flow"):
        ref_params[name] = q(params[name])

    def check(outs, refs):
        for o, r in zip(outs, refs):
            assert o.shape == r.shape and o.dtype == r.dtype
            if not jnp.allclose(o, r, rtol=2e-2, atol=2e-2):
                raise AssertionError("Pallas output does not match reference")

    # Single-domain forward (matches the PyTorch module's signature).
    for is_target, (xr, xf) in ((False, (x_rgb_src, x_flow_src)),
                                (True, (x_rgb_trg, x_flow_trg))):
        outs = jax.block_until_ready(
            concat_features_net(xr, xf, kparams, is_target=is_target))
        check(outs, ref_forward(q(xr), q(xf), ref_params, is_target))

    # Dual-domain entry point: one shared fc1 weight stream for both domains.
    out_src, out_trg = jax.block_until_ready(
        concat_features_net_dual(x_rgb_src, x_flow_src,
                                 x_rgb_trg, x_flow_trg, kparams))
    check(out_src, ref_forward(q(x_rgb_src), q(x_flow_src), ref_params, False))
    check(out_trg, ref_forward(q(x_rgb_trg), q(x_flow_trg), ref_params, True))

    print("KERNEL_OK")
</pallas_src>

<mosaic_0001>
module attributes {stable_mosaic.version = 11 : i64} {
  func.func @_stage1_kernel(%arg0: i32, %arg1: i32, %arg2: memref<1x8x640xbf16, #tpu.memory_space<vmem>>, %arg3: memref<1x640x1024xi8, #tpu.memory_space<vmem>>, %arg4: memref<1x1x1024xf32, #tpu.memory_space<vmem>>, %arg5: memref<1x8x1024xf32, #tpu.memory_space<vmem>>, %arg6: memref<1x8x1024xf32, #tpu.memory_space<vmem>>, %arg7: memref<1x1024x512xbf16, #tpu.memory_space<vmem>>, %arg8: memref<1x1x512xf32, #tpu.memory_space<vmem>>, %arg9: memref<1x8x512xf32, #tpu.memory_space<vmem>>, %arg10: memref<1x8x512xf32, #tpu.memory_space<vmem>>, %arg11: memref<1x8x512xf32, #tpu.memory_space<vmem>>, %arg12: memref<8x1024xf32, #tpu.memory_space<vmem>>) attributes {dimension_semantics = [#tpu.dimension_semantics<parallel>, #tpu.dimension_semantics<arbitrary>], iteration_bounds = array<i64: 2, 8>, scalar_prefetch = 0 : i64, scratch_operands = 1 : i64, tpu.core_type = #tpu.core_type<tc>, window_params = [{transform_indices = @transform_0, window_bounds = array<i64: 1, 8, 640>}, {transform_indices = @transform_1, window_bounds = array<i64: 1, 640, 1024>}, {transform_indices = @transform_2, window_bounds = array<i64: 1, 1, 1024>}, {transform_indices = @transform_3, window_bounds = array<i64: 1, 8, 1024>}, {transform_indices = @transform_4, window_bounds = array<i64: 1, 8, 1024>}, {transform_indices = @transform_5, window_bounds = array<i64: 1, 1024, 512>}, {transform_indices = @transform_6, window_bounds = array<i64: 1, 1, 512>}, {transform_indices = @transform_7, window_bounds = array<i64: 1, 8, 512>}, {transform_indices = @transform_8, window_bounds = array<i64: 1, 8, 512>}, {transform_indices = @transform_9, window_bounds = array<i64: 1, 8, 512>}]} {
    %c0_i32 = arith.constant 0 : i32
    %0 = arith.cmpi eq, %arg1, %c0_i32 : i32
    %1 = arith.extui %0 : i1 to i32
    %c0_i32_0 = arith.constant 0 : i32
    %2 = arith.cmpi ne, %1, %c0_i32_0 : i32
    scf.if %2 {
      %c0_11 = arith.constant 0 : index
      %c0_12 = arith.constant 0 : index
      %c0_13 = arith.constant 0 : index
      %16 = vector.load %arg4[%c0_11, %c0_12, %c0_13] : memref<1x1x1024xf32, #tpu.memory_space<vmem>>, vector<1x1x1024xf32>
      %17 = vector.shape_cast %16 : vector<1x1x1024xf32> to vector<1x1024xf32>
      %18 = vector.shape_cast %17 : vector<1x1024xf32> to vector<1x1024xf32>
      %19 = vector.broadcast %18 : vector<1x1024xf32> to vector<8x1024xf32>
      %c0_14 = arith.constant 0 : index
      %c0_15 = arith.constant 0 : index
      %20 = vector.load %arg12[%c0_14, %c0_15] : memref<8x1024xf32, #tpu.memory_space<vmem>>, vector<8x1024xf32>
      tpu.vector_store %arg12[%c0_14, %c0_15], %19 {strides = array<i32>} : memref<8x1024xf32, #tpu.memory_space<vmem>>, vector<8x1024xf32>,
    } else {
    }
    %c0 = arith.constant 0 : index
    %c0_1 = arith.constant 0 : index
    %c0_2 = arith.constant 0 : index
    %3 = vector.load %arg3[%c0, %c0_1, %c0_2] : memref<1x640x1024xi8, #tpu.memory_space<vmem>>, vector<1x640x1024xi8>
    %4 = vector.shape_cast %3 : vector<1x640x1024xi8> to vector<640x1024xi8>
    %5 = arith.sitofp %4 : vector<640x1024xi8> to vector<640x1024xf32>
    %6 = arith.truncf %5 : vector<640x1024xf32> to vector<640x1024xbf16>
    %c0_3 = arith.constant 0 : index
    %c0_4 = arith.constant 0 : index
    %7 = vector.load %arg12[%c0_3, %c0_4] : memref<8x1024xf32, #tpu.memory_space<vmem>>, vector<8x1024xf32>
    %c0_5 = arith.constant 0 : index
    %c0_6 = arith.constant 0 : index
    %c0_7 = arith.constant 0 : index
    %8 = vector.load %arg2[%c0_5, %c0_6, %c0_7] : memref<1x8x640xbf16, #tpu.memory_space<vmem>>, vector<1x8x640xbf16>
    %9 = vector.shape_cast %8 : vector<1x8x640xbf16> to vector<8x640xbf16>
    %cst = arith.constant dense<0.000000e+00> : vector<8x1024xf32>
    %10 = tpu.matmul %9, %6, %cst {dimension_numbers = #tpu.dot_dimension_numbers<[1], [0], [0], [1], [0, 0, 1, 1], [], []>} : vector<8x640xbf16>, vector<640x1024xbf16>, vector<8x1024xf32> -> vector<8x1024xf32>
    %11 = arith.addf %7, %10 : vector<8x1024xf32>
    %c0_8 = arith.constant 0 : index
    %c0_9 = arith.constant 0 : index
    %12 = vector.load %arg12[%c0_8, %c0_9] : memref<8x1024xf32, #tpu.memory_space<vmem>>, vector<8x1024xf32>
    tpu.vector_store %arg12[%c0_8, %c0_9], %11 {strides = array<i32>} : memref<8x1024xf32, #tpu.memory_space<vmem>>, vector<8x1024xf32>,
    %c7_i32 = arith.constant 7 : i32
    %13 = arith.cmpi eq, %arg1, %c7_i32 : i32
    %14 = arith.extui %13 : i1 to i32
    %c0_i32_10 = arith.constant 0 : i32
    %15 = arith.cmpi ne, %14, %c0_i32_10 : i32
    scf.if %15 {
      %c0_11 = arith.constant 0 : index
      %c0_12 = arith.constant 0 : index
      %16 = vector.load %arg12[%c0_11, %c0_12] : memref<8x1024xf32, #tpu.memory_space<vmem>>, vector<8x1024xf32>
      %cst_13 = arith.constant 0.000000e+00 : f32
      %17 = vector.broadcast %cst_13 : f32 to vector<8x1024xf32>
      %18 = arith.maximumf %16, %17 : vector<8x1024xf32>
      %c0_14 = arith.constant 0 : index
      %c0_15 = arith.constant 0 : index
      %c0_16 = arith.constant 0 : index
      %19 = vector.load %arg5[%c0_14, %c0_15, %c0_16] : memref<1x8x1024xf32, #tpu.memory_space<vmem>>, vector<1x8x1024xf32>
      %20 = vector.shape_cast %19 : vector<1x8x1024xf32> to vector<8x1024xf32>
      %21 = arith.mulf %18, %20 : vector<8x1024xf32>
      %c0_17 = arith.constant 0 : index
      %c0_18 = arith.constant 0 : index
      %c0_19 = arith.constant 0 : index
      %22 = vector.load %arg6[%c0_17, %c0_18, %c0_19] : memref<1x8x1024xf32, #tpu.memory_space<vmem>>, vector<1x8x1024xf32>
      %23 = vector.shape_cast %22 : vector<1x8x1024xf32> to vector<8x1024xf32>
      %24 = arith.addf %21, %23 : vector<8x1024xf32>
      %25 = arith.truncf %24 : vector<8x1024xf32> to vector<8x1024xbf16>
      %c0_20 = arith.constant 0 : index
      %c0_21 = arith.constant 0 : index
      %c0_22 = arith.constant 0 : index
      %26 = vector.load %arg7[%c0_20, %c0_21, %c0_22] : memref<1x1024x512xbf16, #tpu.memory_space<vmem>>, vector<1x1024x512xbf16>
      %27 = vector.shape_cast %26 : vector<1x1024x512xbf16> to vector<1024x512xbf16>
      %cst_23 = arith.constant dense<0.000000e+00> : vector<8x512xf32>
      %28 = tpu.matmul %25, %27, %cst_23 {dimension_numbers = #tpu.dot_dimension_numbers<[1], [0], [0], [1], [0, 0, 1, 1], [], []>} : vector<8x1024xbf16>, vector<1024x512xbf16>, vector<8x512xf32> -> vector<8x512xf32>
      %c0_24 = arith.constant 0 : index
      %c0_25 = arith.constant 0 : index
      %c0_26 = arith.constant 0 : index
      %29 = vector.load %arg8[%c0_24, %c0_25, %c0_26] : memref<1x1x512xf32, #tpu.memory_space<vmem>>, vector<1x1x512xf32>
      %30 = vector.shape_cast %29 : vector<1x1x512xf32> to vector<1x512xf32>
      %31 = vector.broadcast %30 : vector<1x512xf32> to vector<8x512xf32>
      %32 = arith.addf %28, %31 : vector<8x512xf32>
      %cst_27 = arith.constant 0.000000e+00 : f32
      %33 = vector.broadcast %cst_27 : f32 to vector<8x512xf32>
      %34 = arith.maximumf %32, %33 : vector<8x512xf32>
      %c0_28 = arith.constant 0 : index
      %c0_29 = arith.constant 0 : index
      %c0_30 = arith.constant 0 : index
      %35 = vector.load %arg9[%c0_28, %c0_29, %c0_30] : memref<1x8x512xf32, #tpu.memory_space<vmem>>, vector<1x8x512xf32>
      %36 = vector.shape_cast %35 : vector<1x8x512xf32> to vector<8x512xf32>
      %37 = arith.mulf %34, %36 : vector<8x512xf32>
      %c0_31 = arith.constant 0 : index
      %c0_32 = arith.constant 0 : index
      %c0_33 = arith.constant 0 : index
      %38 = vector.load %arg10[%c0_31, %c0_32, %c0_33] : memref<1x8x512xf32, #tpu.memory_space<vmem>>, vector<1x8x512xf32>
      %39 = vector.shape_cast %38 : vector<1x8x512xf32> to vector<8x512xf32>
      %40 = arith.addf %37, %39 : vector<8x512xf32>
      %c0_34 = arith.constant 0 : index
      %c0_35 = arith.constant 0 : index
      %c0_36 = arith.constant 0 : index
      %41 = vector.load %arg11[%c0_34, %c0_35, %c0_36] : memref<1x8x512xf32, #tpu.memory_space<vmem>>, vector<1x8x512xf32>
      %42 = vector.shape_cast %41 : vector<1x8x512xf32> to vector<8x512xf32>
      %43 = vector.shape_cast %40 : vector<8x512xf32> to vector<1x8x512xf32>
      tpu.vector_store %arg11[%c0_34, %c0_35, %c0_36], %43 {strides = array<i32>} : memref<1x8x512xf32, #tpu.memory_space<vmem>>, vector<1x8x512xf32>,
    } else {
    }
    return
  }
  func.func @transform_0(%arg0: i32, %arg1: i32) -> (i32, i32, i32) {
    %c0_i32 = arith.constant 0 : i32
    %c0_i32_0 = arith.constant 0 : i32
    return %arg0, %c0_i32, %arg1 : i32, i32, i32
  }
  func.func @transform_1(%arg0: i32, %arg1: i32) -> (i32, i32, i32) {
    %c0_i32 = arith.constant 0 : i32
    %c0_i32_0 = arith.constant 0 : i32
    return %arg0, %arg1, %c0_i32 : i32, i32, i32
  }
  func.func @transform_2(%arg0: i32, %arg1: i32) -> (i32, i32, i32) {
    %c0_i32 = arith.constant 0 : i32
    %c0_i32_0 = arith.constant 0 : i32
    %c0_i32_1 = arith.constant 0 : i32
    return %arg0, %c0_i32, %c0_i32_0 : i32, i32, i32
  }
  func.func @transform_3(%arg0: i32, %arg1: i32) -> (i32, i32, i32) {
    %c0_i32 = arith.constant 0 : i32
    %c0_i32_0 = arith.constant 0 : i32
    %c0_i32_1 = arith.constant 0 : i32
    return %arg0, %c0_i32, %c0_i32_0 : i32, i32, i32
  }
  func.func @transform_4(%arg0: i32, %arg1: i32) -> (i32, i32, i32) {
    %c0_i32 = arith.constant 0 : i32
    %c0_i32_0 = arith.constant 0 : i32
    %c0_i32_1 = arith.constant 0 : i32
    return %arg0, %c0_i32, %c0_i32_0 : i32, i32, i32
  }
  func.func @transform_5(%arg0: i32, %arg1: i32) -> (i32, i32, i32) {
    %c0_i32 = arith.constant 0 : i32
    %c0_i32_0 = arith.constant 0 : i32
    %c0_i32_1 = arith.constant 0 : i32
    return %arg0, %c0_i32, %c0_i32_0 : i32, i32, i32
  }
  func.func @transform_6(%arg0: i32, %arg1: i32) -> (i32, i32, i32) {
    %c0_i32 = arith.constant 0 : i32
    %c0_i32_0 = arith.constant 0 : i32
    %c0_i32_1 = arith.constant 0 : i32
    return %arg0, %c0_i32, %c0_i32_0 : i32, i32, i32
  }
  func.func @transform_7(%arg0: i32, %arg1: i32) -> (i32, i32, i32) {
    %c0_i32 = arith.constant 0 : i32
    %c0_i32_0 = arith.constant 0 : i32
    %c0_i32_1 = arith.constant 0 : i32
    return %arg0, %c0_i32, %c0_i32_0 : i32, i32, i32
  }
  func.func @transform_8(%arg0: i32, %arg1: i32) -> (i32, i32, i32) {
    %c0_i32 = arith.constant 0 : i32
    %c0_i32_0 = arith.constant 0 : i32
    %c0_i32_1 = arith.constant 0 : i32
    return %arg0, %c0_i32, %c0_i32_0 : i32, i32, i32
  }
  func.func @transform_9(%arg0: i32, %arg1: i32) -> (i32, i32, i32) {
    %c0_i32 = arith.constant 0 : i32
    %c0_i32_0 = arith.constant 0 : i32
    %c0_i32_1 = arith.constant 0 : i32
    return %arg0, %c0_i32, %c0_i32_0 : i32, i32, i32
  }
}

module attributes {stable_mosaic.version = 11 : i64} {
  func.func @_head_kernel(%arg0: memref<2x8x512xf32, #tpu.memory_space<vmem>>, %arg1: memref<512x128xbf16, #tpu.memory_space<vmem>>, %arg2: memref<512x128xbf16, #tpu.memory_space<vmem>>, %arg3: memref<1x128xf32, #tpu.memory_space<vmem>>, %arg4: memref<128x2xf32, #tpu.memory_space<vmem>>, %arg5: memref<1x2xf32, #tpu.memory_space<vmem>>, %arg6: memref<512x8xbf16, #tpu.memory_space<vmem>>, %arg7: memref<1x8xf32, #tpu.memory_space<vmem>>, %arg8: memref<512x8xbf16, #tpu.memory_space<vmem>>, %arg9: memref<1x8xf32, #tpu.memory_space<vmem>>, %arg10: memref<8x8xf32, #tpu.memory_space<vmem>>, %arg11: memref<8x2xf32, #tpu.memory_space<vmem>>) attributes {dimension_semantics = [], scalar_prefetch = 0 : i64, scratch_operands = 0 : i64, tpu.core_type = #tpu.core_type<tc>} {
    %c0 = arith.constant 0 : index
    %c0_0 = arith.constant 0 : index
    %c0_1 = arith.constant 0 : index
    %0 = vector.load %arg0[%c0, %c0_0, %c0_1] : memref<2x8x512xf32, #tpu.memory_space<vmem>>, vector<1x8x512xf32>
    %1 = vector.shape_cast %0 : vector<1x8x512xf32> to vector<8x512xf32>
    %2 = arith.truncf %1 : vector<8x512xf32> to vector<8x512xbf16>
    %c1 = arith.constant 1 : index
    %c0_2 = arith.constant 0 : index
    %c0_3 = arith.constant 0 : index
    %3 = vector.load %arg0[%c1, %c0_2, %c0_3] : memref<2x8x512xf32, #tpu.memory_space<vmem>>, vector<1x8x512xf32>
    %4 = vector.shape_cast %3 : vector<1x8x512xf32> to vector<8x512xf32>
    %5 = arith.truncf %4 : vector<8x512xf32> to vector<8x512xbf16>
    %c0_4 = arith.constant 0 : index
    %c0_5 = arith.constant 0 : index
    %6 = vector.load %arg1[%c0_4, %c0_5] : memref<512x128xbf16, #tpu.memory_space<vmem>>, vector<512x128xbf16>
    %cst = arith.constant dense<0.000000e+00> : vector<8x128xf32>
    %7 = tpu.matmul %2, %6, %cst {dimension_numbers = #tpu.dot_dimension_numbers<[1], [0], [0], [1], [0, 0, 1, 1], [], []>} : vector<8x512xbf16>, vector<512x128xbf16>, vector<8x128xf32> -> vector<8x128xf32>
    %c0_6 = arith.constant 0 : index
    %c0_7 = arith.constant 0 : index
    %8 = vector.load %arg2[%c0_6, %c0_7] : memref<512x128xbf16, #tpu.memory_space<vmem>>, vector<512x128xbf16>
    %cst_8 = arith.constant dense<0.000000e+00> : vector<8x128xf32>
    %9 = tpu.matmul %5, %8, %cst_8 {dimension_numbers = #tpu.dot_dimension_numbers<[1], [0], [0], [1], [0, 0, 1, 1], [], []>} : vector<8x512xbf16>, vector<512x128xbf16>, vector<8x128xf32> -> vector<8x128xf32>
    %10 = arith.addf %7, %9 : vector<8x128xf32>
    %c0_9 = arith.constant 0 : index
    %c0_10 = arith.constant 0 : index
    %11 = vector.load %arg3[%c0_9, %c0_10] : memref<1x128xf32, #tpu.memory_space<vmem>>, vector<1x128xf32>
    %12 = vector.broadcast %11 : vector<1x128xf32> to vector<8x128xf32>
    %13 = arith.addf %10, %12 : vector<8x128xf32>
    %cst_11 = arith.constant 0.000000e+00 : f32
    %14 = vector.broadcast %cst_11 : f32 to vector<8x128xf32>
    %15 = arith.maximumf %13, %14 : vector<8x128xf32>
    %c0_12 = arith.constant 0 : index
    %c0_13 = arith.constant 0 : index
    %16 = vector.load %arg4[%c0_12, %c0_13] : memref<128x2xf32, #tpu.memory_space<vmem>>, vector<128x2xf32>
    %cst_14 = arith.constant dense<0.000000e+00> : vector<8x2xf32>
    %17 = tpu.matmul %15, %16, %cst_14 {dimension_numbers = #tpu.dot_dimension_numbers<[1], [0], [0], [1], [0, 0, 1, 1], [], []>} : vector<8x128xf32>, vector<128x2xf32>, vector<8x2xf32> -> vector<8x2xf32>
    %c0_15 = arith.constant 0 : index
    %c0_16 = arith.constant 0 : index
    %18 = vector.load %arg5[%c0_15, %c0_16] : memref<1x2xf32, #tpu.memory_space<vmem>>, vector<1x2xf32>
    %19 = vector.broadcast %18 : vector<1x2xf32> to vector<8x2xf32>
    %20 = arith.addf %17, %19 : vector<8x2xf32>
    %c0_17 = arith.constant 0 : index
    %c0_18 = arith.constant 0 : index
    %21 = vector.load %arg6[%c0_17, %c0_18] : memref<512x8xbf16, #tpu.memory_space<vmem>>, vector<512x8xbf16>
    %cst_19 = arith.constant dense<0.000000e+00> : vector<8x8xf32>
    %22 = tpu.matmul %2, %21, %cst_19 {dimension_numbers = #tpu.dot_dimension_numbers<[1], [0], [0], [1], [0, 0, 1, 1], [], []>} : vector<8x512xbf16>, vector<512x8xbf16>, vector<8x8xf32> -> vector<8x8xf32>
    %c0_20 = arith.constant 0 : index
    %c0_21 = arith.constant 0 : index
    %23 = vector.load %arg8[%c0_20, %c0_21] : memref<512x8xbf16, #tpu.memory_space<vmem>>, vector<512x8xbf16>
    %cst_22 = arith.constant dense<0.000000e+00> : vector<8x8xf32>
    %24 = tpu.matmul %5, %23, %cst_22 {dimension_numbers = #tpu.dot_dimension_numbers<[1], [0], [0], [1], [0, 0, 1, 1], [], []>} : vector<8x512xbf16>, vector<512x8xbf16>, vector<8x8xf32> -> vector<8x8xf32>
    %25 = arith.addf %22, %24 : vector<8x8xf32>
    %c0_23 = arith.constant 0 : index
    %c0_24 = arith.constant 0 : index
    %26 = vector.load %arg7[%c0_23, %c0_24] : memref<1x8xf32, #tpu.memory_space<vmem>>, vector<1x8xf32>
    %27 = vector.broadcast %26 : vector<1x8xf32> to vector<8x8xf32>
    %28 = arith.addf %25, %27 : vector<8x8xf32>
    %c0_25 = arith.constant 0 : index
    %c0_26 = arith.constant 0 : index
    %29 = vector.load %arg9[%c0_25, %c0_26] : memref<1x8xf32, #tpu.memory_space<vmem>>, vector<1x8xf32>
    %30 = vector.broadcast %29 : vector<1x8xf32> to vector<8x8xf32>
    %31 = arith.addf %28, %30 : vector<8x8xf32>
    %c0_27 = arith.constant 0 : index
    %c0_28 = arith.constant 0 : index
    %32 = vector.load %arg10[%c0_27, %c0_28] : memref<8x8xf32, #tpu.memory_space<vmem>>, vector<8x8xf32>
    tpu.vector_store %arg10[%c0_27, %c0_28], %31 {strides = array<i32>} : memref<8x8xf32, #tpu.memory_space<vmem>>, vector<8x8xf32>,
    %c0_29 = arith.constant 0 : index
    %c0_30 = arith.constant 0 : index
    %33 = vector.load %arg11[%c0_29, %c0_30] : memref<8x2xf32, #tpu.memory_space<vmem>>, vector<8x2xf32>
    tpu.vector_store %arg11[%c0_29, %c0_30], %20 {strides = array<i32>} : memref<8x2xf32, #tpu.memory_space<vmem>>, vector<8x2xf32>,
    return
  }
}

</mosaic_0001>

<llo_original>
// kernel: concat_features_net.3
$region0: #{concat_features_net.3}
  #allocation0 [shape = 'u32[]', space=smem, size = 0x4, offset = 0x4, fixed_abs, tag = 'smem constant byte address 0x4 - core index']
  #allocation1 [shape = 'u32[144,128]{1,0:T(1,128)}', space=vmem, size = 0x12000, scoped, tag = 'internal scratch']
  %s0 = inlined_call_operand.vmem [shape: f32[2,8,512], index: 0, kind: input, shape index: {}]
  %s1 = inlined_call_operand.vmem [shape: bf16[512,128], index: 1, kind: input, shape index: {}]
  %s2 = inlined_call_operand.vmem [shape: bf16[512,128], index: 2, kind: input, shape index: {}]
  %s3 = inlined_call_operand.vmem [shape: f32[1,128], index: 3, kind: input, shape index: {}]
  %s4 = inlined_call_operand.vmem [shape: f32[128,2], index: 4, kind: input, shape index: {}]
  %s5 = inlined_call_operand.vmem [shape: f32[1,2], index: 5, kind: input, shape index: {}]
  %s6 = inlined_call_operand.vmem [shape: bf16[512,8], index: 6, kind: input, shape index: {}]
  %s7 = inlined_call_operand.vmem [shape: f32[1,8], index: 7, kind: input, shape index: {}]
  %s8 = inlined_call_operand.vmem [shape: bf16[512,8], index: 8, kind: input, shape index: {}]
  %s9 = inlined_call_operand.vmem [shape: f32[1,8], index: 9, kind: input, shape index: {}]
  %s10 = inlined_call_operand.hbm [shape: f32[8,8], index: 10, kind: output, shape index: {0}]
  %s11 = inlined_call_operand.vmem [shape: f32[8,2], index: 11, kind: output, shape index: {1}]
  %12 = xla_tuple %s10, %s11
  %s13 = sld [smem:[#allocation0]]
  $region58: #{concat_features_net.3} parent=0
    _
  %s15 = ssub.s32 1, %s13
  %s16 = scalar_select 0, %s15, %s13
  $region1: #{concat_features_net.3} parent=0
    #allocation2 [shape = 'u8[4096]{0}', space=vmem, size = 0x1000, scoped, tag = 'output window, operand 0, single buffered']
    #allocation3 [shape = 's32[1]{0}', space=sflag, size = 0x4, scoped, tag = 'scoped memory for concat_features_net.3']
    %17 = vsyncpa [#allocation3], 0
    // Predicated region
    $region2: #{concat_features_net.3} parent=1 // pred_check
      _
    $region3: #{concat_features_net.3} parent=1 // pred_check_branch
      %19 = sbr.rel (0) target = $region5
    $region4: #{concat_features_net.3} parent=1 // pred_region
      _
    $region5: #{concat_features_net.3} parent=1 // pred_fallthru
      _
    // Predicated region
    $region6: #{concat_features_net.3} parent=1 // pred_check
      _
    $region7: #{concat_features_net.3} parent=1 // pred_check_branch
      %21 = sbr.rel (0) target = $region9
    $region8: #{concat_features_net.3} parent=1 // pred_region
      _
    $region9: #{concat_features_net.3} parent=1 // pred_fallthru
      _
    // Predicated region
    $region10: #{concat_features_net.3} parent=1 // pred_check
      _
    $region11: #{concat_features_net.3} parent=1 // pred_check_branch
      %23 = sbr.rel (0) target = $region13
    $region12: #{concat_features_net.3} parent=1 // pred_region
      _
    $region13: #{concat_features_net.3} parent=1 // pred_fallthru
      _
    // Predicated region
    $region14: #{concat_features_net.3} parent=1 // pred_check
      _
    $region15: #{concat_features_net.3} parent=1 // pred_check_branch
      %25 = sbr.rel (0) target = $region17
    $region16: #{concat_features_net.3} parent=1 // pred_region
      _
    $region17: #{concat_features_net.3} parent=1 // pred_fallthru
      _
    // Predicated region
    $region18: #{concat_features_net.3} parent=1 // pred_check
      _
    $region19: #{concat_features_net.3} parent=1 // pred_check_branch
      %27 = sbr.rel (0) target = $region21
    $region20: #{concat_features_net.3} parent=1 // pred_region
      _
    $region21: #{concat_features_net.3} parent=1 // pred_fallthru
      _
    // Predicated region
    $region22: #{concat_features_net.3} parent=1 // pred_check
      _
    $region23: #{concat_features_net.3} parent=1 // pred_check_branch
      %29 = sbr.rel (0) target = $region25
    $region24: #{concat_features_net.3} parent=1 // pred_region
      _
    $region25: #{concat_features_net.3} parent=1 // pred_fallthru
      _
    // Predicated region
    $region26: #{concat_features_net.3} parent=1 // pred_check
      _
    $region27: #{concat_features_net.3} parent=1 // pred_check_branch
      %31 = sbr.rel (0) target = $region29
    $region28: #{concat_features_net.3} parent=1 // pred_region
      _
    $region29: #{concat_features_net.3} parent=1 // pred_fallthru
      _
    // Predicated region
    $region30: #{concat_features_net.3} parent=1 // pred_check
      _
    $region31: #{concat_features_net.3} parent=1 // pred_check_branch
      %33 = sbr.rel (0) target = $region33
    $region32: #{concat_features_net.3} parent=1 // pred_region
      _
    $region33: #{concat_features_net.3} parent=1 // pred_fallthru
      _
    // Predicated region
    $region34: #{concat_features_net.3} parent=1 // pred_check
      _
    $region35: #{concat_features_net.3} parent=1 // pred_check_branch
      %35 = sbr.rel (0) target = $region37
    $region36: #{concat_features_net.3} parent=1 // pred_region
      _
    $region37: #{concat_features_net.3} parent=1 // pred_fallthru
      _
    // Predicated region
    $region38: #{concat_features_net.3} parent=1 // pred_check
      _
    $region39: #{concat_features_net.3} parent=1 // pred_check_branch
      %37 = sbr.rel (0) target = $region41
    $region40: #{concat_features_net.3} parent=1 // pred_region
      _
    $region41: #{concat_features_net.3} parent=1 // pred_fallthru
      _
    %v39 = vld [vmem:[%s0] sm:$0xff]
    %v40 = vld [vmem:[%s0 + $0x8] sm:$0xff]
    %v41 = vld [vmem:[%s0 + $0x10] sm:$0xff]
    %v42 = vld [vmem:[%s0 + $0x18] sm:$0xff]
    %v43 = vpack.c.bf16 %v39, %v39
    %v44 = vpack.c.bf16 %v40, %v40
    %v45 = vpack.c.bf16 %v41, %v41
    %v46 = vpack.c.bf16 %v42, %v42
    %s47 = scalar_lea.vmem %s0, 32
    %v48 = vld [vmem:[%s47] sm:$0xff]
    %v49 = vld [vmem:[%s47 + $0x8] sm:$0xff]
    %v50 = vld [vmem:[%s47 + $0x10] sm:$0xff]
    %v51 = vld [vmem:[%s47 + $0x18] sm:$0xff]
    %v52 = vpack.c.bf16 %v48, %v48
    %v53 = vpack.c.bf16 %v49, %v49
    %v54 = vpack.c.bf16 %v50, %v50
    %v55 = vpack.c.bf16 %v51, %v51
    %v56 = vld [vmem:[%s1] sm:$0xf]
    %v57 = vld [vmem:[%s1 + $0x4] sm:$0xf]
    %v58 = vld [vmem:[%s1 + $0x8] sm:$0xf]
    %v59 = vld [vmem:[%s1 + $0xc] sm:$0xf]
    %v60 = vld [vmem:[%s1 + $0x10] sm:$0xf]
    %v61 = vld [vmem:[%s1 + $0x14] sm:$0xf]
    %v62 = vld [vmem:[%s1 + $0x18] sm:$0xf]
    %v63 = vld [vmem:[%s1 + $0x1c] sm:$0xf]
    %v64 = vld [vmem:[%s1 + $0x20] sm:$0xf]
    %v65 = vld [vmem:[%s1 + $0x24] sm:$0xf]
    %v66 = vld [vmem:[%s1 + $0x28] sm:$0xf]
    %v67 = vld [vmem:[%s1 + $0x2c] sm:$0xf]
    %v68 = vld [vmem:[%s1 + $0x30] sm:$0xf]
    %v69 = vld [vmem:[%s1 + $0x34] sm:$0xf]
    %v70 = vld [vmem:[%s1 + $0x38] sm:$0xf]
    %v71 = vld [vmem:[%s1 + $0x3c] sm:$0xf]
    %v72 = vld [vmem:[%s1 + $0x40] sm:$0xf]
    %v73 = vld [vmem:[%s1 + $0x44] sm:$0xf]
    %v74 = vld [vmem:[%s1 + $0x48] sm:$0xf]
    %v75 = vld [vmem:[%s1 + $0x4c] sm:$0xf]
    %v76 = vld [vmem:[%s1 + $0x50] sm:$0xf]
    %v77 = vld [vmem:[%s1 + $0x54] sm:$0xf]
    %v78 = vld [vmem:[%s1 + $0x58] sm:$0xf]
    %v79 = vld [vmem:[%s1 + $0x5c] sm:$0xf]
    %v80 = vld [vmem:[%s1 + $0x60] sm:$0xf]
    %v81 = vld [vmem:[%s1 + $0x64] sm:$0xf]
    %v82 = vld [vmem:[%s1 + $0x68] sm:$0xf]
    %v83 = vld [vmem:[%s1 + $0x6c] sm:$0xf]
    %v84 = vld [vmem:[%s1 + $0x70] sm:$0xf]
    %v85 = vld [vmem:[%s1 + $0x74] sm:$0xf]
    %v86 = vld [vmem:[%s1 + $0x78] sm:$0xf]
    %v87 = vld [vmem:[%s1 + $0x7c] sm:$0xf]
    %v88 = vld [vmem:[%s1 + $0x80] sm:$0xf]
    %v89 = vld [vmem:[%s1 + $0x84] sm:$0xf]
    %v90 = vld [vmem:[%s1 + $0x88] sm:$0xf]
    %v91 = vld [vmem:[%s1 + $0x8c] sm:$0xf]
    %v92 = vld [vmem:[%s1 + $0x90] sm:$0xf]
    %v93 = vld [vmem:[%s1 + $0x94] sm:$0xf]
    %v94 = vld [vmem:[%s1 + $0x98] sm:$0xf]
    %v95 = vld [vmem:[%s1 + $0x9c] sm:$0xf]
    %v96 = vld [vmem:[%s1 + $0xa0] sm:$0xf]
    %v97 = vld [vmem:[%s1 + $0xa4] sm:$0xf]
    %v98 = vld [vmem:[%s1 + $0xa8] sm:$0xf]
    %v99 = vld [vmem:[%s1 + $0xac] sm:$0xf]
    %v100 = vld [vmem:[%s1 + $0xb0] sm:$0xf]
    %v101 = vld [vmem:[%s1 + $0xb4] sm:$0xf]
    %v102 = vld [vmem:[%s1 + $0xb8] sm:$0xf]
    %v103 = vld [vmem:[%s1 + $0xbc] sm:$0xf]
    %v104 = vld [vmem:[%s1 + $0xc0] sm:$0xf]
    %v105 = vld [vmem:[%s1 + $0xc4] sm:$0xf]
    %v106 = vld [vmem:[%s1 + $0xc8] sm:$0xf]
    %v107 = vld [vmem:[%s1 + $0xcc] sm:$0xf]
    %v108 = vld [vmem:[%s1 + $0xd0] sm:$0xf]
    %v109 = vld [vmem:[%s1 + $0xd4] sm:$0xf]
    %v110 = vld [vmem:[%s1 + $0xd8] sm:$0xf]
    %v111 = vld [vmem:[%s1 + $0xdc] sm:$0xf]
    %v112 = vld [vmem:[%s1 + $0xe0] sm:$0xf]
    %v113 = vld [vmem:[%s1 + $0xe4] sm:$0xf]
    %v114 = vld [vmem:[%s1 + $0xe8] sm:$0xf]
    %v115 = vld [vmem:[%s1 + $0xec] sm:$0xf]
    %v116 = vld [vmem:[%s1 + $0xf0] sm:$0xf]
    %v117 = vld [vmem:[%s1 + $0xf4] sm:$0xf]
    %v118 = vld [vmem:[%s1 + $0xf8] sm:$0xf]
    %v119 = vld [vmem:[%s1 + $0xfc] sm:$0xf]
    %v120 = vld [vmem:[%s2] sm:$0xf]
    %v121 = vld [vmem:[%s2 + $0x4] sm:$0xf]
    %v122 = vld [vmem:[%s2 + $0x8] sm:$0xf]
    %v123 = vld [vmem:[%s2 + $0xc] sm:$0xf]
    %v124 = vld [vmem:[%s2 + $0x10] sm:$0xf]
    %v125 = vld [vmem:[%s2 + $0x14] sm:$0xf]
    %v126 = vld [vmem:[%s2 + $0x18] sm:$0xf]
    %v127 = vld [vmem:[%s2 + $0x1c] sm:$0xf]
    %v128 = vld [vmem:[%s2 + $0x20] sm:$0xf]
    %v129 = vld [vmem:[%s2 + $0x24] sm:$0xf]
    %v130 = vld [vmem:[%s2 + $0x28] sm:$0xf]
    %v131 = vld [vmem:[%s2 + $0x2c] sm:$0xf]
    %v132 = vld [vmem:[%s2 + $0x30] sm:$0xf]
    %v133 = vld [vmem:[%s2 + $0x34] sm:$0xf]
    %v134 = vld [vmem:[%s2 + $0x38] sm:$0xf]
    %v135 = vld [vmem:[%s2 + $0x3c] sm:$0xf]
    %v136 = vld [vmem:[%s2 + $0x40] sm:$0xf]
    %v137 = vld [vmem:[%s2 + $0x44] sm:$0xf]
    %v138 = vld [vmem:[%s2 + $0x48] sm:$0xf]
    %v139 = vld [vmem:[%s2 + $0x4c] sm:$0xf]
    %v140 = vld [vmem:[%s2 + $0x50] sm:$0xf]
    %v141 = vld [vmem:[%s2 + $0x54] sm:$0xf]
    %v142 = vld [vmem:[%s2 + $0x58] sm:$0xf]
    %v143 = vld [vmem:[%s2 + $0x5c] sm:$0xf]
    %v144 = vld [vmem:[%s2 + $0x60] sm:$0xf]
    %v145 = vld [vmem:[%s2 + $0x64] sm:$0xf]
    %v146 = vld [vmem:[%s2 + $0x68] sm:$0xf]
    %v147 = vld [vmem:[%s2 + $0x6c] sm:$0xf]
    %v148 = vld [vmem:[%s2 + $0x70] sm:$0xf]
    %v149 = vld [vmem:[%s2 + $0x74] sm:$0xf]
    %v150 = vld [vmem:[%s2 + $0x78] sm:$0xf]
    %v151 = vld [vmem:[%s2 + $0x7c] sm:$0xf]
    %v152 = vld [vmem:[%s2 + $0x80] sm:$0xf]
    %v153 = vld [vmem:[%s2 + $0x84] sm:$0xf]
    %v154 = vld [vmem:[%s2 + $0x88] sm:$0xf]
    %v155 = vld [vmem:[%s2 + $0x8c] sm:$0xf]
    %v156 = vld [vmem:[%s2 + $0x90] sm:$0xf]
    %v157 = vld [vmem:[%s2 + $0x94] sm:$0xf]
    %v158 = vld [vmem:[%s2 + $0x98] sm:$0xf]
    %v159 = vld [vmem:[%s2 + $0x9c] sm:$0xf]
    %v160 = vld [vmem:[%s2 + $0xa0] sm:$0xf]
    %v161 = vld [vmem:[%s2 + $0xa4] sm:$0xf]
    %v162 = vld [vmem:[%s2 + $0xa8] sm:$0xf]
    %v163 = vld [vmem:[%s2 + $0xac] sm:$0xf]
    %v164 = vld [vmem:[%s2 + $0xb0] sm:$0xf]
    %v165 = vld [vmem:[%s2 + $0xb4] sm:$0xf]
    %v166 = vld [vmem:[%s2 + $0xb8] sm:$0xf]
    %v167 = vld [vmem:[%s2 + $0xbc] sm:$0xf]
    %v168 = vld [vmem:[%s2 + $0xc0] sm:$0xf]
    %v169 = vld [vmem:[%s2 + $0xc4] sm:$0xf]
    %v170 = vld [vmem:[%s2 + $0xc8] sm:$0xf]
    %v171 = vld [vmem:[%s2 + $0xcc] sm:$0xf]
    %v172 = vld [vmem:[%s2 + $0xd0] sm:$0xf]
    %v173 = vld [vmem:[%s2 + $0xd4] sm:$0xf]
    %v174 = vld [vmem:[%s2 + $0xd8] sm:$0xf]
    %v175 = vld [vmem:[%s2 + $0xdc] sm:$0xf]
    %v176 = vld [vmem:[%s2 + $0xe0] sm:$0xf]
    %v177 = vld [vmem:[%s2 + $0xe4] sm:$0xf]
    %v178 = vld [vmem:[%s2 + $0xe8] sm:$0xf]
    %v179 = vld [vmem:[%s2 + $0xec] sm:$0xf]
    %v180 = vld [vmem:[%s2 + $0xf0] sm:$0xf]
    %v181 = vld [vmem:[%s2 + $0xf4] sm:$0xf]
    %v182 = vld [vmem:[%s2 + $0xf8] sm:$0xf]
    %v183 = vld [vmem:[%s2 + $0xfc] sm:$0xf]
    %v248 = vunpack.c.l.b16 %v120
    %v249 = vunpack.c.l.b16 %v121
    %v250 = vunpack.c.l.b16 %v122
    %v251 = vunpack.c.l.b16 %v123
    %v252 = vunpack.c.l.b16 %v124
    %v253 = vunpack.c.l.b16 %v125
    %v254 = vunpack.c.l.b16 %v126
    %v255 = vunpack.c.l.b16 %v127
    %v256 = vunpack.c.l.b16 %v128
    %v257 = vunpack.c.l.b16 %v129
    %v258 = vunpack.c.l.b16 %v130
    %v259 = vunpack.c.l.b16 %v131
    %v260 = vunpack.c.l.b16 %v132
    %v261 = vunpack.c.l.b16 %v133
    %v262 = vunpack.c.l.b16 %v134
    %v263 = vunpack.c.l.b16 %v135
    %v264 = vunpack.c.l.b16 %v136
    %v265 = vunpack.c.l.b16 %v137
    %v266 = vunpack.c.l.b16 %v138
    %v267 = vunpack.c.l.b16 %v139
    %v268 = vunpack.c.l.b16 %v140
    %v269 = vunpack.c.l.b16 %v141
    %v270 = vunpack.c.l.b16 %v142
    %v271 = vunpack.c.l.b16 %v143
    %v272 = vunpack.c.l.b16 %v144
    %v273 = vunpack.c.l.b16 %v145
    %v274 = vunpack.c.l.b16 %v146
    %v275 = vunpack.c.l.b16 %v147
    %v276 = vunpack.c.l.b16 %v148
    %v277 = vunpack.c.l.b16 %v149
    %v278 = vunpack.c.l.b16 %v150
    %v279 = vunpack.c.l.b16 %v151
    %v280 = vunpack.c.l.b16 %v152
    %v281 = vunpack.c.l.b16 %v153
    %v282 = vunpack.c.l.b16 %v154
    %v283 = vunpack.c.l.b16 %v155
    %v284 = vunpack.c.l.b16 %v156
    %v285 = vunpack.c.l.b16 %v157
    %v286 = vunpack.c.l.b16 %v158
    %v287 = vunpack.c.l.b16 %v159
    %v288 = vunpack.c.l.b16 %v160
    %v289 = vunpack.c.l.b16 %v161
    %v290 = vunpack.c.l.b16 %v162
    %v291 = vunpack.c.l.b16 %v163
    %v292 = vunpack.c.l.b16 %v164
    %v293 = vunpack.c.l.b16 %v165
    %v294 = vunpack.c.l.b16 %v166
    %v295 = vunpack.c.l.b16 %v167
    %v296 = vunpack.c.l.b16 %v168
    %v297 = vunpack.c.l.b16 %v169
    %v298 = vunpack.c.l.b16 %v170
    %v299 = vunpack.c.l.b16 %v171
    %v300 = vunpack.c.l.b16 %v172
    %v301 = vunpack.c.l.b16 %v173
    %v302 = vunpack.c.l.b16 %v174
    %v303 = vunpack.c.l.b16 %v175
    %v304 = vunpack.c.l.b16 %v176
    %v305 = vunpack.c.l.b16 %v177
    %v306 = vunpack.c.l.b16 %v178
    %v307 = vunpack.c.l.b16 %v179
    %v308 = vunpack.c.l.b16 %v180
    %v309 = vunpack.c.l.b16 %v181
    %v310 = vunpack.c.l.b16 %v182
    %v311 = vunpack.c.l.b16 %v183
    %v312 = vpack.c.b16 %v249, %v248
    %v313 = vpack.c.b16 %v251, %v250
    %v314 = vpack.c.b16 %v253, %v252
    %v315 = vpack.c.b16 %v255, %v254
    %v316 = vpack.c.b16 %v257, %v256
    %v317 = vpack.c.b16 %v259, %v258
    %v318 = vpack.c.b16 %v261, %v260
    %v319 = vpack.c.b16 %v263, %v262
    %v320 = vpack.c.b16 %v265, %v264
    %v321 = vpack.c.b16 %v267, %v266
    %v322 = vpack.c.b16 %v269, %v268
    %v323 = vpack.c.b16 %v271, %v270
    %v324 = vpack.c.b16 %v273, %v272
    %v325 = vpack.c.b16 %v275, %v274
    %v326 = vpack.c.b16 %v277, %v276
    %v327 = vpack.c.b16 %v279, %v278
    %v328 = vpack.c.b16 %v281, %v280
    %v329 = vpack.c.b16 %v283, %v282
    %v330 = vpack.c.b16 %v285, %v284
    %v331 = vpack.c.b16 %v287, %v286
    %v332 = vpack.c.b16 %v289, %v288
    %v333 = vpack.c.b16 %v291, %v290
    %v334 = vpack.c.b16 %v293, %v292
    %v335 = vpack.c.b16 %v295, %v294
    %v336 = vpack.c.b16 %v297, %v296
    %v337 = vpack.c.b16 %v299, %v298
    %v338 = vpack.c.b16 %v301, %v300
    %v339 = vpack.c.b16 %v303, %v302
    %v340 = vpack.c.b16 %v305, %v304
    %v341 = vpack.c.b16 %v307, %v306
    %v342 = vpack.c.b16 %v309, %v308
    %v343 = vpack.c.b16 %v311, %v310
    %376 = vmatprep.subr.bf16.mxu0 0
    %377 = vmatpush1.bf16.msra.mxu0 %v312
    %378 = vmatprep.subr.bf16.mxu0 0
    %379 = vmatpush1.bf16.msra.mxu0 %v313
    %380 = vmatprep.subr.bf16.mxu0 0
    %381 = vmatpush1.bf16.msra.mxu0 %v314
    %382 = vmatprep.subr.bf16.mxu0 0
    %383 = vmatpush1.bf16.msra.mxu0 %v315
    %384 = vmatprep.subr.bf16.mxu0 0
    %385 = vmatpush1.bf16.msra.mxu0 %v316
    %386 = vmatprep.subr.bf16.mxu0 0
    %387 = vmatpush1.bf16.msra.mxu0 %v317
    %388 = vmatprep.subr.bf16.mxu0 0
    %389 = vmatpush1.bf16.msra.mxu0 %v318
    %390 = vmatprep.subr.bf16.mxu0 0
    %391 = vmatpush1.bf16.msra.mxu0 %v319
    %392 = vmatprep.subr.bf16.mxu0 0
    %393 = vmatpush1.bf16.msra.mxu0 %v320
    %394 = vmatprep.subr.bf16.mxu0 0
    %395 = vmatpush1.bf16.msra.mxu0 %v321
    %396 = vmatprep.subr.bf16.mxu0 0
    %397 = vmatpush1.bf16.msra.mxu0 %v322
    %398 = vmatprep.subr.bf16.mxu0 0
    %399 = vmatpush1.bf16.msra.mxu0 %v323
    %400 = vmatprep.subr.bf16.mxu0 0
    %401 = vmatpush1.bf16.msra.mxu0 %v324
    %402 = vmatprep.subr.bf16.mxu0 0
    %403 = vmatpush1.bf16.msra.mxu0 %v325
    %404 = vmatprep.subr.bf16.mxu0 0
    %405 = vmatpush1.bf16.msra.mxu0 %v326
    %406 = vmatprep.subr.bf16.mxu0 0
    %407 = vmatpush1.bf16.msra.mxu0 %v327
    %408 = vmatprep.mubr.bf16.mxu0 %v53
    %409 = vmatmul.mubr.bf16.gmra.mrb[0].mxu0 %v52
    %v410 = vpop.f32.mrb[0].mxu0
    %v411 = vadd.f32 0.0, %v410
    %v412 = vpop.f32.mrb[0].mxu0
    %v413 = vpop.f32.mrb[0].mxu0
    %v414 = vpop.f32.mrb[0].mxu0
    %415 = vdwg.mxu0
    %416 = vmatprep.subr.bf16.mxu0 0
    %417 = vmatpush1.bf16.msra.mxu0 %v328
    %418 = vmatprep.subr.bf16.mxu0 0
    %419 = vmatpush1.bf16.msra.mxu0 %v329
    %420 = vmatprep.subr.bf16.mxu0 0
    %421 = vmatpush1.bf16.msra.mxu0 %v330
    %422 = vmatprep.subr.bf16.mxu0 0
    %423 = vmatpush1.bf16.msra.mxu0 %v331
    %424 = vmatprep.subr.bf16.mxu0 0
    %425 = vmatpush1.bf16.msra.mxu0 %v332
    %426 = vmatprep.subr.bf16.mxu0 0
    %427 = vmatpush1.bf16.msra.mxu0 %v333
    %428 = vmatprep.subr.bf16.mxu0 0
    %429 = vmatpush1.bf16.msra.mxu0 %v334
    %430 = vmatprep.subr.bf16.mxu0 0
    %431 = vmatpush1.bf16.msra.mxu0 %v335
    %432 = vmatprep.subr.bf16.mxu0 0
    %433 = vmatpush1.bf16.msra.mxu0 %v336
    %434 = vmatprep.subr.bf16.mxu0 0
    %435 = vmatpush1.bf16.msra.mxu0 %v337
    %436 = vmatprep.subr.bf16.mxu0 0
    %437 = vmatpush1.bf16.msra.mxu0 %v338
    %438 = vmatprep.subr.bf16.mxu0 0
    %439 = vmatpush1.bf16.msra.mxu0 %v339
    %440 = vmatprep.subr.bf16.mxu0 0
    %441 = vmatpush1.bf16.msra.mxu0 %v340
    %442 = vmatprep.subr.bf16.mxu0 0
    %443 = vmatpush1.bf16.msra.mxu0 %v341
    %444 = vmatprep.subr.bf16.mxu0 0
    %445 = vmatpush1.bf16.msra.mxu0 %v342
    %446 = vmatprep.subr.bf16.mxu0 0
    %447 = vmatpush1.bf16.msra.mxu0 %v343
    %448 = vmatprep.mubr.bf16.mxu0 %v55
    %449 = vmatmul.mubr.bf16.gmra.mrb[0].mxu0 %v54
    %v450 = vpop.f32.mrb[0].mxu0
    %v451 = vadd.f32 %v411, %v450
    %v452 = vpop.f32.mrb[0].mxu0
    %v453 = vpop.f32.mrb[0].mxu0
    %v454 = vpop.f32.mrb[0].mxu0
    %455 = vdwg.mxu0
    %v520 = vunpack.c.l.b16 %v56
    %v521 = vunpack.c.l.b16 %v57
    %v522 = vunpack.c.l.b16 %v58
    %v523 = vunpack.c.l.b16 %v59
    %v524 = vunpack.c.l.b16 %v60
    %v525 = vunpack.c.l.b16 %v61
    %v526 = vunpack.c.l.b16 %v62
    %v527 = vunpack.c.l.b16 %v63
    %v528 = vunpack.c.l.b16 %v64
    %v529 = vunpack.c.l.b16 %v65
    %v530 = vunpack.c.l.b16 %v66
    %v531 = vunpack.c.l.b16 %v67
    %v532 = vunpack.c.l.b16 %v68
    %v533 = vunpack.c.l.b16 %v69
    %v534 = vunpack.c.l.b16 %v70
    %v535 = vunpack.c.l.b16 %v71
    %v536 = vunpack.c.l.b16 %v72
    %v537 = vunpack.c.l.b16 %v73
    %v538 = vunpack.c.l.b16 %v74
    %v539 = vunpack.c.l.b16 %v75
    %v540 = vunpack.c.l.b16 %v76
    %v541 = vunpack.c.l.b16 %v77
    %v542 = vunpack.c.l.b16 %v78
    %v543 = vunpack.c.l.b16 %v79
    %v544 = vunpack.c.l.b16 %v80
    %v545 = vunpack.c.l.b16 %v81
    %v546 = vunpack.c.l.b16 %v82
    %v547 = vunpack.c.l.b16 %v83
    %v548 = vunpack.c.l.b16 %v84
    %v549 = vunpack.c.l.b16 %v85
    %v550 = vunpack.c.l.b16 %v86
    %v551 = vunpack.c.l.b16 %v87
    %v552 = vunpack.c.l.b16 %v88
    %v553 = vunpack.c.l.b16 %v89
    %v554 = vunpack.c.l.b16 %v90
    %v555 = vunpack.c.l.b16 %v91
    %v556 = vunpack.c.l.b16 %v92
    %v557 = vunpack.c.l.b16 %v93
    %v558 = vunpack.c.l.b16 %v94
    %v559 = vunpack.c.l.b16 %v95
    %v560 = vunpack.c.l.b16 %v96
    %v561 = vunpack.c.l.b16 %v97
    %v562 = vunpack.c.l.b16 %v98
    %v563 = vunpack.c.l.b16 %v99
    %v564 = vunpack.c.l.b16 %v100
    %v565 = vunpack.c.l.b16 %v101
    %v566 = vunpack.c.l.b16 %v102
    %v567 = vunpack.c.l.b16 %v103
    %v568 = vunpack.c.l.b16 %v104
    %v569 = vunpack.c.l.b16 %v105
    %v570 = vunpack.c.l.b16 %v106
    %v571 = vunpack.c.l.b16 %v107
    %v572 = vunpack.c.l.b16 %v108
    %v573 = vunpack.c.l.b16 %v109
    %v574 = vunpack.c.l.b16 %v110
    %v575 = vunpack.c.l.b16 %v111
    %v576 = vunpack.c.l.b16 %v112
    %v577 = vunpack.c.l.b16 %v113
    %v578 = vunpack.c.l.b16 %v114
    %v579 = vunpack.c.l.b16 %v115
    %v580 = vunpack.c.l.b16 %v116
    %v581 = vunpack.c.l.b16 %v117
    %v582 = vunpack.c.l.b16 %v118
    %v583 = vunpack.c.l.b16 %v119
    %v584 = vpack.c.b16 %v521, %v520
    %v585 = vpack.c.b16 %v523, %v522
    %v586 = vpack.c.b16 %v525, %v524
    %v587 = vpack.c.b16 %v527, %v526
    %v588 = vpack.c.b16 %v529, %v528
    %v589 = vpack.c.b16 %v531, %v530
    %v590 = vpack.c.b16 %v533, %v532
    %v591 = vpack.c.b16 %v535, %v534
    %v592 = vpack.c.b16 %v537, %v536
    %v593 = vpack.c.b16 %v539, %v538
    %v594 = vpack.c.b16 %v541, %v540
    %v595 = vpack.c.b16 %v543, %v542
    %v596 = vpack.c.b16 %v545, %v544
    %v597 = vpack.c.b16 %v547, %v546
    %v598 = vpack.c.b16 %v549, %v548
    %v599 = vpack.c.b16 %v551, %v550
    %v600 = vpack.c.b16 %v553, %v552
    %v601 = vpack.c.b16 %v555, %v554
    %v602 = vpack.c.b16 %v557, %v556
    %v603 = vpack.c.b16 %v559, %v558
    %v604 = vpack.c.b16 %v561, %v560
    %v605 = vpack.c.b16 %v563, %v562
    %v606 = vpack.c.b16 %v565, %v564
    %v607 = vpack.c.b16 %v567, %v566
    %v608 = vpack.c.b16 %v569, %v568
    %v609 = vpack.c.b16 %v571, %v570
    %v610 = vpack.c.b16 %v573, %v572
    %v611 = vpack.c.b16 %v575, %v574
    %v612 = vpack.c.b16 %v577, %v576
    %v613 = vpack.c.b16 %v579, %v578
    %v614 = vpack.c.b16 %v581, %v580
    %v615 = vpack.c.b16 %v583, %v582
    %648 = vmatprep.subr.bf16.mxu0 0
    %649 = vmatpush1.bf16.msra.mxu0 %v584
    %650 = vmatprep.subr.bf16.mxu0 0
    %651 = vmatpush1.bf16.msra.mxu0 %v585
    %652 = vmatprep.subr.bf16.mxu0 0
    %653 = vmatpush1.bf16.msra.mxu0 %v586
    %654 = vmatprep.subr.bf16.mxu0 0
    %655 = vmatpush1.bf16.msra.mxu0 %v587
    %656 = vmatprep.subr.bf16.mxu0 0
    %657 = vmatpush1.bf16.msra.mxu0 %v588
    %658 = vmatprep.subr.bf16.mxu0 0
    %659 = vmatpush1.bf16.msra.mxu0 %v589
    %660 = vmatprep.subr.bf16.mxu0 0
    %661 = vmatpush1.bf16.msra.mxu0 %v590
    %662 = vmatprep.subr.bf16.mxu0 0
    %663 = vmatpush1.bf16.msra.mxu0 %v591
    %664 = vmatprep.subr.bf16.mxu0 0
    %665 = vmatpush1.bf16.msra.mxu0 %v592
    %666 = vmatprep.subr.bf16.mxu0 0
    %667 = vmatpush1.bf16.msra.mxu0 %v593
    %668 = vmatprep.subr.bf16.mxu0 0
    %669 = vmatpush1.bf16.msra.mxu0 %v594
    %670 = vmatprep.subr.bf16.mxu0 0
    %671 = vmatpush1.bf16.msra.mxu0 %v595
    %672 = vmatprep.subr.bf16.mxu0 0
    %673 = vmatpush1.bf16.msra.mxu0 %v596
    %674 = vmatprep.subr.bf16.mxu0 0
    %675 = vmatpush1.bf16.msra.mxu0 %v597
    %676 = vmatprep.subr.bf16.mxu0 0
    %677 = vmatpush1.bf16.msra.mxu0 %v598
    %678 = vmatprep.subr.bf16.mxu0 0
    %679 = vmatpush1.bf16.msra.mxu0 %v599
    %680 = vmatprep.mubr.bf16.mxu0 %v44
    %681 = vmatmul.mubr.bf16.gmra.mrb[0].mxu0 %v43
    %v682 = vpop.f32.mrb[0].mxu0
    %v683 = vadd.f32 %v451, %v682
    %v684 = vpop.f32.mrb[0].mxu0
    %v685 = vpop.f32.mrb[0].mxu0
    %v686 = vpop.f32.mrb[0].mxu0
    %687 = vdwg.mxu0
    %688 = vmatprep.subr.bf16.mxu0 0
    %689 = vmatpush1.bf16.msra.mxu0 %v600
    %690 = vmatprep.subr.bf16.mxu0 0
    %691 = vmatpush1.bf16.msra.mxu0 %v601
    %692 = vmatprep.subr.bf16.mxu0 0
    %693 = vmatpush1.bf16.msra.mxu0 %v602
    %694 = vmatprep.subr.bf16.mxu0 0
    %695 = vmatpush1.bf16.msra.mxu0 %v603
    %696 = vmatprep.subr.bf16.mxu0 0
    %697 = vmatpush1.bf16.msra.mxu0 %v604
    %698 = vmatprep.subr.bf16.mxu0 0
    %699 = vmatpush1.bf16.msra.mxu0 %v605
    %700 = vmatprep.subr.bf16.mxu0 0
    %701 = vmatpush1.bf16.msra.mxu0 %v606
    %702 = vmatprep.subr.bf16.mxu0 0
    %703 = vmatpush1.bf16.msra.mxu0 %v607
    %704 = vmatprep.subr.bf16.mxu0 0
    %705 = vmatpush1.bf16.msra.mxu0 %v608
    %706 = vmatprep.subr.bf16.mxu0 0
    %707 = vmatpush1.bf16.msra.mxu0 %v609
    %708 = vmatprep.subr.bf16.mxu0 0
    %709 = vmatpush1.bf16.msra.mxu0 %v610
    %710 = vmatprep.subr.bf16.mxu0 0
    %711 = vmatpush1.bf16.msra.mxu0 %v611
    %712 = vmatprep.subr.bf16.mxu0 0
    %713 = vmatpush1.bf16.msra.mxu0 %v612
    %714 = vmatprep.subr.bf16.mxu0 0
    %715 = vmatpush1.bf16.msra.mxu0 %v613
    %716 = vmatprep.subr.bf16.mxu0 0
    %717 = vmatpush1.bf16.msra.mxu0 %v614
    %718 = vmatprep.subr.bf16.mxu0 0
    %719 = vmatpush1.bf16.msra.mxu0 %v615
    %720 = vmatprep.mubr.bf16.mxu0 %v46
    %721 = vmatmul.mubr.bf16.gmra.mrb[0].mxu0 %v45
    %v722 = vpop.f32.mrb[0].mxu0
    %v723 = vadd.f32 %v683, %v722
    %v724 = vpop.f32.mrb[0].mxu0
    %v725 = vpop.f32.mrb[0].mxu0
    %v726 = vpop.f32.mrb[0].mxu0
    %727 = vdwg.mxu0
    %v728 = vld [vmem:[%s3] sm:$0x1]
    %v730 = vlaneseq
    %v731 = vshrl.u32 %v730, 7
    %v732 = vsub.s32 0, %v731
    %v733 = vrot.slane %v728, %v732
    %v735 = vadd.f32 %v723, %v733
    %v736 = vmax.f32 %v735, 0.0
    %v737 = vld [vmem:[%s4] sm:$0xff]
    %v738 = vld [vmem:[%s4 + $0x8] sm:$0xff]
    %v739 = vld [vmem:[%s4 + $0x10] sm:$0xff]
    %v740 = vld [vmem:[%s4 + $0x18] sm:$0xff]
    %v741 = vld [vmem:[%s4 + $0x20] sm:$0xff]
    %v742 = vld [vmem:[%s4 + $0x28] sm:$0xff]
    %v743 = vld [vmem:[%s4 + $0x30] sm:$0xff]
    %v744 = vld [vmem:[%s4 + $0x38] sm:$0xff]
    %v745 = vld [vmem:[%s4 + $0x40] sm:$0xff]
    %v746 = vld [vmem:[%s4 + $0x48] sm:$0xff]
    %v747 = vld [vmem:[%s4 + $0x50] sm:$0xff]
    %v748 = vld [vmem:[%s4 + $0x58] sm:$0xff]
    %v749 = vld [vmem:[%s4 + $0x60] sm:$0xff]
    %v750 = vld [vmem:[%s4 + $0x68] sm:$0xff]
    %v751 = vld [vmem:[%s4 + $0x70] sm:$0xff]
    %v752 = vld [vmem:[%s4 + $0x78] sm:$0xff]
    %v753 = vld [vmem:[%s5] sm:$0x1]
    %v755 = vlaneseq
    %v756 = vshrl.u32 %v755, 7
    %v757 = vsub.s32 0, %v756
    %v758 = vrot.slane %v753, %v757
    %760 = vmatprep.subr.mxu0 0.0
    %761 = vmatpush1.msra.mxu0 %v737
    %762 = vmatprep.subr.mxu0 0.0
    %763 = vmatpush1.msra.mxu0 %v738
    %764 = vmatprep.subr.mxu0 0.0
    %765 = vmatpush1.msra.mxu0 %v739
    %766 = vmatprep.subr.mxu0 0.0
    %767 = vmatpush1.msra.mxu0 %v740
    %768 = vmatprep.subr.mxu0 0.0
    %769 = vmatpush1.msra.mxu0 %v741
    %770 = vmatprep.subr.mxu0 0.0
    %771 = vmatpush1.msra.mxu0 %v742
    %772 = vmatprep.subr.mxu0 0.0
    %773 = vmatpush1.msra.mxu0 %v743
    %774 = vmatprep.subr.mxu0 0.0
    %775 = vmatpush1.msra.mxu0 %v744
    %776 = vmatprep.subr.mxu0 0.0
    %777 = vmatpush1.msra.mxu0 %v745
    %778 = vmatprep.subr.mxu0 0.0
    %779 = vmatpush1.msra.mxu0 %v746
    %780 = vmatprep.subr.mxu0 0.0
    %781 = vmatpush1.msra.mxu0 %v747
    %782 = vmatprep.subr.mxu0 0.0
    %783 = vmatpush1.msra.mxu0 %v748
    %784 = vmatprep.subr.mxu0 0.0
    %785 = vmatpush1.msra.mxu0 %v749
    %786 = vmatprep.subr.mxu0 0.0
    %787 = vmatpush1.msra.mxu0 %v750
    %788 = vmatprep.subr.mxu0 0.0
    %789 = vmatpush1.msra.mxu0 %v751
    %790 = vmatprep.subr.mxu0 0.0
    %791 = vmatpush1.msra.mxu0 %v752
    %792 = vmatprep.subr.mxu0 0.0
    %793 = vmatpush1.msra.mxu0 0.0
    %794 = vmatprep.subr.mxu0 0.0
    %795 = vmatpush1.msra.mxu0 0.0
    %796 = vmatprep.subr.mxu0 0.0
    %797 = vmatpush1.msra.mxu0 0.0
    %798 = vmatprep.subr.mxu0 0.0
    %799 = vmatpush1.msra.mxu0 0.0
    %800 = vmatprep.subr.mxu0 0.0
    %801 = vmatpush1.msra.mxu0 0.0
    %802 = vmatprep.subr.mxu0 0.0
    %803 = vmatpush1.msra.mxu0 0.0
    %804 = vmatprep.subr.mxu0 0.0
    %805 = vmatpush1.msra.mxu0 0.0
    %806 = vmatprep.subr.mxu0 0.0
    %807 = vmatpush1.msra.mxu0 0.0
    %808 = vmatprep.subr.mxu0 0.0
    %809 = vmatpush1.msra.mxu0 0.0
    %810 = vmatprep.subr.mxu0 0.0
    %811 = vmatpush1.msra.mxu0 0.0
    %812 = vmatprep.subr.mxu0 0.0
    %813 = vmatpush1.msra.mxu0 0.0
    %814 = vmatprep.subr.mxu0 0.0
    %815 = vmatpush1.msra.mxu0 0.0
    %816 = vmatprep.subr.mxu0 0.0
    %817 = vmatpush1.msra.mxu0 0.0
    %818 = vmatprep.subr.mxu0 0.0
    %819 = vmatpush1.msra.mxu0 0.0
    %820 = vmatprep.subr.mxu0 0.0
    %821 = vmatpush1.msra.mxu0 0.0
    %822 = vmatprep.subr.mxu0 0.0
    %823 = vmatpush1.msra.mxu0 0.0
    %824 = vmatprep.mubr.f32.mxu0 0.0
    %825 = vmatmul.mubr.f32.gmra.mrb[0].mxu0 %v736
    %v826 = vpop.f32.mrb[0].mxu0
    %v827 = vadd.f32 %v758, %v826
    %v828 = vpop.f32.mrb[0].mxu0
    %829 = vdwg.mxu0
    %v830 = vld [vmem:[%s6] sm:$0xf]
    %v831 = vld [vmem:[%s6 + $0x4] sm:$0xf]
    %v832 = vld [vmem:[%s6 + $0x8] sm:$0xf]
    %v833 = vld [vmem:[%s6 + $0xc] sm:$0xf]
    %v834 = vld [vmem:[%s6 + $0x10] sm:$0xf]
    %v835 = vld [vmem:[%s6 + $0x14] sm:$0xf]
    %v836 = vld [vmem:[%s6 + $0x18] sm:$0xf]
    %v837 = vld [vmem:[%s6 + $0x1c] sm:$0xf]
    %v838 = vld [vmem:[%s6 + $0x20] sm:$0xf]
    %v839 = vld [vmem:[%s6 + $0x24] sm:$0xf]
    %v840 = vld [vmem:[%s6 + $0x28] sm:$0xf]
    %v841 = vld [vmem:[%s6 + $0x2c] sm:$0xf]
    %v842 = vld [vmem:[%s6 + $0x30] sm:$0xf]
    %v843 = vld [vmem:[%s6 + $0x34] sm:$0xf]
    %v844 = vld [vmem:[%s6 + $0x38] sm:$0xf]
    %v845 = vld [vmem:[%s6 + $0x3c] sm:$0xf]
    %v846 = vld [vmem:[%s6 + $0x40] sm:$0xf]
    %v847 = vld [vmem:[%s6 + $0x44] sm:$0xf]
    %v848 = vld [vmem:[%s6 + $0x48] sm:$0xf]
    %v849 = vld [vmem:[%s6 + $0x4c] sm:$0xf]
    %v850 = vld [vmem:[%s6 + $0x50] sm:$0xf]
    %v851 = vld [vmem:[%s6 + $0x54] sm:$0xf]
    %v852 = vld [vmem:[%s6 + $0x58] sm:$0xf]
    %v853 = vld [vmem:[%s6 + $0x5c] sm:$0xf]
    %v854 = vld [vmem:[%s6 + $0x60] sm:$0xf]
    %v855 = vld [vmem:[%s6 + $0x64] sm:$0xf]
    %v856 = vld [vmem:[%s6 + $0x68] sm:$0xf]
    %v857 = vld [vmem:[%s6 + $0x6c] sm:$0xf]
    %v858 = vld [vmem:[%s6 + $0x70] sm:$0xf]
    %v859 = vld [vmem:[%s6 + $0x74] sm:$0xf]
    %v860 = vld [vmem:[%s6 + $0x78] sm:$0xf]
    %v861 = vld [vmem:[%s6 + $0x7c] sm:$0xf]
    %v862 = vld [vmem:[%s6 + $0x80] sm:$0xf]
    %v863 = vld [vmem:[%s6 + $0x84] sm:$0xf]
    %v864 = vld [vmem:[%s6 + $0x88] sm:$0xf]
    %v865 = vld [vmem:[%s6 + $0x8c] sm:$0xf]
    %v866 = vld [vmem:[%s6 + $0x90] sm:$0xf]
    %v867 = vld [vmem:[%s6 + $0x94] sm:$0xf]
    %v868 = vld [vmem:[%s6 + $0x98] sm:$0xf]
    %v869 = vld [vmem:[%s6 + $0x9c] sm:$0xf]
    %v870 = vld [vmem:[%s6 + $0xa0] sm:$0xf]
    %v871 = vld [vmem:[%s6 + $0xa4] sm:$0xf]
    %v872 = vld [vmem:[%s6 + $0xa8] sm:$0xf]
    %v873 = vld [vmem:[%s6 + $0xac] sm:$0xf]
    %v874 = vld [vmem:[%s6 + $0xb0] sm:$0xf]
    %v875 = vld [vmem:[%s6 + $0xb4] sm:$0xf]
    %v876 = vld [vmem:[%s6 + $0xb8] sm:$0xf]
    %v877 = vld [vmem:[%s6 + $0xbc] sm:$0xf]
    %v878 = vld [vmem:[%s6 + $0xc0] sm:$0xf]
    %v879 = vld [vmem:[%s6 + $0xc4] sm:$0xf]
    %v880 = vld [vmem:[%s6 + $0xc8] sm:$0xf]
    %v881 = vld [vmem:[%s6 + $0xcc] sm:$0xf]
    %v882 = vld [vmem:[%s6 + $0xd0] sm:$0xf]
    %v883 = vld [vmem:[%s6 + $0xd4] sm:$0xf]
    %v884 = vld [vmem:[%s6 + $0xd8] sm:$0xf]
    %v885 = vld [vmem:[%s6 + $0xdc] sm:$0xf]
    %v886 = vld [vmem:[%s6 + $0xe0] sm:$0xf]
    %v887 = vld [vmem:[%s6 + $0xe4] sm:$0xf]
    %v888 = vld [vmem:[%s6 + $0xe8] sm:$0xf]
    %v889 = vld [vmem:[%s6 + $0xec] sm:$0xf]
    %v890 = vld [vmem:[%s6 + $0xf0] sm:$0xf]
    %v891 = vld [vmem:[%s6 + $0xf4] sm:$0xf]
    %v892 = vld [vmem:[%s6 + $0xf8] sm:$0xf]
    %v893 = vld [vmem:[%s6 + $0xfc] sm:$0xf]
    %v894 = vld [vmem:[%s8] sm:$0xf]
    %v895 = vld [vmem:[%s8 + $0x4] sm:$0xf]
    %v896 = vld [vmem:[%s8 + $0x8] sm:$0xf]
    %v897 = vld [vmem:[%s8 + $0xc] sm:$0xf]
    %v898 = vld [vmem:[%s8 + $0x10] sm:$0xf]
    %v899 = vld [vmem:[%s8 + $0x14] sm:$0xf]
    %v900 = vld [vmem:[%s8 + $0x18] sm:$0xf]
    %v901 = vld [vmem:[%s8 + $0x1c] sm:$0xf]
    %v902 = vld [vmem:[%s8 + $0x20] sm:$0xf]
    %v903 = vld [vmem:[%s8 + $0x24] sm:$0xf]
    %v904 = vld [vmem:[%s8 + $0x28] sm:$0xf]
    %v905 = vld [vmem:[%s8 + $0x2c] sm:$0xf]
    %v906 = vld [vmem:[%s8 + $0x30] sm:$0xf]
    %v907 = vld [vmem:[%s8 + $0x34] sm:$0xf]
    %v908 = vld [vmem:[%s8 + $0x38] sm:$0xf]
    %v909 = vld [vmem:[%s8 + $0x3c] sm:$0xf]
    %v910 = vld [vmem:[%s8 + $0x40] sm:$0xf]
    %v911 = vld [vmem:[%s8 + $0x44] sm:$0xf]
    %v912 = vld [vmem:[%s8 + $0x48] sm:$0xf]
    %v913 = vld [vmem:[%s8 + $0x4c] sm:$0xf]
    %v914 = vld [vmem:[%s8 + $0x50] sm:$0xf]
    %v915 = vld [vmem:[%s8 + $0x54] sm:$0xf]
    %v916 = vld [vmem:[%s8 + $0x58] sm:$0xf]
    %v917 = vld [vmem:[%s8 + $0x5c] sm:$0xf]
    %v918 = vld [vmem:[%s8 + $0x60] sm:$0xf]
    %v919 = vld [vmem:[%s8 + $0x64] sm:$0xf]
    %v920 = vld [vmem:[%s8 + $0x68] sm:$0xf]
    %v921 = vld [vmem:[%s8 + $0x6c] sm:$0xf]
    %v922 = vld [vmem:[%s8 + $0x70] sm:$0xf]
    %v923 = vld [vmem:[%s8 + $0x74] sm:$0xf]
    %v924 = vld [vmem:[%s8 + $0x78] sm:$0xf]
    %v925 = vld [vmem:[%s8 + $0x7c] sm:$0xf]
    %v926 = vld [vmem:[%s8 + $0x80] sm:$0xf]
    %v927 = vld [vmem:[%s8 + $0x84] sm:$0xf]
    %v928 = vld [vmem:[%s8 + $0x88] sm:$0xf]
    %v929 = vld [vmem:[%s8 + $0x8c] sm:$0xf]
    %v930 = vld [vmem:[%s8 + $0x90] sm:$0xf]
    %v931 = vld [vmem:[%s8 + $0x94] sm:$0xf]
    %v932 = vld [vmem:[%s8 + $0x98] sm:$0xf]
    %v933 = vld [vmem:[%s8 + $0x9c] sm:$0xf]
    %v934 = vld [vmem:[%s8 + $0xa0] sm:$0xf]
    %v935 = vld [vmem:[%s8 + $0xa4] sm:$0xf]
    %v936 = vld [vmem:[%s8 + $0xa8] sm:$0xf]
    %v937 = vld [vmem:[%s8 + $0xac] sm:$0xf]
    %v938 = vld [vmem:[%s8 + $0xb0] sm:$0xf]
    %v939 = vld [vmem:[%s8 + $0xb4] sm:$0xf]
    %v940 = vld [vmem:[%s8 + $0xb8] sm:$0xf]
    %v941 = vld [vmem:[%s8 + $0xbc] sm:$0xf]
    %v942 = vld [vmem:[%s8 + $0xc0] sm:$0xf]
    %v943 = vld [vmem:[%s8 + $0xc4] sm:$0xf]
    %v944 = vld [vmem:[%s8 + $0xc8] sm:$0xf]
    %v945 = vld [vmem:[%s8 + $0xcc] sm:$0xf]
    %v946 = vld [vmem:[%s8 + $0xd0] sm:$0xf]
    %v947 = vld [vmem:[%s8 + $0xd4] sm:$0xf]
    %v948 = vld [vmem:[%s8 + $0xd8] sm:$0xf]
    %v949 = vld [vmem:[%s8 + $0xdc] sm:$0xf]
    %v950 = vld [vmem:[%s8 + $0xe0] sm:$0xf]
    %v951 = vld [vmem:[%s8 + $0xe4] sm:$0xf]
    %v952 = vld [vmem:[%s8 + $0xe8] sm:$0xf]
    %v953 = vld [vmem:[%s8 + $0xec] sm:$0xf]
    %v954 = vld [vmem:[%s8 + $0xf0] sm:$0xf]
    %v955 = vld [vmem:[%s8 + $0xf4] sm:$0xf]
    %v956 = vld [vmem:[%s8 + $0xf8] sm:$0xf]
    %v957 = vld [vmem:[%s8 + $0xfc] sm:$0xf]
    %v1022 = vunpack.c.l.b16 %v894
    %v1023 = vunpack.c.l.b16 %v895
    %v1024 = vunpack.c.l.b16 %v896
    %v1025 = vunpack.c.l.b16 %v897
    %v1026 = vunpack.c.l.b16 %v898
    %v1027 = vunpack.c.l.b16 %v899
    %v1028 = vunpack.c.l.b16 %v900
    %v1029 = vunpack.c.l.b16 %v901
    %v1030 = vunpack.c.l.b16 %v902
    %v1031 = vunpack.c.l.b16 %v903
    %v1032 = vunpack.c.l.b16 %v904
    %v1033 = vunpack.c.l.b16 %v905
    %v1034 = vunpack.c.l.b16 %v906
    %v1035 = vunpack.c.l.b16 %v907
    %v1036 = vunpack.c.l.b16 %v908
    %v1037 = vunpack.c.l.b16 %v909
    %v1038 = vunpack.c.l.b16 %v910
    %v1039 = vunpack.c.l.b16 %v911
    %v1040 = vunpack.c.l.b16 %v912
    %v1041 = vunpack.c.l.b16 %v913
    %v1042 = vunpack.c.l.b16 %v914
    %v1043 = vunpack.c.l.b16 %v915
    %v1044 = vunpack.c.l.b16 %v916
    %v1045 = vunpack.c.l.b16 %v917
    %v1046 = vunpack.c.l.b16 %v918
    %v1047 = vunpack.c.l.b16 %v919
    %v1048 = vunpack.c.l.b16 %v920
    %v1049 = vunpack.c.l.b16 %v921
    %v1050 = vunpack.c.l.b16 %v922
    %v1051 = vunpack.c.l.b16 %v923
    %v1052 = vunpack.c.l.b16 %v924
    %v1053 = vunpack.c.l.b16 %v925
    %v1054 = vunpack.c.l.b16 %v926
    %v1055 = vunpack.c.l.b16 %v927
    %v1056 = vunpack.c.l.b16 %v928
    %v1057 = vunpack.c.l.b16 %v929
    %v1058 = vunpack.c.l.b16 %v930
    %v1059 = vunpack.c.l.b16 %v931
    %v1060 = vunpack.c.l.b16 %v932
    %v1061 = vunpack.c.l.b16 %v933
    %v1062 = vunpack.c.l.b16 %v934
    %v1063 = vunpack.c.l.b16 %v935
    %v1064 = vunpack.c.l.b16 %v936
    %v1065 = vunpack.c.l.b16 %v937
    %v1066 = vunpack.c.l.b16 %v938
    %v1067 = vunpack.c.l.b16 %v939
    %v1068 = vunpack.c.l.b16 %v940
    %v1069 = vunpack.c.l.b16 %v941
    %v1070 = vunpack.c.l.b16 %v942
    %v1071 = vunpack.c.l.b16 %v943
    %v1072 = vunpack.c.l.b16 %v944
    %v1073 = vunpack.c.l.b16 %v945
    %v1074 = vunpack.c.l.b16 %v946
    %v1075 = vunpack.c.l.b16 %v947
    %v1076 = vunpack.c.l.b16 %v948
    %v1077 = vunpack.c.l.b16 %v949
    %v1078 = vunpack.c.l.b16 %v950
    %v1079 = vunpack.c.l.b16 %v951
    %v1080 = vunpack.c.l.b16 %v952
    %v1081 = vunpack.c.l.b16 %v953
    %v1082 = vunpack.c.l.b16 %v954
    %v1083 = vunpack.c.l.b16 %v955
    %v1084 = vunpack.c.l.b16 %v956
    %v1085 = vunpack.c.l.b16 %v957
    %v1086 = vpack.c.b16 %v1023, %v1022
    %v1087 = vpack.c.b16 %v1025, %v1024
    %v1088 = vpack.c.b16 %v1027, %v1026
    %v1089 = vpack.c.b16 %v1029, %v1028
    %v1090 = vpack.c.b16 %v1031, %v1030
    %v1091 = vpack.c.b16 %v1033, %v1032
    %v1092 = vpack.c.b16 %v1035, %v1034
    %v1093 = vpack.c.b16 %v1037, %v1036
    %v1094 = vpack.c.b16 %v1039, %v1038
    %v1095 = vpack.c.b16 %v1041, %v1040
    %v1096 = vpack.c.b16 %v1043, %v1042
    %v1097 = vpack.c.b16 %v1045, %v1044
    %v1098 = vpack.c.b16 %v1047, %v1046
    %v1099 = vpack.c.b16 %v1049, %v1048
    %v1100 = vpack.c.b16 %v1051, %v1050
    %v1101 = vpack.c.b16 %v1053, %v1052
    %v1102 = vpack.c.b16 %v1055, %v1054
    %v1103 = vpack.c.b16 %v1057, %v1056
    %v1104 = vpack.c.b16 %v1059, %v1058
    %v1105 = vpack.c.b16 %v1061, %v1060
    %v1106 = vpack.c.b16 %v1063, %v1062
    %v1107 = vpack.c.b16 %v1065, %v1064
    %v1108 = vpack.c.b16 %v1067, %v1066
    %v1109 = vpack.c.b16 %v1069, %v1068
    %v1110 = vpack.c.b16 %v1071, %v1070
    %v1111 = vpack.c.b16 %v1073, %v1072
    %v1112 = vpack.c.b16 %v1075, %v1074
    %v1113 = vpack.c.b16 %v1077, %v1076
    %v1114 = vpack.c.b16 %v1079, %v1078
    %v1115 = vpack.c.b16 %v1081, %v1080
    %v1116 = vpack.c.b16 %v1083, %v1082
    %v1117 = vpack.c.b16 %v1085, %v1084
    %1150 = vmatprep.subr.bf16.mxu0 0
    %1151 = vmatpush1.bf16.msra.mxu0 %v1086
    %1152 = vmatprep.subr.bf16.mxu0 0
    %1153 = vmatpush1.bf16.msra.mxu0 %v1087
    %1154 = vmatprep.subr.bf16.mxu0 0
    %1155 = vmatpush1.bf16.msra.mxu0 %v1088
    %1156 = vmatprep.subr.bf16.mxu0 0
    %1157 = vmatpush1.bf16.msra.mxu0 %v1089
    %1158 = vmatprep.subr.bf16.mxu0 0
    %1159 = vmatpush1.bf16.msra.mxu0 %v1090
    %1160 = vmatprep.subr.bf16.mxu0 0
    %1161 = vmatpush1.bf16.msra.mxu0 %v1091
    %1162 = vmatprep.subr.bf16.mxu0 0
    %1163 = vmatpush1.bf16.msra.mxu0 %v1092
    %1164 = vmatprep.subr.bf16.mxu0 0
    %1165 = vmatpush1.bf16.msra.mxu0 %v1093
    %1166 = vmatprep.subr.bf16.mxu0 0
    %1167 = vmatpush1.bf16.msra.mxu0 %v1094
    %1168 = vmatprep.subr.bf16.mxu0 0
    %1169 = vmatpush1.bf16.msra.mxu0 %v1095
    %1170 = vmatprep.subr.bf16.mxu0 0
    %1171 = vmatpush1.bf16.msra.mxu0 %v1096
    %1172 = vmatprep.subr.bf16.mxu0 0
    %1173 = vmatpush1.bf16.msra.mxu0 %v1097
    %1174 = vmatprep.subr.bf16.mxu0 0
    %1175 = vmatpush1.bf16.msra.mxu0 %v1098
    %1176 = vmatprep.subr.bf16.mxu0 0
    %1177 = vmatpush1.bf16.msra.mxu0 %v1099
    %1178 = vmatprep.subr.bf16.mxu0 0
    %1179 = vmatpush1.bf16.msra.mxu0 %v1100
    %1180 = vmatprep.subr.bf16.mxu0 0
    %1181 = vmatpush1.bf16.msra.mxu0 %v1101
    %1182 = vmatprep.mubr.bf16.mxu0 %v53
    %1183 = vmatmul.mubr.bf16.gmra.mrb[0].mxu0 %v52
    %v1184 = vpop.f32.mrb[0].mxu0
    %v1185 = vadd.f32 0.0, %v1184
    %v1186 = vpop.f32.mrb[0].mxu0
    %v1187 = vpop.f32.mrb[0].mxu0
    %v1188 = vpop.f32.mrb[0].mxu0
    %1189 = vdwg.mxu0
    %1190 = vmatprep.subr.bf16.mxu0 0
    %1191 = vmatpush1.bf16.msra.mxu0 %v1102
    %1192 = vmatprep.subr.bf16.mxu0 0
    %1193 = vmatpush1.bf16.msra.mxu0 %v1103
    %1194 = vmatprep.subr.bf16.mxu0 0
    %1195 = vmatpush1.bf16.msra.mxu0 %v1104
    %1196 = vmatprep.subr.bf16.mxu0 0
    %1197 = vmatpush1.bf16.msra.mxu0 %v1105
    %1198 = vmatprep.subr.bf16.mxu0 0
    %1199 = vmatpush1.bf16.msra.mxu0 %v1106
    %1200 = vmatprep.subr.bf16.mxu0 0
    %1201 = vmatpush1.bf16.msra.mxu0 %v1107
    %1202 = vmatprep.subr.bf16.mxu0 0
    %1203 = vmatpush1.bf16.msra.mxu0 %v1108
    %1204 = vmatprep.subr.bf16.mxu0 0
    %1205 = vmatpush1.bf16.msra.mxu0 %v1109
    %1206 = vmatprep.subr.bf16.mxu0 0
    %1207 = vmatpush1.bf16.msra.mxu0 %v1110
    %1208 = vmatprep.subr.bf16.mxu0 0
    %1209 = vmatpush1.bf16.msra.mxu0 %v1111
    %1210 = vmatprep.subr.bf16.mxu0 0
    %1211 = vmatpush1.bf16.msra.mxu0 %v1112
    %1212 = vmatprep.subr.bf16.mxu0 0
    %1213 = vmatpush1.bf16.msra.mxu0 %v1113
    %1214 = vmatprep.subr.bf16.mxu0 0
    %1215 = vmatpush1.bf16.msra.mxu0 %v1114
    %1216 = vmatprep.subr.bf16.mxu0 0
    %1217 = vmatpush1.bf16.msra.mxu0 %v1115
    %1218 = vmatprep.subr.bf16.mxu0 0
    %1219 = vmatpush1.bf16.msra.mxu0 %v1116
    %1220 = vmatprep.subr.bf16.mxu0 0
    %1221 = vmatpush1.bf16.msra.mxu0 %v1117
    %1222 = vmatprep.mubr.bf16.mxu0 %v55
    %1223 = vmatmul.mubr.bf16.gmra.mrb[0].mxu0 %v54
    %v1224 = vpop.f32.mrb[0].mxu0
    %v1225 = vadd.f32 %v1185, %v1224
    %v1226 = vpop.f32.mrb[0].mxu0
    %v1227 = vpop.f32.mrb[0].mxu0
    %v1228 = vpop.f32.mrb[0].mxu0
    %1229 = vdwg.mxu0
    %v1294 = vunpack.c.l.b16 %v830
    %v1295 = vunpack.c.l.b16 %v831
    %v1296 = vunpack.c.l.b16 %v832
    %v1297 = vunpack.c.l.b16 %v833
    %v1298 = vunpack.c.l.b16 %v834
    %v1299 = vunpack.c.l.b16 %v835
    %v1300 = vunpack.c.l.b16 %v836
    %v1301 = vunpack.c.l.b16 %v837
    %v1302 = vunpack.c.l.b16 %v838
    %v1303 = vunpack.c.l.b16 %v839
    %v1304 = vunpack.c.l.b16 %v840
    %v1305 = vunpack.c.l.b16 %v841
    %v1306 = vunpack.c.l.b16 %v842
    %v1307 = vunpack.c.l.b16 %v843
    %v1308 = vunpack.c.l.b16 %v844
    %v1309 = vunpack.c.l.b16 %v845
    %v1310 = vunpack.c.l.b16 %v846
    %v1311 = vunpack.c.l.b16 %v847
    %v1312 = vunpack.c.l.b16 %v848
    %v1313 = vunpack.c.l.b16 %v849
    %v1314 = vunpack.c.l.b16 %v850
    %v1315 = vunpack.c.l.b16 %v851
    %v1316 = vunpack.c.l.b16 %v852
    %v1317 = vunpack.c.l.b16 %v853
    %v1318 = vunpack.c.l.b16 %v854
    %v1319 = vunpack.c.l.b16 %v855
    %v1320 = vunpack.c.l.b16 %v856
    %v1321 = vunpack.c.l.b16 %v857
    %v1322 = vunpack.c.l.b16 %v858
    %v1323 = vunpack.c.l.b16 %v859
    %v1324 = vunpack.c.l.b16 %v860
    %v1325 = vunpack.c.l.b16 %v861
    %v1326 = vunpack.c.l.b16 %v862
    %v1327 = vunpack.c.l.b16 %v863
    %v1328 = vunpack.c.l.b16 %v864
    %v1329 = vunpack.c.l.b16 %v865
    %v1330 = vunpack.c.l.b16 %v866
    %v1331 = vunpack.c.l.b16 %v867
    %v1332 = vunpack.c.l.b16 %v868
    %v1333 = vunpack.c.l.b16 %v869
    %v1334 = vunpack.c.l.b16 %v870
    %v1335 = vunpack.c.l.b16 %v871
    %v1336 = vunpack.c.l.b16 %v872
    %v1337 = vunpack.c.l.b16 %v873
    %v1338 = vunpack.c.l.b16 %v874
    %v1339 = vunpack.c.l.b16 %v875
    %v1340 = vunpack.c.l.b16 %v876
    %v1341 = vunpack.c.l.b16 %v877
    %v1342 = vunpack.c.l.b16 %v878
    %v1343 = vunpack.c.l.b16 %v879
    %v1344 = vunpack.c.l.b16 %v880
    %v1345 = vunpack.c.l.b16 %v881
    %v1346 = vunpack.c.l.b16 %v882
    %v1347 = vunpack.c.l.b16 %v883
    %v1348 = vunpack.c.l.b16 %v884
    %v1349 = vunpack.c.l.b16 %v885
    %v1350 = vunpack.c.l.b16 %v886
    %v1351 = vunpack.c.l.b16 %v887
    %v1352 = vunpack.c.l.b16 %v888
    %v1353 = vunpack.c.l.b16 %v889
    %v1354 = vunpack.c.l.b16 %v890
    %v1355 = vunpack.c.l.b16 %v891
    %v1356 = vunpack.c.l.b16 %v892
    %v1357 = vunpack.c.l.b16 %v893
    %v1358 = vpack.c.b16 %v1295, %v1294
    %v1359 = vpack.c.b16 %v1297, %v1296
    %v1360 = vpack.c.b16 %v1299, %v1298
    %v1361 = vpack.c.b16 %v1301, %v1300
    %v1362 = vpack.c.b16 %v1303, %v1302
    %v1363 = vpack.c.b16 %v1305, %v1304
    %v1364 = vpack.c.b16 %v1307, %v1306
    %v1365 = vpack.c.b16 %v1309, %v1308
    %v1366 = vpack.c.b16 %v1311, %v1310
    %v1367 = vpack.c.b16 %v1313, %v1312
    %v1368 = vpack.c.b16 %v1315, %v1314
    %v1369 = vpack.c.b16 %v1317, %v1316
    %v1370 = vpack.c.b16 %v1319, %v1318
    %v1371 = vpack.c.b16 %v1321, %v1320
    %v1372 = vpack.c.b16 %v1323, %v1322
    %v1373 = vpack.c.b16 %v1325, %v1324
    %v1374 = vpack.c.b16 %v1327, %v1326
    %v1375 = vpack.c.b16 %v1329, %v1328
    %v1376 = vpack.c.b16 %v1331, %v1330
    %v1377 = vpack.c.b16 %v1333, %v1332
    %v1378 = vpack.c.b16 %v1335, %v1334
    %v1379 = vpack.c.b16 %v1337, %v1336
    %v1380 = vpack.c.b16 %v1339, %v1338
    %v1381 = vpack.c.b16 %v1341, %v1340
    %v1382 = vpack.c.b16 %v1343, %v1342
    %v1383 = vpack.c.b16 %v1345, %v1344
    %v1384 = vpack.c.b16 %v1347, %v1346
    %v1385 = vpack.c.b16 %v1349, %v1348
    %v1386 = vpack.c.b16 %v1351, %v1350
    %v1387 = vpack.c.b16 %v1353, %v1352
    %v1388 = vpack.c.b16 %v1355, %v1354
    %v1389 = vpack.c.b16 %v1357, %v1356
    %1422 = vmatprep.subr.bf16.mxu0 0
    %1423 = vmatpush1.bf16.msra.mxu0 %v1358
    %1424 = vmatprep.subr.bf16.mxu0 0
    %1425 = vmatpush1.bf16.msra.mxu0 %v1359
    %1426 = vmatprep.subr.bf16.mxu0 0
    %1427 = vmatpush1.bf16.msra.mxu0 %v1360
    %1428 = vmatprep.subr.bf16.mxu0 0
    %1429 = vmatpush1.bf16.msra.mxu0 %v1361
    %1430 = vmatprep.subr.bf16.mxu0 0
    %1431 = vmatpush1.bf16.msra.mxu0 %v1362
    %1432 = vmatprep.subr.bf16.mxu0 0
    %1433 = vmatpush1.bf16.msra.mxu0 %v1363
    %1434 = vmatprep.subr.bf16.mxu0 0
    %1435 = vmatpush1.bf16.msra.mxu0 %v1364
    %1436 = vmatprep.subr.bf16.mxu0 0
    %1437 = vmatpush1.bf16.msra.mxu0 %v1365
    %1438 = vmatprep.subr.bf16.mxu0 0
    %1439 = vmatpush1.bf16.msra.mxu0 %v1366
    %1440 = vmatprep.subr.bf16.mxu0 0
    %1441 = vmatpush1.bf16.msra.mxu0 %v1367
    %1442 = vmatprep.subr.bf16.mxu0 0
    %1443 = vmatpush1.bf16.msra.mxu0 %v1368
    %1444 = vmatprep.subr.bf16.mxu0 0
    %1445 = vmatpush1.bf16.msra.mxu0 %v1369
    %1446 = vmatprep.subr.bf16.mxu0 0
    %1447 = vmatpush1.bf16.msra.mxu0 %v1370
    %1448 = vmatprep.subr.bf16.mxu0 0
    %1449 = vmatpush1.bf16.msra.mxu0 %v1371
    %1450 = vmatprep.subr.bf16.mxu0 0
    %1451 = vmatpush1.bf16.msra.mxu0 %v1372
    %1452 = vmatprep.subr.bf16.mxu0 0
    %1453 = vmatpush1.bf16.msra.mxu0 %v1373
    %1454 = vmatprep.mubr.bf16.mxu0 %v44
    %1455 = vmatmul.mubr.bf16.gmra.mrb[0].mxu0 %v43
    %v1456 = vpop.f32.mrb[0].mxu0
    %v1457 = vadd.f32 %v1225, %v1456
    %v1458 = vpop.f32.mrb[0].mxu0
    %v1459 = vpop.f32.mrb[0].mxu0
    %v1460 = vpop.f32.mrb[0].mxu0
    %1461 = vdwg.mxu0
    %1462 = vmatprep.subr.bf16.mxu0 0
    %1463 = vmatpush1.bf16.msra.mxu0 %v1374
    %1464 = vmatprep.subr.bf16.mxu0 0
    %1465 = vmatpush1.bf16.msra.mxu0 %v1375
    %1466 = vmatprep.subr.bf16.mxu0 0
    %1467 = vmatpush1.bf16.msra.mxu0 %v1376
    %1468 = vmatprep.subr.bf16.mxu0 0
    %1469 = vmatpush1.bf16.msra.mxu0 %v1377
    %1470 = vmatprep.subr.bf16.mxu0 0
    %1471 = vmatpush1.bf16.msra.mxu0 %v1378
    %1472 = vmatprep.subr.bf16.mxu0 0
    %1473 = vmatpush1.bf16.msra.mxu0 %v1379
    %1474 = vmatprep.subr.bf16.mxu0 0
    %1475 = vmatpush1.bf16.msra.mxu0 %v1380
    %1476 = vmatprep.subr.bf16.mxu0 0
    %1477 = vmatpush1.bf16.msra.mxu0 %v1381
    %1478 = vmatprep.subr.bf16.mxu0 0
    %1479 = vmatpush1.bf16.msra.mxu0 %v1382
    %1480 = vmatprep.subr.bf16.mxu0 0
    %1481 = vmatpush1.bf16.msra.mxu0 %v1383
    %1482 = vmatprep.subr.bf16.mxu0 0
    %1483 = vmatpush1.bf16.msra.mxu0 %v1384
    %1484 = vmatprep.subr.bf16.mxu0 0
    %1485 = vmatpush1.bf16.msra.mxu0 %v1385
    %1486 = vmatprep.subr.bf16.mxu0 0
    %1487 = vmatpush1.bf16.msra.mxu0 %v1386
    %1488 = vmatprep.subr.bf16.mxu0 0
    %1489 = vmatpush1.bf16.msra.mxu0 %v1387
    %1490 = vmatprep.subr.bf16.mxu0 0
    %1491 = vmatpush1.bf16.msra.mxu0 %v1388
    %1492 = vmatprep.subr.bf16.mxu0 0
    %1493 = vmatpush1.bf16.msra.mxu0 %v1389
    %1494 = vmatprep.mubr.bf16.mxu0 %v46
    %1495 = vmatmul.mubr.bf16.gmra.mrb[0].mxu0 %v45
    %v1496 = vpop.f32.mrb[0].mxu0
    %v1497 = vadd.f32 %v1457, %v1496
    %v1498 = vpop.f32.mrb[0].mxu0
    %v1499 = vpop.f32.mrb[0].mxu0
    %v1500 = vpop.f32.mrb[0].mxu0
    %1501 = vdwg.mxu0
    %v1502 = vld [vmem:[%s7] sm:$0x1]
    %v1504 = vlaneseq
    %v1505 = vshrl.u32 %v1504, 7
    %v1506 = vsub.s32 0, %v1505
    %v1507 = vrot.slane %v1502, %v1506
    %v1509 = vadd.f32 %v1497, %v1507
    %v1510 = vld [vmem:[%s9] sm:$0x1]
    %v1512 = vlaneseq
    %v1513 = vshrl.u32 %v1512, 7
    %v1514 = vsub.s32 0, %v1513
    %v1515 = vrot.slane %v1510, %v1514
    %v1517 = vadd.f32 %v1509, %v1515
    %vm1518 = vcmask 64512
    %1519 = vst.msk [vmem:[#allocation2] sm:$0xff] %vm1518, %v1517
    %vm1520 = vcmask 15360
    %1521 = vst.msk [vmem:[%s11] sm:$0xff] %vm1520, %v827
    // Predicated region
    $region42: #{concat_features_net.3} parent=1 // pred_check
      _
    $region43: #{concat_features_net.3} parent=1 // pred_check_branch
      %1523 = sbr.rel (0) target = $region45
    $region44: #{concat_features_net.3} parent=1 // pred_region
      %s1525 = ssub.s32 128, 128
      %1526 = vsyncadd [#allocation3], %s1525
      %s1528 = sshll.u32 [#allocation2], 4
      %s1529 = int_to_ptr.vmem [resolvable:$true] %s1528
      %1531 = dma.vmem_to_hbm [thread:$0]  %s1529, 128, %s10, [#allocation3]
    $region45: #{concat_features_net.3} parent=1 // pred_fallthru
      _
    // Predicated region
    $region46: #{concat_features_net.3} parent=1 // pred_check
      _
    $region47: #{concat_features_net.3} parent=1 // pred_check_branch
      %1533 = sbr.rel (0) target = $region49
    $region48: #{concat_features_net.3} parent=1 // pred_region
      _
    $region49: #{concat_features_net.3} parent=1 // pred_fallthru
      _
    // Predicated region
    $region50: #{concat_features_net.3} parent=1 // pred_check
      _
    $region51: #{concat_features_net.3} parent=1 // pred_check_branch
      %1535 = sbr.rel (0) target = $region53
    $region52: #{concat_features_net.3} parent=1 // pred_region
      %1536 = dma.done [#allocation3], 128
    $region53: #{concat_features_net.3} parent=1 // pred_fallthru
      _
    // Predicated region
    $region54: #{concat_features_net.3} parent=1 // pred_check
      _
    $region55: #{concat_features_net.3} parent=1 // pred_check_branch
      %1538 = sbr.rel (0) target = $region57
    $region56: #{concat_features_net.3} parent=1 // pred_region
      _
    $region57: #{concat_features_net.3} parent=1 // pred_fallthru
      _
    %1539 = vsyncpa [#allocation3], 1

// kernel: concat_features_net.2
$region0: #{concat_features_net.2}
  #allocation0 [shape = 'u32[]', space=smem, size = 0x4, offset = 0x4, fixed_abs, tag = 'smem constant byte address 0x4 - core index']
  #allocation1 [shape = 'u32[144,128]{1,0:T(1,128)}', space=vmem, size = 0x12000, scoped, tag = 'internal scratch']
  #allocation2 [shape = 'f32[8,1024]{1,0:T(8,128)}', space=vmem, size = 0x8000, scoped, tag = 'scratch operand']
  %s0 = inlined_call_operand.vmem [shape: bf16[2,8,5120], index: 0, kind: input, shape index: {}]
  %s1 = inlined_call_operand.hbm [shape: s8[2,5120,1024], index: 1, kind: input, shape index: {}]
  %s2 = inlined_call_operand.hbm [shape: f32[2,1,1024], index: 2, kind: input, shape index: {}]
  %s3 = inlined_call_operand.vmem [shape: f32[2,8,1024], index: 3, kind: input, shape index: {}]
  %s4 = inlined_call_operand.vmem [shape: f32[2,8,1024], index: 4, kind: input, shape index: {}]
  %s5 = inlined_call_operand.hbm [shape: bf16[2,1024,512], index: 5, kind: input, shape index: {}]
  %s6 = inlined_call_operand.hbm [shape: f32[2,1,512], index: 6, kind: input, shape index: {}]
  %s7 = inlined_call_operand.vmem [shape: f32[2,8,512], index: 7, kind: input, shape index: {}]
  %s8 = inlined_call_operand.vmem [shape: f32[2,8,512], index: 8, kind: input, shape index: {}]
  %s9 = inlined_call_operand.vmem [shape: f32[2,8,512], index: 9, kind: output, shape index: {}]
  %s10 = sld [smem:[#allocation0]]
  $region93: #{concat_features_net.2} parent=0
    _
  %s12 = ssub.s32 1, %s10
  %s13 = scalar_select 0, %s12, %s10
  $region1: #{concat_features_net.2} parent=0
    #allocation3 [shape = 'u8[1310720]{0}', space=vmem, size = 0x140000, scoped, tag = 'input window, operand 1']
    #allocation4 [shape = 's32[2]{0}', space=sflag, size = 0x8, scoped, tag = 'scoped memory for concat_features_net.2']
    #allocation5 [shape = 'u8[8192]{0}', space=vmem, size = 0x2000, scoped, tag = 'input window, operand 2']
    #allocation6 [shape = 's32[2]{0}', space=sflag, size = 0x8, scoped, tag = 'scoped memory for concat_features_net.2']
    #allocation7 [shape = 'u8[2097152]{0}', space=vmem, size = 0x200000, scoped, tag = 'input window, operand 5']
    #allocation8 [shape = 'u8[4096]{0}', space=vmem, size = 0x1000, scoped, tag = 'input window, operand 6']
    #allocation9 [shape = 's32[2]{0}', space=sflag, size = 0x8, scoped, tag = 'scoped memory for concat_features_net.2']
    %14 = vsyncpa [#allocation4], 0
    %s15 = scalar_lea.sflag [#allocation4], 1
    %16 = vsyncpa %s15, 0
    %17 = vsyncpa [#allocation6], 0
    %s18 = scalar_lea.sflag [#allocation6], 1
    %19 = vsyncpa %s18, 0
    %20 = vsyncpa [#allocation9], 0
    %s21 = scalar_lea.sflag [#allocation9], 1
    %22 = vsyncpa %s21, 0
    loop: start=0, step=1, limit=18
    $region2: #{concat_features_net.2} parent=1 // loop_pre_header
      _
    $region3: #{concat_features_net.2} parent=1 // loop_header
      %s24 = sphi 0, %s28
      %p25 = scmp.ge.s32.totalorder %s24, 18
      %s31 = sphi 0, %s43
      %s32 = sphi 0, %s39
      %s33 = sphi 0, %s31
      %s34 = sphi 0, %s32
      %s35 = sphi 0, %s33
      %s36 = sphi 0, %s34
      %s48 = sphi 0, %s50
      %s51 = sphi 0, %s48
      %s52 = sphi 0, %s51
      %s68 = sphi 0, %s52
      %s76 = sphi 0, %s78
      %s79 = sphi 0, %s76
      %s80 = sphi 0, %s79
      %s96 = sphi 0, %s80
      %s102 = sphi 0, %s104
      %s105 = sphi 0, %s102
      %s106 = sphi 0, %s105
      %s122 = sphi 0, %s106
      %s128 = sphi 0, %s130
      %s131 = sphi 0, %s128
      %s132 = sphi 0, %s131
      %s148 = sphi 0, %s132
      %s154 = sphi 0, %s156
      %s157 = sphi 0, %s154
      %s158 = sphi 0, %s157
      %s174 = sphi 0, %s158
      %s180 = sphi 0, %s182
      %s183 = sphi 0, %s180
      %s184 = sphi 0, %s183
      %s200 = sphi 0, %s184
      %s206 = sphi 0, %s208
      %s209 = sphi 0, %s206
      %s210 = sphi 0, %s209
      %s226 = sphi 0, %s210
      %s232 = sphi 0, %s234
      %s235 = sphi 0, %s232
      %s236 = sphi 0, %s235
      %s252 = sphi 0, %s236
      %s258 = sphi 0, %s260
      %s261 = sphi 0, %s258
      %s262 = sphi 0, %s261
      %s278 = sphi 0, %s262
      %s284 = sphi 0, %s286
      %s287 = sphi 0, %s284
      %s288 = sphi 0, %s287
      %s304 = sphi 0, %s288
    $region4: #{concat_features_net.2} parent=1 // loop_header_branch
      %27 = sbr.rel (%p25) target = $region8
    $region5: #{concat_features_net.2} parent=1 // loop_body
      %s29 = ssub.s32 %s24, 1
      %s30 = ssub.s32 %s24, 2
      %s37 = sadd.s32 1, %s32
      %p38 = scmp.ge.s32.totalorder %s37, 8
      %s39 = scalar_select %p38, 0, %s37
      %s40 = sadd.s32 1, %s31
      %s41 = scalar_select %p38, %s40, %s31
      %p42 = scmp.ge.s32.totalorder %s41, 2
      %s43 = scalar_select %p42, 0, %s41
      %s44 = ssub.s32 %s31, %s43
      %s45 = ssub.s32 %s32, %s39
      %s46 = sor.u32 %s44, %s45
      %p47 = scmp.eq.s32.totalorder %s46, 0
      %s49 = sadd.s32 %s48, 1
      %s50 = scalar_select %p47, %s48, %s49
      %p53 = pneg %p47
      %p54 = scmp.eq.s32.totalorder %s24, 15
      %p55 = por %p53, %p54
      %p56 = scmp.ne.s32.totalorder %s48, %s51
      %p57 = scmp.eq.s32.totalorder %s24, 0
      %p58 = por %p56, %p57
      %p59 = scmp.ne.s32.totalorder %s48, %s51
      %p60 = scmp.eq.s32.totalorder %s29, 15
      %p61 = por %p59, %p60
      %p62 = scmp.ne.s32.totalorder %s51, %s52
      %p63 = scmp.eq.s32.totalorder %s29, 0
      %p64 = por %p62, %p63
      %p65 = scmp.ne.s32.totalorder %s51, %s52
      %p66 = scmp.eq.s32.totalorder %s30, 15
      %p67 = por %p65, %p66
      %p69 = scmp.ne.s32.totalorder %s52, %s68
      %p70 = scmp.eq.s32.totalorder %s30, 0
      %p71 = por %p69, %p70
      %s72 = ssub.s32 %s31, %s43
      %s73 = ssub.s32 %s32, %s39
      %s74 = sor.u32 %s72, %s73
      %p75 = scmp.eq.s32.totalorder %s74, 0
      %s77 = sadd.s32 %s76, 1
      %s78 = scalar_select %p75, %s76, %s77
      %p81 = pneg %p75
      %p82 = scmp.eq.s32.totalorder %s24, 15
      %p83 = por %p81, %p82
      %p84 = scmp.ne.s32.totalorder %s76, %s79
      %p85 = scmp.eq.s32.totalorder %s24, 0
      %p86 = por %p84, %p85
      %p87 = scmp.ne.s32.totalorder %s76, %s79
      %p88 = scmp.eq.s32.totalorder %s29, 15
      %p89 = por %p87, %p88
      %p90 = scmp.ne.s32.totalorder %s79, %s80
      %p91 = scmp.eq.s32.totalorder %s29, 0
      %p92 = por %p90, %p91
      %p93 = scmp.ne.s32.totalorder %s79, %s80
      %p94 = scmp.eq.s32.totalorder %s30, 15
      %p95 = por %p93, %p94
      %p97 = scmp.ne.s32.totalorder %s80, %s96
      %p98 = scmp.eq.s32.totalorder %s30, 0
      %p99 = por %p97, %p98
      %s100 = ssub.s32 %s31, %s43
      %p101 = scmp.eq.s32.totalorder %s100, 0
      %s103 = sadd.s32 %s102, 1
      %s104 = scalar_select %p101, %s102, %s103
      %p107 = pneg %p101
      %p108 = scmp.eq.s32.totalorder %s24, 15
      %p109 = por %p107, %p108
      %p110 = scmp.ne.s32.totalorder %s102, %s105
      %p111 = scmp.eq.s32.totalorder %s24, 0
      %p112 = por %p110, %p111
      %p113 = scmp.ne.s32.totalorder %s102, %s105
      %p114 = scmp.eq.s32.totalorder %s29, 15
      %p115 = por %p113, %p114
      %p116 = scmp.ne.s32.totalorder %s105, %s106
      %p117 = scmp.eq.s32.totalorder %s29, 0
      %p118 = por %p116, %p117
      %p119 = scmp.ne.s32.totalorder %s105, %s106
      %p120 = scmp.eq.s32.totalorder %s30, 15
      %p121 = por %p119, %p120
      %p123 = scmp.ne.s32.totalorder %s106, %s122
      %p124 = scmp.eq.s32.totalorder %s30, 0
      %p125 = por %p123, %p124
      %s126 = ssub.s32 %s31, %s43
      %p127 = scmp.eq.s32.totalorder %s126, 0
      %s129 = sadd.s32 %s128, 1
      %s130 = scalar_select %p127, %s128, %s129
      %p133 = pneg %p127
      %p134 = scmp.eq.s32.totalorder %s24, 15
      %p135 = por %p133, %p134
      %p136 = scmp.ne.s32.totalorder %s128, %s131
      %p137 = scmp.eq.s32.totalorder %s24, 0
      %p138 = por %p136, %p137
      %p139 = scmp.ne.s32.totalorder %s128, %s131
      %p140 = scmp.eq.s32.totalorder %s29, 15
      %p141 = por %p139, %p140
      %p142 = scmp.ne.s32.totalorder %s131, %s132
      %p143 = scmp.eq.s32.totalorder %s29, 0
      %p144 = por %p142, %p143
      %p145 = scmp.ne.s32.totalorder %s131, %s132
      %p146 = scmp.eq.s32.totalorder %s30, 15
      %p147 = por %p145, %p146
      %p149 = scmp.ne.s32.totalorder %s132, %s148
      %p150 = scmp.eq.s32.totalorder %s30, 0
      %p151 = por %p149, %p150
      %s152 = ssub.s32 %s31, %s43
      %p153 = scmp.eq.s32.totalorder %s152, 0
      %s155 = sadd.s32 %s154, 1
      %s156 = scalar_select %p153, %s154, %s155
      %p159 = pneg %p153
      %p160 = scmp.eq.s32.totalorder %s24, 15
      %p161 = por %p159, %p160
      %p162 = scmp.ne.s32.totalorder %s154, %s157
      %p163 = scmp.eq.s32.totalorder %s24, 0
      %p164 = por %p162, %p163
      %p165 = scmp.ne.s32.totalorder %s154, %s157
      %p166 = scmp.eq.s32.totalorder %s29, 15
      %p167 = por %p165, %p166
      %p168 = scmp.ne.s32.totalorder %s157, %s158
      %p169 = scmp.eq.s32.totalorder %s29, 0
      %p170 = por %p168, %p169
      %p171 = scmp.ne.s32.totalorder %s157, %s158
      %p172 = scmp.eq.s32.totalorder %s30, 15
      %p173 = por %p171, %p172
      %p175 = scmp.ne.s32.totalorder %s158, %s174
      %p176 = scmp.eq.s32.totalorder %s30, 0
      %p177 = por %p175, %p176
      %s178 = ssub.s32 %s31, %s43
      %p179 = scmp.eq.s32.totalorder %s178, 0
      %s181 = sadd.s32 %s180, 1
      %s182 = scalar_select %p179, %s180, %s181
      %p185 = pneg %p179
      %p186 = scmp.eq.s32.totalorder %s24, 15
      %p187 = por %p185, %p186
      %p188 = scmp.ne.s32.totalorder %s180, %s183
      %p189 = scmp.eq.s32.totalorder %s24, 0
      %p190 = por %p188, %p189
      %p191 = scmp.ne.s32.totalorder %s180, %s183
      %p192 = scmp.eq.s32.totalorder %s29, 15
      %p193 = por %p191, %p192
      %p194 = scmp.ne.s32.totalorder %s183, %s184
      %p195 = scmp.eq.s32.totalorder %s29, 0
      %p196 = por %p194, %p195
      %p197 = scmp.ne.s32.totalorder %s183, %s184
      %p198 = scmp.eq.s32.totalorder %s30, 15
      %p199 = por %p197, %p198
      %p201 = scmp.ne.s32.totalorder %s184, %s200
      %p202 = scmp.eq.s32.totalorder %s30, 0
      %p203 = por %p201, %p202
      %s204 = ssub.s32 %s31, %s43
      %p205 = scmp.eq.s32.totalorder %s204, 0
      %s207 = sadd.s32 %s206, 1
      %s208 = scalar_select %p205, %s206, %s207
      %p211 = pneg %p205
      %p212 = scmp.eq.s32.totalorder %s24, 15
      %p213 = por %p211, %p212
      %p214 = scmp.ne.s32.totalorder %s206, %s209
      %p215 = scmp.eq.s32.totalorder %s24, 0
      %p216 = por %p214, %p215
      %p217 = scmp.ne.s32.totalorder %s206, %s209
      %p218 = scmp.eq.s32.totalorder %s29, 15
      %p219 = por %p217, %p218
      %p220 = scmp.ne.s32.totalorder %s209, %s210
      %p221 = scmp.eq.s32.totalorder %s29, 0
      %p222 = por %p220, %p221
      %p223 = scmp.ne.s32.totalorder %s209, %s210
      %p224 = scmp.eq.s32.totalorder %s30, 15
      %p225 = por %p223, %p224
      %p227 = scmp.ne.s32.totalorder %s210, %s226
      %p228 = scmp.eq.s32.totalorder %s30, 0
      %p229 = por %p227, %p228
      %s230 = ssub.s32 %s31, %s43
      %p231 = scmp.eq.s32.totalorder %s230, 0
      %s233 = sadd.s32 %s232, 1
      %s234 = scalar_select %p231, %s232, %s233
      %p237 = pneg %p231
      %p238 = scmp.eq.s32.totalorder %s24, 15
      %p239 = por %p237, %p238
      %p240 = scmp.ne.s32.totalorder %s232, %s235
      %p241 = scmp.eq.s32.totalorder %s24, 0
      %p242 = por %p240, %p241
      %p243 = scmp.ne.s32.totalorder %s232, %s235
      %p244 = scmp.eq.s32.totalorder %s29, 15
      %p245 = por %p243, %p244
      %p246 = scmp.ne.s32.totalorder %s235, %s236
      %p247 = scmp.eq.s32.totalorder %s29, 0
      %p248 = por %p246, %p247
      %p249 = scmp.ne.s32.totalorder %s235, %s236
      %p250 = scmp.eq.s32.totalorder %s30, 15
      %p251 = por %p249, %p250
      %p253 = scmp.ne.s32.totalorder %s236, %s252
      %p254 = scmp.eq.s32.totalorder %s30, 0
      %p255 = por %p253, %p254
      %s256 = ssub.s32 %s31, %s43
      %p257 = scmp.eq.s32.totalorder %s256, 0
      %s259 = sadd.s32 %s258, 1
      %s260 = scalar_select %p257, %s258, %s259
      %p263 = pneg %p257
      %p264 = scmp.eq.s32.totalorder %s24, 15
      %p265 = por %p263, %p264
      %p266 = scmp.ne.s32.totalorder %s258, %s261
      %p267 = scmp.eq.s32.totalorder %s24, 0
      %p268 = por %p266, %p267
      %p269 = scmp.ne.s32.totalorder %s258, %s261
      %p270 = scmp.eq.s32.totalorder %s29, 15
      %p271 = por %p269, %p270
      %p272 = scmp.ne.s32.totalorder %s261, %s262
      %p273 = scmp.eq.s32.totalorder %s29, 0
      %p274 = por %p272, %p273
      %p275 = scmp.ne.s32.totalorder %s261, %s262
      %p276 = scmp.eq.s32.totalorder %s30, 15
      %p277 = por %p275, %p276
      %p279 = scmp.ne.s32.totalorder %s262, %s278
      %p280 = scmp.eq.s32.totalorder %s30, 0
      %p281 = por %p279, %p280
      %s282 = ssub.s32 %s31, %s43
      %p283 = scmp.eq.s32.totalorder %s282, 0
      %s285 = sadd.s32 %s284, 1
      %s286 = scalar_select %p283, %s284, %s285
      %p289 = pneg %p283
      %p290 = scmp.eq.s32.totalorder %s24, 15
      %p291 = por %p289, %p290
      %p292 = scmp.ne.s32.totalorder %s284, %s287
      %p293 = scmp.eq.s32.totalorder %s24, 0
      %p294 = por %p292, %p293
      %p295 = scmp.ne.s32.totalorder %s284, %s287
      %p296 = scmp.eq.s32.totalorder %s29, 15
      %p297 = por %p295, %p296
      %p298 = scmp.ne.s32.totalorder %s287, %s288
      %p299 = scmp.eq.s32.totalorder %s29, 0
      %p300 = por %p298, %p299
      %p301 = scmp.ne.s32.totalorder %s287, %s288
      %p302 = scmp.eq.s32.totalorder %s30, 15
      %p303 = por %p301, %p302
      %p305 = scmp.ne.s32.totalorder %s288, %s304
      %p306 = scmp.eq.s32.totalorder %s30, 0
      %p307 = por %p305, %p306
      %p308 = scmp.le.s32.totalorder 1, %s24
      %p309 = scmp.lt.s32.totalorder %s24, 17
      %p310 = pnand %p308, %p309
      %p311 = pneg %p310
      // Predicated region
      $region9: #{concat_features_net.2} parent=5 // pred_check
        _
      $region10: #{concat_features_net.2} parent=5 // pred_check_branch
        %313 = sbr.rel (%p310) target = $region12
      $region11: #{concat_features_net.2} parent=5 // pred_region
        %s314 = ssub.s32 %s24, 1
      $region12: #{concat_features_net.2} parent=5 // pred_fallthru
        _
      %p315 = scmp.lt.s32.totalorder %s24, 16
      // Predicated region
      $region13: #{concat_features_net.2} parent=5 // pred_check
        %p316 = pneg %p315
      $region14: #{concat_features_net.2} parent=5 // pred_check_branch
        %318 = sbr.rel (%p316) target = $region16
      $region15: #{concat_features_net.2} parent=5 // pred_region
        // Predicated region
        $region17: #{concat_features_net.2} parent=15 // pred_check
          %p319 = pneg %p58
        $region18: #{concat_features_net.2} parent=15 // pred_check_branch
          %321 = sbr.rel (%p319) target = $region20
        $region19: #{concat_features_net.2} parent=15 // pred_region
          %s322 = smul.u32 5, %s32
          %p323 = scmp.lt.s32.totalorder %s31, 1
          %s324 = scalar_select %p323, %s31, 1
          %p325 = scmp.lt.s32.totalorder %s322, 39
          %s326 = scalar_select %p325, %s322, 39
          %s327 = smul.addr %s324, 40
          %s328 = sadd.s32 %s326, %s327
          %s329 = smul.addr %s328, 4
          %s330 = scalar_lea.vmem %s0, %s329
          %s331 = smul.u32 5, %s32
        $region20: #{concat_features_net.2} parent=15 // pred_fallthru
          _
        // Predicated region
        $region21: #{concat_features_net.2} parent=15 // pred_check
          %p332 = pneg %p86
        $region22: #{concat_features_net.2} parent=15 // pred_check_branch
          %334 = sbr.rel (%p332) target = $region24
        $region23: #{concat_features_net.2} parent=15 // pred_region
          %s335 = sand.u32 %s76, 1
          %s336 = scalar_lea.sflag [#allocation4], %s335
          %s337 = sand.u32 %s76, 1
          %s338 = smul.addr %s337, 1280
          %s339 = scalar_lea.vmem [#allocation3], %s338
          %s340 = smul.u32 20, %s32
          %s342 = ssub.s32 20480, 20480
          %343 = vsyncadd %s336, %s342
          %s344 = smul.addr %s340, 8
          %s345 = smul.addr %s31, 1280
          %s346 = sadd.s32 %s344, %s345
          %s347 = smul.addr %s346, 128
          %s348 = scalar_lea.hbm %s1, %s347
          %s349 = sshll.u32 %s339, 4
          %s350 = int_to_ptr.vmem [resolvable:$true] %s349
          %355 = dma.hbm_to_vmem [thread:$0]  %s348, 20480, %s350, %s336, 1024, 1024, 64
        $region24: #{concat_features_net.2} parent=15 // pred_fallthru
          _
        // Predicated region
        $region25: #{concat_features_net.2} parent=15 // pred_check
          %p356 = pneg %p112
        $region26: #{concat_features_net.2} parent=15 // pred_check_branch
          %358 = sbr.rel (%p356) target = $region28
        $region27: #{concat_features_net.2} parent=15 // pred_region
          %s359 = sand.u32 %s24, 1
          %s360 = scalar_lea.sflag [#allocation6], %s359
          %s361 = sand.u32 %s102, 1
          %s362 = smul.addr %s361, 8
          %s363 = scalar_lea.vmem [#allocation5], %s362
          %s365 = ssub.s32 128, 128
          %366 = vsyncadd %s360, %s365
          %s367 = smul.addr %s31, 8
          %s368 = smul.addr %s367, 16
          %s369 = scalar_lea.hbm %s2, %s368
          %s371 = sshll.u32 %s363, 4
          %s372 = int_to_ptr.vmem [resolvable:$true] %s371
          %374 = dma.hbm_to_vmem [thread:$0]  %s369, 128, %s372, %s360
        $region28: #{concat_features_net.2} parent=15 // pred_fallthru
          _
        // Predicated region
        $region29: #{concat_features_net.2} parent=15 // pred_check
          %p375 = pneg %p138
        $region30: #{concat_features_net.2} parent=15 // pred_check_branch
          %377 = sbr.rel (%p375) target = $region32
        $region31: #{concat_features_net.2} parent=15 // pred_region
          %p378 = scmp.lt.s32.totalorder %s31, 1
          %s379 = scalar_select %p378, %s31, 1
          %s380 = smul.addr %s379, 8
          %s381 = smul.addr %s380, 8
          %s382 = scalar_lea.vmem %s3, %s381
        $region32: #{concat_features_net.2} parent=15 // pred_fallthru
          _
        // Predicated region
        $region33: #{concat_features_net.2} parent=15 // pred_check
          %p383 = pneg %p164
        $region34: #{concat_features_net.2} parent=15 // pred_check_branch
          %385 = sbr.rel (%p383) target = $region36
        $region35: #{concat_features_net.2} parent=15 // pred_region
          %p386 = scmp.lt.s32.totalorder %s31, 1
          %s387 = scalar_select %p386, %s31, 1
          %s388 = smul.addr %s387, 8
          %s389 = smul.addr %s388, 8
          %s390 = scalar_lea.vmem %s4, %s389
        $region36: #{concat_features_net.2} parent=15 // pred_fallthru
          _
        // Predicated region
        $region37: #{concat_features_net.2} parent=15 // pred_check
          %p391 = pneg %p190
        $region38: #{concat_features_net.2} parent=15 // pred_check_branch
          %393 = sbr.rel (%p391) target = $region40
        $region39: #{concat_features_net.2} parent=15 // pred_region
          %s394 = sand.u32 %s24, 1
          %s395 = scalar_lea.sflag [#allocation6], %s394
          %s396 = sand.u32 %s180, 1
          %s397 = smul.addr %s396, 2048
          %s398 = scalar_lea.vmem [#allocation7], %s397
          %s400 = ssub.s32 32768, 32768
          %401 = vsyncadd %s395, %s400
          %s402 = smul.addr %s31, 512
          %s403 = smul.addr %s402, 64
          %s404 = scalar_lea.hbm %s5, %s403
          %s405 = sshll.u32 %s398, 4
          %s406 = int_to_ptr.vmem [resolvable:$true] %s405
          %411 = dma.hbm_to_vmem [thread:$0]  %s404, 32768, %s406, %s395, 256, 256, 16
        $region40: #{concat_features_net.2} parent=15 // pred_fallthru
          _
        // Predicated region
        $region41: #{concat_features_net.2} parent=15 // pred_check
          %p412 = pneg %p216
        $region42: #{concat_features_net.2} parent=15 // pred_check_branch
          %414 = sbr.rel (%p412) target = $region44
        $region43: #{concat_features_net.2} parent=15 // pred_region
          %s415 = sand.u32 %s206, 1
          %s416 = scalar_lea.sflag [#allocation9], %s415
          %s417 = sand.u32 %s206, 1
          %s418 = smul.addr %s417, 4
          %s419 = scalar_lea.vmem [#allocation8], %s418
          %s421 = ssub.s32 64, 64
          %422 = vsyncadd %s416, %s421
          %s423 = smul.addr %s31, 4
          %s424 = smul.addr %s423, 16
          %s425 = scalar_lea.hbm %s6, %s424
          %s427 = sshll.u32 %s419, 4
          %s428 = int_to_ptr.vmem [resolvable:$true] %s427
          %430 = dma.hbm_to_vmem [thread:$0]  %s425, 64, %s428, %s416
        $region44: #{concat_features_net.2} parent=15 // pred_fallthru
          _
        // Predicated region
        $region45: #{concat_features_net.2} parent=15 // pred_check
          %p431 = pneg %p242
        $region46: #{concat_features_net.2} parent=15 // pred_check_branch
          %433 = sbr.rel (%p431) target = $region48
        $region47: #{concat_features_net.2} parent=15 // pred_region
          %p434 = scmp.lt.s32.totalorder %s31, 1
          %s435 = scalar_select %p434, %s31, 1
          %s436 = smul.addr %s435, 4
          %s437 = smul.addr %s436, 8
          %s438 = scalar_lea.vmem %s7, %s437
        $region48: #{concat_features_net.2} parent=15 // pred_fallthru
          _
        // Predicated region
        $region49: #{concat_features_net.2} parent=15 // pred_check
          %p439 = pneg %p268
        $region50: #{concat_features_net.2} parent=15 // pred_check_branch
          %441 = sbr.rel (%p439) target = $region52
        $region51: #{concat_features_net.2} parent=15 // pred_region
          %p442 = scmp.lt.s32.totalorder %s31, 1
          %s443 = scalar_select %p442, %s31, 1
          %s444 = smul.addr %s443, 4
          %s445 = smul.addr %s444, 8
          %s446 = scalar_lea.vmem %s8, %s445
        $region52: #{concat_features_net.2} parent=15 // pred_fallthru
          _
      $region16: #{concat_features_net.2} parent=5 // pred_fallthru
        _
      %p447 = scmp.le.s32.totalorder 1, %s24
      %p448 = scmp.lt.s32.totalorder %s24, 17
      %p449 = pnand %p447, %p448
      %p450 = pneg %p449
      // Predicated region
      $region53: #{concat_features_net.2} parent=5 // pred_check
        _
      $region54: #{concat_features_net.2} parent=5 // pred_check_branch
        %452 = sbr.rel (%p449) target = $region56
      $region55: #{concat_features_net.2} parent=5 // pred_region
        %s453 = ssub.s32 %s24, 1
        %s454 = sand.u32 %s79, 1
        %s455 = scalar_lea.sflag [#allocation4], %s454
        %s456 = sand.u32 %s79, 1
        %s457 = smul.addr %s456, 1280
        %s458 = scalar_lea.vmem [#allocation3], %s457
        // Predicated region
        $region57: #{concat_features_net.2} parent=55 // pred_check
          %p459 = pneg %p92
        $region58: #{concat_features_net.2} parent=55 // pred_check_branch
          %461 = sbr.rel (%p459) target = $region60
        $region59: #{concat_features_net.2} parent=55 // pred_region
          %462 = dma.done %s455, 20480
        $region60: #{concat_features_net.2} parent=55 // pred_fallthru
          _
        %s463 = sand.u32 %s29, 1
        %s464 = scalar_lea.sflag [#allocation6], %s463
        %s465 = sand.u32 %s105, 1
        %s466 = smul.addr %s465, 8
        %s467 = scalar_lea.vmem [#allocation5], %s466
        // Predicated region
        $region61: #{concat_features_net.2} parent=55 // pred_check
          %p468 = pneg %p118
        $region62: #{concat_features_net.2} parent=55 // pred_check_branch
          %470 = sbr.rel (%p468) target = $region64
        $region63: #{concat_features_net.2} parent=55 // pred_region
          %471 = dma.done %s464, 128
        $region64: #{concat_features_net.2} parent=55 // pred_fallthru
          _
        %s472 = sand.u32 %s29, 1
        %s473 = scalar_lea.sflag [#allocation6], %s472
        %s474 = sand.u32 %s183, 1
        %s475 = smul.addr %s474, 2048
        %s476 = scalar_lea.vmem [#allocation7], %s475
        // Predicated region
        $region65: #{concat_features_net.2} parent=55 // pred_check
          %p477 = pneg %p196
        $region66: #{concat_features_net.2} parent=55 // pred_check_branch
          %479 = sbr.rel (%p477) target = $region68
        $region67: #{concat_features_net.2} parent=55 // pred_region
          %480 = dma.done %s473, 32768
        $region68: #{concat_features_net.2} parent=55 // pred_fallthru
          _
        %s481 = sand.u32 %s209, 1
        %s482 = scalar_lea.sflag [#allocation9], %s481
        %s483 = sand.u32 %s209, 1
        %s484 = smul.addr %s483, 4
        %s485 = scalar_lea.vmem [#allocation8], %s484
        // Predicated region
        $region69: #{concat_features_net.2} parent=55 // pred_check
          %p486 = pneg %p222
        $region70: #{concat_features_net.2} parent=55 // pred_check_branch
          %488 = sbr.rel (%p486) target = $region72
        $region71: #{concat_features_net.2} parent=55 // pred_region
          %489 = dma.done %s482, 64
        $region72: #{concat_features_net.2} parent=55 // pred_fallthru
          _
        %s490 = smul.u32 5, %s34
        %p491 = scmp.lt.s32.totalorder %s33, 1
        %s492 = scalar_select %p491, %s33, 1
        %p493 = scmp.lt.s32.totalorder %s490, 39
        %s494 = scalar_select %p493, %s490, 39
        %s495 = smul.addr %s492, 40
        %s496 = sadd.s32 %s494, %s495
        %s497 = smul.addr %s496, 4
        %s498 = scalar_lea.vmem %s0, %s497
        %p499 = pneg %p64
        %p500 = pneg %p61
        %s501 = sand.u32 %s79, 1
        %s502 = scalar_lea.sflag [#allocation4], %s501
        %s503 = sand.u32 %s79, 1
        %s504 = smul.addr %s503, 1280
        %s505 = scalar_lea.vmem [#allocation3], %s504
        %p506 = pneg %p92
        %p507 = pneg %p89
        %s508 = sand.u32 %s29, 1
        %s509 = scalar_lea.sflag [#allocation6], %s508
        %s510 = sand.u32 %s105, 1
        %s511 = smul.addr %s510, 8
        %s512 = scalar_lea.vmem [#allocation5], %s511
        %p513 = pneg %p118
        %p514 = pneg %p115
        %p515 = scmp.lt.s32.totalorder %s33, 1
        %s516 = scalar_select %p515, %s33, 1
        %s517 = smul.addr %s516, 8
        %s518 = smul.addr %s517, 8
        %s519 = scalar_lea.vmem %s3, %s518
        %p520 = pneg %p144
        %p521 = pneg %p141
        %p522 = scmp.lt.s32.totalorder %s33, 1
        %s523 = scalar_select %p522, %s33, 1
        %s524 = smul.addr %s523, 8
        %s525 = smul.addr %s524, 8
        %s526 = scalar_lea.vmem %s4, %s525
        %p527 = pneg %p170
        %p528 = pneg %p167
        %s529 = sand.u32 %s29, 1
        %s530 = scalar_lea.sflag [#allocation6], %s529
        %s531 = sand.u32 %s183, 1
        %s532 = smul.addr %s531, 2048
        %s533 = scalar_lea.vmem [#allocation7], %s532
        %p534 = pneg %p196
        %p535 = pneg %p193
        %s536 = sand.u32 %s209, 1
        %s537 = scalar_lea.sflag [#allocation9], %s536
        %s538 = sand.u32 %s209, 1
        %s539 = smul.addr %s538, 4
        %s540 = scalar_lea.vmem [#allocation8], %s539
        %p541 = pneg %p222
        %p542 = pneg %p219
        %p543 = scmp.lt.s32.totalorder %s33, 1
        %s544 = scalar_select %p543, %s33, 1
        %s545 = smul.addr %s544, 4
        %s546 = smul.addr %s545, 8
        %s547 = scalar_lea.vmem %s7, %s546
        %p548 = pneg %p248
        %p549 = pneg %p245
        %p550 = scmp.lt.s32.totalorder %s33, 1
        %s551 = scalar_select %p550, %s33, 1
        %s552 = smul.addr %s551, 4
        %s553 = smul.addr %s552, 8
        %s554 = scalar_lea.vmem %s8, %s553
        %p555 = pneg %p274
        %p556 = pneg %p271
        %p557 = pneg %p300
        %p558 = pneg %p297
        %p559 = scmp.lt.s32.totalorder %s33, 1
        %s560 = scalar_select %p559, %s33, 1
        %s561 = smul.addr %s560, 4
        %s562 = smul.addr %s561, 8
        %s563 = scalar_lea.vmem %s9, %s562
        %s564 = smul.u32 5, %s34
        %p565 = scmp.lt.s32.totalorder %s33, 1
        %s566 = scalar_select %p565, %s33, 1
        %p567 = scmp.lt.s32.totalorder %s564, 39
        %s568 = scalar_select %p567, %s564, 39
        %s569 = smul.addr %s566, 40
        %s570 = sadd.s32 %s568, %s569
        %s571 = smul.addr %s570, 4
        %s572 = scalar_lea.vmem %s0, %s571
        %s573 = smul.u32 5, %s34
        %s574 = smul.u32 20, %s34
        %p575 = scmp.lt.s32.totalorder %s33, 1
        %s576 = scalar_select %p575, %s33, 1
        %s577 = smul.addr %s576, 8
        %s578 = smul.addr %s577, 8
        %s579 = scalar_lea.vmem %s3, %s578
        %p580 = scmp.lt.s32.totalorder %s33, 1
        %s581 = scalar_select %p580, %s33, 1
        %s582 = smul.addr %s581, 8
        %s583 = smul.addr %s582, 8
        %s584 = scalar_lea.vmem %s4, %s583
        %p585 = scmp.lt.s32.totalorder %s33, 1
        %s586 = scalar_select %p585, %s33, 1
        %s587 = smul.addr %s586, 4
        %s588 = smul.addr %s587, 8
        %s589 = scalar_lea.vmem %s7, %s588
        %p590 = scmp.lt.s32.totalorder %s33, 1
        %s591 = scalar_select %p590, %s33, 1
        %s592 = smul.addr %s591, 4
        %s593 = smul.addr %s592, 8
        %s594 = scalar_lea.vmem %s8, %s593
        %p595 = scmp.lt.s32.totalorder %s33, 1
        %s596 = scalar_select %p595, %s33, 1
        %s597 = smul.addr %s596, 4
        %s598 = smul.addr %s597, 8
        %s599 = scalar_lea.vmem %s9, %s598
        %p601 = scmp.eq.s32.totalorder %s34, 0
        // Predicated region
        $region73: #{concat_features_net.2} parent=55 // pred_check
          %p602 = pneg %p601
        $region74: #{concat_features_net.2} parent=55 // pred_check_branch
          %604 = sbr.rel (%p602) target = $region76
        $region75: #{concat_features_net.2} parent=55 // pred_region
          %v605 = vld [vmem:[%s467] sm:$0xff]
          %v607 = vlaneseq
          %v608 = vshrl.u32 %v607, 7
          %v609 = vsub.s32 0, %v608
          %v610 = vrot.slane %v605, %v609
          %v611 = vlaneseq
          %v612 = vshrl.u32 %v611, 7
          %v613 = vsub.s32 1, %v612
          %v614 = vrot.slane %v605, %v613
          %v615 = vlaneseq
          %v616 = vshrl.u32 %v615, 7
          %v617 = vsub.s32 2, %v616
          %v618 = vrot.slane %v605, %v617
          %v619 = vlaneseq
          %v620 = vshrl.u32 %v619, 7
          %v621 = vsub.s32 3, %v620
          %v622 = vrot.slane %v605, %v621
          %v623 = vlaneseq
          %v624 = vshrl.u32 %v623, 7
          %v625 = vsub.s32 4, %v624
          %v626 = vrot.slane %v605, %v625
          %v627 = vlaneseq
          %v628 = vshrl.u32 %v627, 7
          %v629 = vsub.s32 5, %v628
          %v630 = vrot.slane %v605, %v629
          %v631 = vlaneseq
          %v632 = vshrl.u32 %v631, 7
          %v633 = vsub.s32 6, %v632
          %v634 = vrot.slane %v605, %v633
          %v635 = vlaneseq
          %v636 = vshrl.u32 %v635, 7
          %v637 = vsub.s32 7, %v636
          %v638 = vrot.slane %v605, %v637
          %647 = vst [vmem:[#allocation2] sm:$0xff] %v610
          %648 = vst [vmem:[#allocation2 + $0x8] sm:$0xff] %v614
          %649 = vst [vmem:[#allocation2 + $0x10] sm:$0xff] %v618
          %650 = vst [vmem:[#allocation2 + $0x18] sm:$0xff] %v622
          %651 = vst [vmem:[#allocation2 + $0x20] sm:$0xff] %v626
          %652 = vst [vmem:[#allocation2 + $0x28] sm:$0xff] %v630
          %653 = vst [vmem:[#allocation2 + $0x30] sm:$0xff] %v634
          %654 = vst [vmem:[#allocation2 + $0x38] sm:$0xff] %v638
        $region76: #{concat_features_net.2} parent=55 // pred_fallthru
          _
        %v655 = vld [vmem:[%s458] sm:$0xff]
        %v656 = vld [vmem:[%s458 + $0x8] sm:$0xff]
        %v657 = vld [vmem:[%s458 + $0x10] sm:$0xff]
        %v658 = vld [vmem:[%s458 + $0x18] sm:$0xff]
        %v659 = vld [vmem:[%s458 + $0x20] sm:$0xff]
        %v660 = vld [vmem:[%s458 + $0x28] sm:$0xff]
        %v661 = vld [vmem:[%s458 + $0x30] sm:$0xff]
        %v662 = vld [vmem:[%s458 + $0x38] sm:$0xff]
        %v663 = vld [vmem:[%s458 + $0x40] sm:$0xff]
        %v664 = vld [vmem:[%s458 + $0x48] sm:$0xff]
        %v665 = vld [vmem:[%s458 + $0x50] sm:$0xff]
        %v666 = vld [vmem:[%s458 + $0x58] sm:$0xff]
        %v667 = vld [vmem:[%s458 + $0x60] sm:$0xff]
        %v668 = vld [vmem:[%s458 + $0x68] sm:$0xff]
        %v669 = vld [vmem:[%s458 + $0x70] sm:$0xff]
        %v670 = vld [vmem:[%s458 + $0x78] sm:$0xff]
        %v671 = vld [vmem:[%s458 + $0x80] sm:$0xff]
        %v672 = vld [vmem:[%s458 + $0x88] sm:$0xff]
        %v673 = vld [vmem:[%s458 + $0x90] sm:$0xff]
        %v674 = vld [vmem:[%s458 + $0x98] sm:$0xff]
        %v675 = vld [vmem:[%s458 + $0xa0] sm:$0xff]
        %v676 = vld [vmem:[%s458 + $0xa8] sm:$0xff]
        %v677 = vld [vmem:[%s458 + $0xb0] sm:$0xff]
        %v678 = vld [vmem:[%s458 + $0xb8] sm:$0xff]
        %v679 = vld [vmem:[%s458 + $0xc0] sm:$0xff]
        %v680 = vld [vmem:[%s458 + $0xc8] sm:$0xff]
        %v681 = vld [vmem:[%s458 + $0xd0] sm:$0xff]
        %v682 = vld [vmem:[%s458 + $0xd8] sm:$0xff]
        %v683 = vld [vmem:[%s458 + $0xe0] sm:$0xff]
        %v684 = vld [vmem:[%s458 + $0xe8] sm:$0xff]
        %v685 = vld [vmem:[%s458 + $0xf0] sm:$0xff]
        %v686 = vld [vmem:[%s458 + $0xf8] sm:$0xff]
        %v687 = vld [vmem:[%s458 + $0x100] sm:$0xff]
        %v688 = vld [vmem:[%s458 + $0x108] sm:$0xff]
        %v689 = vld [vmem:[%s458 + $0x110] sm:$0xff]
        %v690 = vld [vmem:[%s458 + $0x118] sm:$0xff]
        %v691 = vld [vmem:[%s458 + $0x120] sm:$0xff]
        %v692 = vld [vmem:[%s458 + $0x128] sm:$0xff]
        %v693 = vld [vmem:[%s458 + $0x130] sm:$0xff]
        %v694 = vld [vmem:[%s458 + $0x138] sm:$0xff]
        %v695 = vld [vmem:[%s458 + $0x140] sm:$0xff]
        %v696 = vld [vmem:[%s458 + $0x148] sm:$0xff]
        %v697 = vld [vmem:[%s458 + $0x150] sm:$0xff]
        %v698 = vld [vmem:[%s458 + $0x158] sm:$0xff]
        %v699 = vld [vmem:[%s458 + $0x160] sm:$0xff]
        %v700 = vld [vmem:[%s458 + $0x168] sm:$0xff]
        %v701 = vld [vmem:[%s458 + $0x170] sm:$0xff]
        %v702 = vld [vmem:[%s458 + $0x178] sm:$0xff]
        %v703 = vld [vmem:[%s458 + $0x180] sm:$0xff]
        %v704 = vld [vmem:[%s458 + $0x188] sm:$0xff]
        %v705 = vld [vmem:[%s458 + $0x190] sm:$0xff]
        %v706 = vld [vmem:[%s458 + $0x198] sm:$0xff]
        %v707 = vld [vmem:[%s458 + $0x1a0] sm:$0xff]
        %v708 = vld [vmem:[%s458 + $0x1a8] sm:$0xff]
        %v709 = vld [vmem:[%s458 + $0x1b0] sm:$0xff]
        %v710 = vld [vmem:[%s458 + $0x1b8] sm:$0xff]
        %v711 = vld [vmem:[%s458 + $0x1c0] sm:$0xff]
        %v712 = vld [vmem:[%s458 + $0x1c8] sm:$0xff]
        %v713 = vld [vmem:[%s458 + $0x1d0] sm:$0xff]
        %v714 = vld [vmem:[%s458 + $0x1d8] sm:$0xff]
        %v715 = vld [vmem:[%s458 + $0x1e0] sm:$0xff]
        %v716 = vld [vmem:[%s458 + $0x1e8] sm:$0xff]
        %v717 = vld [vmem:[%s458 + $0x1f0] sm:$0xff]
        %v718 = vld [vmem:[%s458 + $0x1f8] sm:$0xff]
        %v719 = vld [vmem:[%s458 + $0x200] sm:$0xff]
        %v720 = vld [vmem:[%s458 + $0x208] sm:$0xff]
        %v721 = vld [vmem:[%s458 + $0x210] sm:$0xff]
        %v722 = vld [vmem:[%s458 + $0x218] sm:$0xff]
        %v723 = vld [vmem:[%s458 + $0x220] sm:$0xff]
        %v724 = vld [vmem:[%s458 + $0x228] sm:$0xff]
        %v725 = vld [vmem:[%s458 + $0x230] sm:$0xff]
        %v726 = vld [vmem:[%s458 + $0x238] sm:$0xff]
        %v727 = vld [vmem:[%s458 + $0x240] sm:$0xff]
        %v728 = vld [vmem:[%s458 + $0x248] sm:$0xff]
        %v729 = vld [vmem:[%s458 + $0x250] sm:$0xff]
        %v730 = vld [vmem:[%s458 + $0x258] sm:$0xff]
        %v731 = vld [vmem:[%s458 + $0x260] sm:$0xff]
        %v732 = vld [vmem:[%s458 + $0x268] sm:$0xff]
        %v733 = vld [vmem:[%s458 + $0x270] sm:$0xff]
        %v734 = vld [vmem:[%s458 + $0x278] sm:$0xff]
        %v735 = vld [vmem:[%s458 + $0x280] sm:$0xff]
        %v736 = vld [vmem:[%s458 + $0x288] sm:$0xff]
        %v737 = vld [vmem:[%s458 + $0x290] sm:$0xff]
        %v738 = vld [vmem:[%s458 + $0x298] sm:$0xff]
        %v739 = vld [vmem:[%s458 + $0x2a0] sm:$0xff]
        %v740 = vld [vmem:[%s458 + $0x2a8] sm:$0xff]
        %v741 = vld [vmem:[%s458 + $0x2b0] sm:$0xff]
        %v742 = vld [vmem:[%s458 + $0x2b8] sm:$0xff]
        %v743 = vld [vmem:[%s458 + $0x2c0] sm:$0xff]
        %v744 = vld [vmem:[%s458 + $0x2c8] sm:$0xff]
        %v745 = vld [vmem:[%s458 + $0x2d0] sm:$0xff]
        %v746 = vld [vmem:[%s458 + $0x2d8] sm:$0xff]
        %v747 = vld [vmem:[%s458 + $0x2e0] sm:$0xff]
        %v748 = vld [vmem:[%s458 + $0x2e8] sm:$0xff]
        %v749 = vld [vmem:[%s458 + $0x2f0] sm:$0xff]
        %v750 = vld [vmem:[%s458 + $0x2f8] sm:$0xff]
        %v751 = vld [vmem:[%s458 + $0x300] sm:$0xff]
        %v752 = vld [vmem:[%s458 + $0x308] sm:$0xff]
        %v753 = vld [vmem:[%s458 + $0x310] sm:$0xff]
        %v754 = vld [vmem:[%s458 + $0x318] sm:$0xff]
        %v755 = vld [vmem:[%s458 + $0x320] sm:$0xff]
        %v756 = vld [vmem:[%s458 + $0x328] sm:$0xff]
        %v757 = vld [vmem:[%s458 + $0x330] sm:$0xff]
        %v758 = vld [vmem:[%s458 + $0x338] sm:$0xff]
        %v759 = vld [vmem:[%s458 + $0x340] sm:$0xff]
        %v760 = vld [vmem:[%s458 + $0x348] sm:$0xff]
        %v761 = vld [vmem:[%s458 + $0x350] sm:$0xff]
        %v762 = vld [vmem:[%s458 + $0x358] sm:$0xff]
        %v763 = vld [vmem:[%s458 + $0x360] sm:$0xff]
        %v764 = vld [vmem:[%s458 + $0x368] sm:$0xff]
        %v765 = vld [vmem:[%s458 + $0x370] sm:$0xff]
        %v766 = vld [vmem:[%s458 + $0x378] sm:$0xff]
        %v767 = vld [vmem:[%s458 + $0x380] sm:$0xff]
        %v768 = vld [vmem:[%s458 + $0x388] sm:$0xff]
        %v769 = vld [vmem:[%s458 + $0x390] sm:$0xff]
        %v770 = vld [vmem:[%s458 + $0x398] sm:$0xff]
        %v771 = vld [vmem:[%s458 + $0x3a0] sm:$0xff]
        %v772 = vld [vmem:[%s458 + $0x3a8] sm:$0xff]
        %v773 = vld [vmem:[%s458 + $0x3b0] sm:$0xff]
        %v774 = vld [vmem:[%s458 + $0x3b8] sm:$0xff]
        %v775 = vld [vmem:[%s458 + $0x3c0] sm:$0xff]
        %v776 = vld [vmem:[%s458 + $0x3c8] sm:$0xff]
        %v777 = vld [vmem:[%s458 + $0x3d0] sm:$0xff]
        %v778 = vld [vmem:[%s458 + $0x3d8] sm:$0xff]
        %v779 = vld [vmem:[%s458 + $0x3e0] sm:$0xff]
        %v780 = vld [vmem:[%s458 + $0x3e8] sm:$0xff]
        %v781 = vld [vmem:[%s458 + $0x3f0] sm:$0xff]
        %v782 = vld [vmem:[%s458 + $0x3f8] sm:$0xff]
        %v783 = vld [vmem:[%s458 + $0x400] sm:$0xff]
        %v784 = vld [vmem:[%s458 + $0x408] sm:$0xff]
        %v785 = vld [vmem:[%s458 + $0x410] sm:$0xff]
        %v786 = vld [vmem:[%s458 + $0x418] sm:$0xff]
        %v787 = vld [vmem:[%s458 + $0x420] sm:$0xff]
        %v788 = vld [vmem:[%s458 + $0x428] sm:$0xff]
        %v789 = vld [vmem:[%s458 + $0x430] sm:$0xff]
        %v790 = vld [vmem:[%s458 + $0x438] sm:$0xff]
        %v791 = vld [vmem:[%s458 + $0x440] sm:$0xff]
        %v792 = vld [vmem:[%s458 + $0x448] sm:$0xff]
        %v793 = vld [vmem:[%s458 + $0x450] sm:$0xff]
        %v794 = vld [vmem:[%s458 + $0x458] sm:$0xff]
        %v795 = vld [vmem:[%s458 + $0x460] sm:$0xff]
        %v796 = vld [vmem:[%s458 + $0x468] sm:$0xff]
        %v797 = vld [vmem:[%s458 + $0x470] sm:$0xff]
        %v798 = vld [vmem:[%s458 + $0x478] sm:$0xff]
        %v799 = vld [vmem:[%s458 + $0x480] sm:$0xff]
        %v800 = vld [vmem:[%s458 + $0x488] sm:$0xff]
        %v801 = vld [vmem:[%s458 + $0x490] sm:$0xff]
        %v802 = vld [vmem:[%s458 + $0x498] sm:$0xff]
        %v803 = vld [vmem:[%s458 + $0x4a0] sm:$0xff]
        %v804 = vld [vmem:[%s458 + $0x4a8] sm:$0xff]
        %v805 = vld [vmem:[%s458 + $0x4b0] sm:$0xff]
        %v806 = vld [vmem:[%s458 + $0x4b8] sm:$0xff]
        %v807 = vld [vmem:[%s458 + $0x4c0] sm:$0xff]
        %v808 = vld [vmem:[%s458 + $0x4c8] sm:$0xff]
        %v809 = vld [vmem:[%s458 + $0x4d0] sm:$0xff]
        %v810 = vld [vmem:[%s458 + $0x4d8] sm:$0xff]
        %v811 = vld [vmem:[%s458 + $0x4e0] sm:$0xff]
        %v812 = vld [vmem:[%s458 + $0x4e8] sm:$0xff]
        %v813 = vld [vmem:[%s458 + $0x4f0] sm:$0xff]
        %v814 = vld [vmem:[%s458 + $0x4f8] sm:$0xff]
        %v815 = vunpack.c.l.s8.bf16 %v655
        %v816 = vunpack.c.l.s8.bf16 %v656
        %v817 = vunpack.c.l.s8.bf16 %v657
        %v818 = vunpack.c.l.s8.bf16 %v658
        %v819 = vunpack.c.l.s8.bf16 %v659
        %v820 = vunpack.c.l.s8.bf16 %v660
        %v821 = vunpack.c.l.s8.bf16 %v661
        %v822 = vunpack.c.l.s8.bf16 %v662
        %v823 = vunpack.c.h.s8.bf16 %v655
        %v824 = vunpack.c.h.s8.bf16 %v656
        %v825 = vunpack.c.h.s8.bf16 %v657
        %v826 = vunpack.c.h.s8.bf16 %v658
        %v827 = vunpack.c.h.s8.bf16 %v659
        %v828 = vunpack.c.h.s8.bf16 %v660
        %v829 = vunpack.c.h.s8.bf16 %v661
        %v830 = vunpack.c.h.s8.bf16 %v662
        %v831 = vunpack.c.l.s8.bf16 %v663
        %v832 = vunpack.c.l.s8.bf16 %v664
        %v833 = vunpack.c.l.s8.bf16 %v665
        %v834 = vunpack.c.l.s8.bf16 %v666
        %v835 = vunpack.c.l.s8.bf16 %v667
        %v836 = vunpack.c.l.s8.bf16 %v668
        %v837 = vunpack.c.l.s8.bf16 %v669
        %v838 = vunpack.c.l.s8.bf16 %v670
        %v839 = vunpack.c.h.s8.bf16 %v663
        %v840 = vunpack.c.h.s8.bf16 %v664
        %v841 = vunpack.c.h.s8.bf16 %v665
        %v842 = vunpack.c.h.s8.bf16 %v666
        %v843 = vunpack.c.h.s8.bf16 %v667
        %v844 = vunpack.c.h.s8.bf16 %v668
        %v845 = vunpack.c.h.s8.bf16 %v669
        %v846 = vunpack.c.h.s8.bf16 %v670
        %v847 = vunpack.c.l.s8.bf16 %v671
        %v848 = vunpack.c.l.s8.bf16 %v672
        %v849 = vunpack.c.l.s8.bf16 %v673
        %v850 = vunpack.c.l.s8.bf16 %v674
        %v851 = vunpack.c.l.s8.bf16 %v675
        %v852 = vunpack.c.l.s8.bf16 %v676
        %v853 = vunpack.c.l.s8.bf16 %v677
        %v854 = vunpack.c.l.s8.bf16 %v678
        %v855 = vunpack.c.h.s8.bf16 %v671
        %v856 = vunpack.c.h.s8.bf16 %v672
        %v857 = vunpack.c.h.s8.bf16 %v673
        %v858 = vunpack.c.h.s8.bf16 %v674
        %v859 = vunpack.c.h.s8.bf16 %v675
        %v860 = vunpack.c.h.s8.bf16 %v676
        %v861 = vunpack.c.h.s8.bf16 %v677
        %v862 = vunpack.c.h.s8.bf16 %v678
        %v863 = vunpack.c.l.s8.bf16 %v679
        %v864 = vunpack.c.l.s8.bf16 %v680
        %v865 = vunpack.c.l.s8.bf16 %v681
        %v866 = vunpack.c.l.s8.bf16 %v682
        %v867 = vunpack.c.l.s8.bf16 %v683
        %v868 = vunpack.c.l.s8.bf16 %v684
        %v869 = vunpack.c.l.s8.bf16 %v685
        %v870 = vunpack.c.l.s8.bf16 %v686
        %v871 = vunpack.c.h.s8.bf16 %v679
        %v872 = vunpack.c.h.s8.bf16 %v680
        %v873 = vunpack.c.h.s8.bf16 %v681
        %v874 = vunpack.c.h.s8.bf16 %v682
        %v875 = vunpack.c.h.s8.bf16 %v683
        %v876 = vunpack.c.h.s8.bf16 %v684
        %v877 = vunpack.c.h.s8.bf16 %v685
        %v878 = vunpack.c.h.s8.bf16 %v686
        %v879 = vunpack.c.l.s8.bf16 %v687
        %v880 = vunpack.c.l.s8.bf16 %v688
        %v881 = vunpack.c.l.s8.bf16 %v689
        %v882 = vunpack.c.l.s8.bf16 %v690
        %v883 = vunpack.c.l.s8.bf16 %v691
        %v884 = vunpack.c.l.s8.bf16 %v692
        %v885 = vunpack.c.l.s8.bf16 %v693
        %v886 = vunpack.c.l.s8.bf16 %v694
        %v887 = vunpack.c.h.s8.bf16 %v687
        %v888 = vunpack.c.h.s8.bf16 %v688
        %v889 = vunpack.c.h.s8.bf16 %v689
        %v890 = vunpack.c.h.s8.bf16 %v690
        %v891 = vunpack.c.h.s8.bf16 %v691
        %v892 = vunpack.c.h.s8.bf16 %v692
        %v893 = vunpack.c.h.s8.bf16 %v693
        %v894 = vunpack.c.h.s8.bf16 %v694
        %v895 = vunpack.c.l.s8.bf16 %v695
        %v896 = vunpack.c.l.s8.bf16 %v696
        %v897 = vunpack.c.l.s8.bf16 %v697
        %v898 = vunpack.c.l.s8.bf16 %v698
        %v899 = vunpack.c.l.s8.bf16 %v699
        %v900 = vunpack.c.l.s8.bf16 %v700
        %v901 = vunpack.c.l.s8.bf16 %v701
        %v902 = vunpack.c.l.s8.bf16 %v702
        %v903 = vunpack.c.h.s8.bf16 %v695
        %v904 = vunpack.c.h.s8.bf16 %v696
        %v905 = vunpack.c.h.s8.bf16 %v697
        %v906 = vunpack.c.h.s8.bf16 %v698
        %v907 = vunpack.c.h.s8.bf16 %v699
        %v908 = vunpack.c.h.s8.bf16 %v700
        %v909 = vunpack.c.h.s8.bf16 %v701
        %v910 = vunpack.c.h.s8.bf16 %v702
        %v911 = vunpack.c.l.s8.bf16 %v703
        %v912 = vunpack.c.l.s8.bf16 %v704
        %v913 = vunpack.c.l.s8.bf16 %v705
        %v914 = vunpack.c.l.s8.bf16 %v706
        %v915 = vunpack.c.l.s8.bf16 %v707
        %v916 = vunpack.c.l.s8.bf16 %v708
        %v917 = vunpack.c.l.s8.bf16 %v709
        %v918 = vunpack.c.l.s8.bf16 %v710
        %v919 = vunpack.c.h.s8.bf16 %v703
        %v920 = vunpack.c.h.s8.bf16 %v704
        %v921 = vunpack.c.h.s8.bf16 %v705
        %v922 = vunpack.c.h.s8.bf16 %v706
        %v923 = vunpack.c.h.s8.bf16 %v707
        %v924 = vunpack.c.h.s8.bf16 %v708
        %v925 = vunpack.c.h.s8.bf16 %v709
        %v926 = vunpack.c.h.s8.bf16 %v710
        %v927 = vunpack.c.l.s8.bf16 %v711
        %v928 = vunpack.c.l.s8.bf16 %v712
        %v929 = vunpack.c.l.s8.bf16 %v713
        %v930 = vunpack.c.l.s8.bf16 %v714
        %v931 = vunpack.c.l.s8.bf16 %v715
        %v932 = vunpack.c.l.s8.bf16 %v716
        %v933 = vunpack.c.l.s8.bf16 %v717
        %v934 = vunpack.c.l.s8.bf16 %v718
        %v935 = vunpack.c.h.s8.bf16 %v711
        %v936 = vunpack.c.h.s8.bf16 %v712
        %v937 = vunpack.c.h.s8.bf16 %v713
        %v938 = vunpack.c.h.s8.bf16 %v714
        %v939 = vunpack.c.h.s8.bf16 %v715
        %v940 = vunpack.c.h.s8.bf16 %v716
        %v941 = vunpack.c.h.s8.bf16 %v717
        %v942 = vunpack.c.h.s8.bf16 %v718
        %v943 = vunpack.c.l.s8.bf16 %v719
        %v944 = vunpack.c.l.s8.bf16 %v720
        %v945 = vunpack.c.l.s8.bf16 %v721
        %v946 = vunpack.c.l.s8.bf16 %v722
        %v947 = vunpack.c.l.s8.bf16 %v723
        %v948 = vunpack.c.l.s8.bf16 %v724
        %v949 = vunpack.c.l.s8.bf16 %v725
        %v950 = vunpack.c.l.s8.bf16 %v726
        %v951 = vunpack.c.h.s8.bf16 %v719
        %v952 = vunpack.c.h.s8.bf16 %v720
        %v953 = vunpack.c.h.s8.bf16 %v721
        %v954 = vunpack.c.h.s8.bf16 %v722
        %v955 = vunpack.c.h.s8.bf16 %v723
        %v956 = vunpack.c.h.s8.bf16 %v724
        %v957 = vunpack.c.h.s8.bf16 %v725
        %v958 = vunpack.c.h.s8.bf16 %v726
        %v959 = vunpack.c.l.s8.bf16 %v727
        %v960 = vunpack.c.l.s8.bf16 %v728
        %v961 = vunpack.c.l.s8.bf16 %v729
        %v962 = vunpack.c.l.s8.bf16 %v730
        %v963 = vunpack.c.l.s8.bf16 %v731
        %v964 = vunpack.c.l.s8.bf16 %v732
        %v965 = vunpack.c.l.s8.bf16 %v733
        %v966 = vunpack.c.l.s8.bf16 %v734
        %v967 = vunpack.c.h.s8.bf16 %v727
        %v968 = vunpack.c.h.s8.bf16 %v728
        %v969 = vunpack.c.h.s8.bf16 %v729
        %v970 = vunpack.c.h.s8.bf16 %v730
        %v971 = vunpack.c.h.s8.bf16 %v731
        %v972 = vunpack.c.h.s8.bf16 %v732
        %v973 = vunpack.c.h.s8.bf16 %v733
        %v974 = vunpack.c.h.s8.bf16 %v734
        %v975 = vunpack.c.l.s8.bf16 %v735
        %v976 = vunpack.c.l.s8.bf16 %v736
        %v977 = vunpack.c.l.s8.bf16 %v737
        %v978 = vunpack.c.l.s8.bf16 %v738
        %v979 = vunpack.c.l.s8.bf16 %v739
        %v980 = vunpack.c.l.s8.bf16 %v740
        %v981 = vunpack.c.l.s8.bf16 %v741
        %v982 = vunpack.c.l.s8.bf16 %v742
        %v983 = vunpack.c.h.s8.bf16 %v735
        %v984 = vunpack.c.h.s8.bf16 %v736
        %v985 = vunpack.c.h.s8.bf16 %v737
        %v986 = vunpack.c.h.s8.bf16 %v738
        %v987 = vunpack.c.h.s8.bf16 %v739
        %v988 = vunpack.c.h.s8.bf16 %v740
        %v989 = vunpack.c.h.s8.bf16 %v741
        %v990 = vunpack.c.h.s8.bf16 %v742
        %v991 = vunpack.c.l.s8.bf16 %v743
        %v992 = vunpack.c.l.s8.bf16 %v744
        %v993 = vunpack.c.l.s8.bf16 %v745
        %v994 = vunpack.c.l.s8.bf16 %v746
        %v995 = vunpack.c.l.s8.bf16 %v747
        %v996 = vunpack.c.l.s8.bf16 %v748
        %v997 = vunpack.c.l.s8.bf16 %v749
        %v998 = vunpack.c.l.s8.bf16 %v750
        %v999 = vunpack.c.h.s8.bf16 %v743
        %v1000 = vunpack.c.h.s8.bf16 %v744
        %v1001 = vunpack.c.h.s8.bf16 %v745
        %v1002 = vunpack.c.h.s8.bf16 %v746
        %v1003 = vunpack.c.h.s8.bf16 %v747
        %v1004 = vunpack.c.h.s8.bf16 %v748
        %v1005 = vunpack.c.h.s8.bf16 %v749
        %v1006 = vunpack.c.h.s8.bf16 %v750
        %v1007 = vunpack.c.l.s8.bf16 %v751
        %v1008 = vunpack.c.l.s8.bf16 %v752
        %v1009 = vunpack.c.l.s8.bf16 %v753
        %v1010 = vunpack.c.l.s8.bf16 %v754
        %v1011 = vunpack.c.l.s8.bf16 %v755
        %v1012 = vunpack.c.l.s8.bf16 %v756
        %v1013 = vunpack.c.l.s8.bf16 %v757
        %v1014 = vunpack.c.l.s8.bf16 %v758
        %v1015 = vunpack.c.h.s8.bf16 %v751
        %v1016 = vunpack.c.h.s8.bf16 %v752
        %v1017 = vunpack.c.h.s8.bf16 %v753
        %v1018 = vunpack.c.h.s8.bf16 %v754
        %v1019 = vunpack.c.h.s8.bf16 %v755
        %v1020 = vunpack.c.h.s8.bf16 %v756
        %v1021 = vunpack.c.h.s8.bf16 %v757
        %v1022 = vunpack.c.h.s8.bf16 %v758
        %v1023 = vunpack.c.l.s8.bf16 %v759
        %v1024 = vunpack.c.l.s8.bf16 %v760
        %v1025 = vunpack.c.l.s8.bf16 %v761
        %v1026 = vunpack.c.l.s8.bf16 %v762
        %v1027 = vunpack.c.l.s8.bf16 %v763
        %v1028 = vunpack.c.l.s8.bf16 %v764
        %v1029 = vunpack.c.l.s8.bf16 %v765
        %v1030 = vunpack.c.l.s8.bf16 %v766
        %v1031 = vunpack.c.h.s8.bf16 %v759
        %v1032 = vunpack.c.h.s8.bf16 %v760
        %v1033 = vunpack.c.h.s8.bf16 %v761
        %v1034 = vunpack.c.h.s8.bf16 %v762
        %v1035 = vunpack.c.h.s8.bf16 %v763
        %v1036 = vunpack.c.h.s8.bf16 %v764
        %v1037 = vunpack.c.h.s8.bf16 %v765
        %v1038 = vunpack.c.h.s8.bf16 %v766
        %v1039 = vunpack.c.l.s8.bf16 %v767
        %v1040 = vunpack.c.l.s8.bf16 %v768
        %v1041 = vunpack.c.l.s8.bf16 %v769
        %v1042 = vunpack.c.l.s8.bf16 %v770
        %v1043 = vunpack.c.l.s8.bf16 %v771
        %v1044 = vunpack.c.l.s8.bf16 %v772
        %v1045 = vunpack.c.l.s8.bf16 %v773
        %v1046 = vunpack.c.l.s8.bf16 %v774
        %v1047 = vunpack.c.h.s8.bf16 %v767
        %v1048 = vunpack.c.h.s8.bf16 %v768
        %v1049 = vunpack.c.h.s8.bf16 %v769
        %v1050 = vunpack.c.h.s8.bf16 %v770
        %v1051 = vunpack.c.h.s8.bf16 %v771
        %v1052 = vunpack.c.h.s8.bf16 %v772
        %v1053 = vunpack.c.h.s8.bf16 %v773
        %v1054 = vunpack.c.h.s8.bf16 %v774
        %v1055 = vunpack.c.l.s8.bf16 %v775
        %v1056 = vunpack.c.l.s8.bf16 %v776
        %v1057 = vunpack.c.l.s8.bf16 %v777
        %v1058 = vunpack.c.l.s8.bf16 %v778
        %v1059 = vunpack.c.l.s8.bf16 %v779
        %v1060 = vunpack.c.l.s8.bf16 %v780
        %v1061 = vunpack.c.l.s8.bf16 %v781
        %v1062 = vunpack.c.l.s8.bf16 %v782
        %v1063 = vunpack.c.h.s8.bf16 %v775
        %v1064 = vunpack.c.h.s8.bf16 %v776
        %v1065 = vunpack.c.h.s8.bf16 %v777
        %v1066 = vunpack.c.h.s8.bf16 %v778
        %v1067 = vunpack.c.h.s8.bf16 %v779
        %v1068 = vunpack.c.h.s8.bf16 %v780
        %v1069 = vunpack.c.h.s8.bf16 %v781
        %v1070 = vunpack.c.h.s8.bf16 %v782
        %v1071 = vunpack.c.l.s8.bf16 %v783
        %v1072 = vunpack.c.l.s8.bf16 %v784
        %v1073 = vunpack.c.l.s8.bf16 %v785
        %v1074 = vunpack.c.l.s8.bf16 %v786
        %v1075 = vunpack.c.l.s8.bf16 %v787
        %v1076 = vunpack.c.l.s8.bf16 %v788
        %v1077 = vunpack.c.l.s8.bf16 %v789
        %v1078 = vunpack.c.l.s8.bf16 %v790
        %v1079 = vunpack.c.h.s8.bf16 %v783
        %v1080 = vunpack.c.h.s8.bf16 %v784
        %v1081 = vunpack.c.h.s8.bf16 %v785
        %v1082 = vunpack.c.h.s8.bf16 %v786
        %v1083 = vunpack.c.h.s8.bf16 %v787
        %v1084 = vunpack.c.h.s8.bf16 %v788
        %v1085 = vunpack.c.h.s8.bf16 %v789
        %v1086 = vunpack.c.h.s8.bf16 %v790
        %v1087 = vunpack.c.l.s8.bf16 %v791
        %v1088 = vunpack.c.l.s8.bf16 %v792
        %v1089 = vunpack.c.l.s8.bf16 %v793
        %v1090 = vunpack.c.l.s8.bf16 %v794
        %v1091 = vunpack.c.l.s8.bf16 %v795
        %v1092 = vunpack.c.l.s8.bf16 %v796
        %v1093 = vunpack.c.l.s8.bf16 %v797
        %v1094 = vunpack.c.l.s8.bf16 %v798
        %v1095 = vunpack.c.h.s8.bf16 %v791
        %v1096 = vunpack.c.h.s8.bf16 %v792
        %v1097 = vunpack.c.h.s8.bf16 %v793
        %v1098 = vunpack.c.h.s8.bf16 %v794
        %v1099 = vunpack.c.h.s8.bf16 %v795
        %v1100 = vunpack.c.h.s8.bf16 %v796
        %v1101 = vunpack.c.h.s8.bf16 %v797
        %v1102 = vunpack.c.h.s8.bf16 %v798
        %v1103 = vunpack.c.l.s8.bf16 %v799
        %v1104 = vunpack.c.l.s8.bf16 %v800
        %v1105 = vunpack.c.l.s8.bf16 %v801
        %v1106 = vunpack.c.l.s8.bf16 %v802
        %v1107 = vunpack.c.l.s8.bf16 %v803
        %v1108 = vunpack.c.l.s8.bf16 %v804
        %v1109 = vunpack.c.l.s8.bf16 %v805
        %v1110 = vunpack.c.l.s8.bf16 %v806
        %v1111 = vunpack.c.h.s8.bf16 %v799
        %v1112 = vunpack.c.h.s8.bf16 %v800
        %v1113 = vunpack.c.h.s8.bf16 %v801
        %v1114 = vunpack.c.h.s8.bf16 %v802
        %v1115 = vunpack.c.h.s8.bf16 %v803
        %v1116 = vunpack.c.h.s8.bf16 %v804
        %v1117 = vunpack.c.h.s8.bf16 %v805
        %v1118 = vunpack.c.h.s8.bf16 %v806
        %v1119 = vunpack.c.l.s8.bf16 %v807
        %v1120 = vunpack.c.l.s8.bf16 %v808
        %v1121 = vunpack.c.l.s8.bf16 %v809
        %v1122 = vunpack.c.l.s8.bf16 %v810
        %v1123 = vunpack.c.l.s8.bf16 %v811
        %v1124 = vunpack.c.l.s8.bf16 %v812
        %v1125 = vunpack.c.l.s8.bf16 %v813
        %v1126 = vunpack.c.l.s8.bf16 %v814
        %v1127 = vunpack.c.h.s8.bf16 %v807
        %v1128 = vunpack.c.h.s8.bf16 %v808
        %v1129 = vunpack.c.h.s8.bf16 %v809
        %v1130 = vunpack.c.h.s8.bf16 %v810
        %v1131 = vunpack.c.h.s8.bf16 %v811
        %v1132 = vunpack.c.h.s8.bf16 %v812
        %v1133 = vunpack.c.h.s8.bf16 %v813
        %v1134 = vunpack.c.h.s8.bf16 %v814
        %v1135 = vld [vmem:[#allocation2] sm:$0xff]
        %v1136 = vld [vmem:[#allocation2 + $0x8] sm:$0xff]
        %v1137 = vld [vmem:[#allocation2 + $0x10] sm:$0xff]
        %v1138 = vld [vmem:[#allocation2 + $0x18] sm:$0xff]
        %v1139 = vld [vmem:[#allocation2 + $0x20] sm:$0xff]
        %v1140 = vld [vmem:[#allocation2 + $0x28] sm:$0xff]
        %v1141 = vld [vmem:[#allocation2 + $0x30] sm:$0xff]
        %v1142 = vld [vmem:[#allocation2 + $0x38] sm:$0xff]
        %v1143 = vld [vmem:[%s572] sm:$0xff]
        %v1144 = vld [vmem:[%s572 + $0x8] sm:$0xff]
        %v1145 = vld [vmem:[%s572 + $0x10] sm:$0xf]
        %v1149 = vunpack.c.l.b16 %v1143
        %v1150 = vunpack.c.h.b16 %v1143
        %v1151 = vunpack.c.l.b16 %v1144
        %v1152 = vunpack.c.h.b16 %v1144
        %v1153 = vunpack.c.l.b16 %v1145
        %v1154 = vpack.c.b16 %v1149, %v1149
        %v1155 = vpack.c.b16 %v1150, %v1150
        %v1156 = vpack.c.b16 %v1151, %v1151
        %v1157 = vpack.c.b16 %v1152, %v1152
        %v1158 = vpack.c.b16 %v1153, %v1153
        %1164 = vmatprep.subr.bf16.mxu0 %v816
        %1165 = vmatpush1.bf16.msra.mxu0 %v815
        %1166 = vmatprep.subr.bf16.mxu0 %v824
        %1167 = vmatpush1.bf16.msra.mxu0 %v823
        %1168 = vmatprep.subr.bf16.mxu0 %v832
        %1169 = vmatpush1.bf16.msra.mxu0 %v831
        %1170 = vmatprep.subr.bf16.mxu0 %v840
        %1171 = vmatpush1.bf16.msra.mxu0 %v839
        %1172 = vmatprep.subr.bf16.mxu0 %v848
        %1173 = vmatpush1.bf16.msra.mxu0 %v847
        %1174 = vmatprep.subr.bf16.mxu0 %v856
        %1175 = vmatpush1.bf16.msra.mxu0 %v855
        %1176 = vmatprep.subr.bf16.mxu0 %v864
        %1177 = vmatpush1.bf16.msra.mxu0 %v863
        %1178 = vmatprep.subr.bf16.mxu0 %v872
        %1179 = vmatpush1.bf16.msra.mxu0 %v871
        %1180 = vmatprep.subr.bf16.mxu0 %v880
        %1181 = vmatpush1.bf16.msra.mxu0 %v879
        %1182 = vmatprep.subr.bf16.mxu0 %v888
        %1183 = vmatpush1.bf16.msra.mxu0 %v887
        %1184 = vmatprep.subr.bf16.mxu0 %v896
        %1185 = vmatpush1.bf16.msra.mxu0 %v895
        %1186 = vmatprep.subr.bf16.mxu0 %v904
        %1187 = vmatpush1.bf16.msra.mxu0 %v903
        %1188 = vmatprep.subr.bf16.mxu0 %v912
        %1189 = vmatpush1.bf16.msra.mxu0 %v911
        %1190 = vmatprep.subr.bf16.mxu0 %v920
        %1191 = vmatpush1.bf16.msra.mxu0 %v919
        %1192 = vmatprep.subr.bf16.mxu0 %v928
        %1193 = vmatpush1.bf16.msra.mxu0 %v927
        %1194 = vmatprep.subr.bf16.mxu0 %v936
        %1195 = vmatpush1.bf16.msra.mxu0 %v935
        %1196 = vmatprep.mubr.bf16.mxu0 %v1155
        %1197 = vmatmul.mubr.bf16.gmra.mrb[0].mxu0 %v1154
        %v1198 = vpop.f32.mrb[0].mxu0
        %v1199 = vadd.f32 0.0, %v1198
        %v1200 = vpop.f32.mrb[0].mxu0
        %v1201 = vadd.f32 0.0, %v1200
        %v1202 = vpop.f32.mrb[0].mxu0
        %v1203 = vpop.f32.mrb[0].mxu0
        %1204 = vdwg.mxu0
        %1205 = vmatprep.subr.bf16.mxu0 %v944
        %1206 = vmatpush1.bf16.msra.mxu0 %v943
        %1207 = vmatprep.subr.bf16.mxu0 %v952
        %1208 = vmatpush1.bf16.msra.mxu0 %v951
        %1209 = vmatprep.subr.bf16.mxu0 %v960
        %1210 = vmatpush1.bf16.msra.mxu0 %v959
        %1211 = vmatprep.subr.bf16.mxu0 %v968
        %1212 = vmatpush1.bf16.msra.mxu0 %v967
        %1213 = vmatprep.subr.bf16.mxu0 %v976
        %1214 = vmatpush1.bf16.msra.mxu0 %v975
        %1215 = vmatprep.subr.bf16.mxu0 %v984
        %1216 = vmatpush1.bf16.msra.mxu0 %v983
        %1217 = vmatprep.subr.bf16.mxu0 %v992
        %1218 = vmatpush1.bf16.msra.mxu0 %v991
        %1219 = vmatprep.subr.bf16.mxu0 %v1000
        %1220 = vmatpush1.bf16.msra.mxu0 %v999
        %1221 = vmatprep.subr.bf16.mxu0 %v1008
        %1222 = vmatpush1.bf16.msra.mxu0 %v1007
        %1223 = vmatprep.subr.bf16.mxu0 %v1016
        %1224 = vmatpush1.bf16.msra.mxu0 %v1015
        %1225 = vmatprep.subr.bf16.mxu0 %v1024
        %1226 = vmatpush1.bf16.msra.mxu0 %v1023
        %1227 = vmatprep.subr.bf16.mxu0 %v1032
        %1228 = vmatpush1.bf16.msra.mxu0 %v1031
        %1229 = vmatprep.subr.bf16.mxu0 %v1040
        %1230 = vmatpush1.bf16.msra.mxu0 %v1039
        %1231 = vmatprep.subr.bf16.mxu0 %v1048
        %1232 = vmatpush1.bf16.msra.mxu0 %v1047
        %1233 = vmatprep.subr.bf16.mxu0 %v1056
        %1234 = vmatpush1.bf16.msra.mxu0 %v1055
        %1235 = vmatprep.subr.bf16.mxu0 %v1064
        %1236 = vmatpush1.bf16.msra.mxu0 %v1063
        %1237 = vmatprep.mubr.bf16.mxu0 %v1157
        %1238 = vmatmul.mubr.bf16.gmra.mrb[0].mxu0 %v1156
        %v1239 = vpop.f32.mrb[0].mxu0
        %v1240 = vadd.f32 %v1199, %v1239
        %v1241 = vpop.f32.mrb[0].mxu0
        %v1242 = vadd.f32 %v1201, %v1241
        %v1243 = vpop.f32.mrb[0].mxu0
        %v1244 = vpop.f32.mrb[0].mxu0
        %1245 = vdwg.mxu0
        %1246 = vmatprep.subr.bf16.mxu0 %v1072
        %1247 = vmatpush1.bf16.msra.mxu0 %v1071
        %1248 = vmatprep.subr.bf16.mxu0 %v1080
        %1249 = vmatpush1.bf16.msra.mxu0 %v1079
        %1250 = vmatprep.subr.bf16.mxu0 %v1088
        %1251 = vmatpush1.bf16.msra.mxu0 %v1087
        %1252 = vmatprep.subr.bf16.mxu0 %v1096
        %1253 = vmatpush1.bf16.msra.mxu0 %v1095
        %1254 = vmatprep.subr.bf16.mxu0 %v1104
        %1255 = vmatpush1.bf16.msra.mxu0 %v1103
        %1256 = vmatprep.subr.bf16.mxu0 %v1112
        %1257 = vmatpush1.bf16.msra.mxu0 %v1111
        %1258 = vmatprep.subr.bf16.mxu0 %v1120
        %1259 = vmatpush1.bf16.msra.mxu0 %v1119
        %1260 = vmatprep.subr.bf16.mxu0 %v1128
        %1261 = vmatpush1.bf16.msra.mxu0 %v1127
        %1262 = vmatprep.subr.bf16.mxu0 0
        %1263 = vmatpush1.bf16.msra.mxu0 0
        %1264 = vmatprep.subr.bf16.mxu0 0
        %1265 = vmatpush1.bf16.msra.mxu0 0
        %1266 = vmatprep.subr.bf16.mxu0 0
        %1267 = vmatpush1.bf16.msra.mxu0 0
        %1268 = vmatprep.subr.bf16.mxu0 0
        %1269 = vmatpush1.bf16.msra.mxu0 0
        %1270 = vmatprep.subr.bf16.mxu0 0
        %1271 = vmatpush1.bf16.msra.mxu0 0
        %1272 = vmatprep.subr.bf16.mxu0 0
        %1273 = vmatpush1.bf16.msra.mxu0 0
        %1274 = vmatprep.subr.bf16.mxu0 0
        %1275 = vmatpush1.bf16.msra.mxu0 0
        %1276 = vmatprep.subr.bf16.mxu0 0
        %1277 = vmatpush1.bf16.msra.mxu0 0
        %1278 = vmatprep.mubr.bf16.mxu0 0
        %1279 = vmatmul.mubr.bf16.gmra.mrb[0].mxu0 %v1158
        %v1280 = vpop.f32.mrb[0].mxu0
        %v1281 = vadd.f32 %v1240, %v1280
        %v1282 = vpop.f32.mrb[0].mxu0
        %v1283 = vadd.f32 %v1242, %v1282
        %v1284 = vpop.f32.mrb[0].mxu0
        %v1285 = vpop.f32.mrb[0].mxu0
        %1286 = vdwg.mxu0
        %1287 = vmatprep.subr.bf16.mxu0 %v818
        %1288 = vmatpush1.bf16.msra.mxu0 %v817
        %1289 = vmatprep.subr.bf16.mxu0 %v826
        %1290 = vmatpush1.bf16.msra.mxu0 %v825
        %1291 = vmatprep.subr.bf16.mxu0 %v834
        %1292 = vmatpush1.bf16.msra.mxu0 %v833
        %1293 = vmatprep.subr.bf16.mxu0 %v842
        %1294 = vmatpush1.bf16.msra.mxu0 %v841
        %1295 = vmatprep.subr.bf16.mxu0 %v850
        %1296 = vmatpush1.bf16.msra.mxu0 %v849
        %1297 = vmatprep.subr.bf16.mxu0 %v858
        %1298 = vmatpush1.bf16.msra.mxu0 %v857
        %1299 = vmatprep.subr.bf16.mxu0 %v866
        %1300 = vmatpush1.bf16.msra.mxu0 %v865
        %1301 = vmatprep.subr.bf16.mxu0 %v874
        %1302 = vmatpush1.bf16.msra.mxu0 %v873
        %1303 = vmatprep.subr.bf16.mxu0 %v882
        %1304 = vmatpush1.bf16.msra.mxu0 %v881
        %1305 = vmatprep.subr.bf16.mxu0 %v890
        %1306 = vmatpush1.bf16.msra.mxu0 %v889
        %1307 = vmatprep.subr.bf16.mxu0 %v898
        %1308 = vmatpush1.bf16.msra.mxu0 %v897
        %1309 = vmatprep.subr.bf16.mxu0 %v906
        %1310 = vmatpush1.bf16.msra.mxu0 %v905
        %1311 = vmatprep.subr.bf16.mxu0 %v914
        %1312 = vmatpush1.bf16.msra.mxu0 %v913
        %1313 = vmatprep.subr.bf16.mxu0 %v922
        %1314 = vmatpush1.bf16.msra.mxu0 %v921
        %1315 = vmatprep.subr.bf16.mxu0 %v930
        %1316 = vmatpush1.bf16.msra.mxu0 %v929
        %1317 = vmatprep.subr.bf16.mxu0 %v938
        %1318 = vmatpush1.bf16.msra.mxu0 %v937
        %1319 = vmatprep.mubr.bf16.mxu0 %v1155
        %1320 = vmatmul.mubr.bf16.gmra.mrb[0].mxu0 %v1154
        %v1321 = vpop.f32.mrb[0].mxu0
        %v1322 = vadd.f32 0.0, %v1321
        %v1323 = vpop.f32.mrb[0].mxu0
        %v1324 = vadd.f32 0.0, %v1323
        %v1325 = vpop.f32.mrb[0].mxu0
        %v1326 = vpop.f32.mrb[0].mxu0
        %1327 = vdwg.mxu0
        %1328 = vmatprep.subr.bf16.mxu0 %v946
        %1329 = vmatpush1.bf16.msra.mxu0 %v945
        %1330 = vmatprep.subr.bf16.mxu0 %v954
        %1331 = vmatpush1.bf16.msra.mxu0 %v953
        %1332 = vmatprep.subr.bf16.mxu0 %v962
        %1333 = vmatpush1.bf16.msra.mxu0 %v961
        %1334 = vmatprep.subr.bf16.mxu0 %v970
        %1335 = vmatpush1.bf16.msra.mxu0 %v969
        %1336 = vmatprep.subr.bf16.mxu0 %v978
        %1337 = vmatpush1.bf16.msra.mxu0 %v977
        %1338 = vmatprep.subr.bf16.mxu0 %v986
        %1339 = vmatpush1.bf16.msra.mxu0 %v985
        %1340 = vmatprep.subr.bf16.mxu0 %v994
        %1341 = vmatpush1.bf16.msra.mxu0 %v993
        %1342 = vmatprep.subr.bf16.mxu0 %v1002
        %1343 = vmatpush1.bf16.msra.mxu0 %v1001
        %1344 = vmatprep.subr.bf16.mxu0 %v1010
        %1345 = vmatpush1.bf16.msra.mxu0 %v1009
        %1346 = vmatprep.subr.bf16.mxu0 %v1018
        %1347 = vmatpush1.bf16.msra.mxu0 %v1017
        %1348 = vmatprep.subr.bf16.mxu0 %v1026
        %1349 = vmatpush1.bf16.msra.mxu0 %v1025
        %1350 = vmatprep.subr.bf16.mxu0 %v1034
        %1351 = vmatpush1.bf16.msra.mxu0 %v1033
        %1352 = vmatprep.subr.bf16.mxu0 %v1042
        %1353 = vmatpush1.bf16.msra.mxu0 %v1041
        %1354 = vmatprep.subr.bf16.mxu0 %v1050
        %1355 = vmatpush1.bf16.msra.mxu0 %v1049
        %1356 = vmatprep.subr.bf16.mxu0 %v1058
        %1357 = vmatpush1.bf16.msra.mxu0 %v1057
        %1358 = vmatprep.subr.bf16.mxu0 %v1066
        %1359 = vmatpush1.bf16.msra.mxu0 %v1065
        %1360 = vmatprep.mubr.bf16.mxu0 %v1157
        %1361 = vmatmul.mubr.bf16.gmra.mrb[0].mxu0 %v1156
        %v1362 = vpop.f32.mrb[0].mxu0
        %v1363 = vadd.f32 %v1322, %v1362
        %v1364 = vpop.f32.mrb[0].mxu0
        %v1365 = vadd.f32 %v1324, %v1364
        %v1366 = vpop.f32.mrb[0].mxu0
        %v1367 = vpop.f32.mrb[0].mxu0
        %1368 = vdwg.mxu0
        %1369 = vmatprep.subr.bf16.mxu0 %v1074
        %1370 = vmatpush1.bf16.msra.mxu0 %v1073
        %1371 = vmatprep.subr.bf16.mxu0 %v1082
        %1372 = vmatpush1.bf16.msra.mxu0 %v1081
        %1373 = vmatprep.subr.bf16.mxu0 %v1090
        %1374 = vmatpush1.bf16.msra.mxu0 %v1089
        %1375 = vmatprep.subr.bf16.mxu0 %v1098
        %1376 = vmatpush1.bf16.msra.mxu0 %v1097
        %1377 = vmatprep.subr.bf16.mxu0 %v1106
        %1378 = vmatpush1.bf16.msra.mxu0 %v1105
        %1379 = vmatprep.subr.bf16.mxu0 %v1114
        %1380 = vmatpush1.bf16.msra.mxu0 %v1113
        %1381 = vmatprep.subr.bf16.mxu0 %v1122
        %1382 = vmatpush1.bf16.msra.mxu0 %v1121
        %1383 = vmatprep.subr.bf16.mxu0 %v1130
        %1384 = vmatpush1.bf16.msra.mxu0 %v1129
        %1385 = vmatprep.subr.bf16.mxu0 0
        %1386 = vmatpush1.bf16.msra.mxu0 0
        %1387 = vmatprep.subr.bf16.mxu0 0
        %1388 = vmatpush1.bf16.msra.mxu0 0
        %1389 = vmatprep.subr.bf16.mxu0 0
        %1390 = vmatpush1.bf16.msra.mxu0 0
        %1391 = vmatprep.subr.bf16.mxu0 0
        %1392 = vmatpush1.bf16.msra.mxu0 0
        %1393 = vmatprep.subr.bf16.mxu0 0
        %1394 = vmatpush1.bf16.msra.mxu0 0
        %1395 = vmatprep.subr.bf16.mxu0 0
        %1396 = vmatpush1.bf16.msra.mxu0 0
        %1397 = vmatprep.subr.bf16.mxu0 0
        %1398 = vmatpush1.bf16.msra.mxu0 0
        %1399 = vmatprep.subr.bf16.mxu0 0
        %1400 = vmatpush1.bf16.msra.mxu0 0
        %1401 = vmatprep.mubr.bf16.mxu0 0
        %1402 = vmatmul.mubr.bf16.gmra.mrb[0].mxu0 %v1158
        %v1403 = vpop.f32.mrb[0].mxu0
        %v1404 = vadd.f32 %v1363, %v1403
        %v1405 = vpop.f32.mrb[0].mxu0
        %v1406 = vadd.f32 %v1365, %v1405
        %v1407 = vpop.f32.mrb[0].mxu0
        %v1408 = vpop.f32.mrb[0].mxu0
        %1409 = vdwg.mxu0
        %1410 = vmatprep.subr.bf16.mxu0 %v820
        %1411 = vmatpush1.bf16.msra.mxu0 %v819
        %1412 = vmatprep.subr.bf16.mxu0 %v828
        %1413 = vmatpush1.bf16.msra.mxu0 %v827
        %1414 = vmatprep.subr.bf16.mxu0 %v836
        %1415 = vmatpush1.bf16.msra.mxu0 %v835
        %1416 = vmatprep.subr.bf16.mxu0 %v844
        %1417 = vmatpush1.bf16.msra.mxu0 %v843
        %1418 = vmatprep.subr.bf16.mxu0 %v852
        %1419 = vmatpush1.bf16.msra.mxu0 %v851
        %1420 = vmatprep.subr.bf16.mxu0 %v860
        %1421 = vmatpush1.bf16.msra.mxu0 %v859
        %1422 = vmatprep.subr.bf16.mxu0 %v868
        %1423 = vmatpush1.bf16.msra.mxu0 %v867
        %1424 = vmatprep.subr.bf16.mxu0 %v876
        %1425 = vmatpush1.bf16.msra.mxu0 %v875
        %1426 = vmatprep.subr.bf16.mxu0 %v884
        %1427 = vmatpush1.bf16.msra.mxu0 %v883
        %1428 = vmatprep.subr.bf16.mxu0 %v892
        %1429 = vmatpush1.bf16.msra.mxu0 %v891
        %1430 = vmatprep.subr.bf16.mxu0 %v900
        %1431 = vmatpush1.bf16.msra.mxu0 %v899
        %1432 = vmatprep.subr.bf16.mxu0 %v908
        %1433 = vmatpush1.bf16.msra.mxu0 %v907
        %1434 = vmatprep.subr.bf16.mxu0 %v916
        %1435 = vmatpush1.bf16.msra.mxu0 %v915
        %1436 = vmatprep.subr.bf16.mxu0 %v924
        %1437 = vmatpush1.bf16.msra.mxu0 %v923
        %1438 = vmatprep.subr.bf16.mxu0 %v932
        %1439 = vmatpush1.bf16.msra.mxu0 %v931
        %1440 = vmatprep.subr.bf16.mxu0 %v940
        %1441 = vmatpush1.bf16.msra.mxu0 %v939
        %1442 = vmatprep.mubr.bf16.mxu0 %v1155
        %1443 = vmatmul.mubr.bf16.gmra.mrb[0].mxu0 %v1154
        %v1444 = vpop.f32.mrb[0].mxu0
        %v1445 = vadd.f32 0.0, %v1444
        %v1446 = vpop.f32.mrb[0].mxu0
        %v1447 = vadd.f32 0.0, %v1446
        %v1448 = vpop.f32.mrb[0].mxu0
        %v1449 = vpop.f32.mrb[0].mxu0
        %1450 = vdwg.mxu0
        %1451 = vmatprep.subr.bf16.mxu0 %v948
        %1452 = vmatpush1.bf16.msra.mxu0 %v947
        %1453 = vmatprep.subr.bf16.mxu0 %v956
        %1454 = vmatpush1.bf16.msra.mxu0 %v955
        %1455 = vmatprep.subr.bf16.mxu0 %v964
        %1456 = vmatpush1.bf16.msra.mxu0 %v963
        %1457 = vmatprep.subr.bf16.mxu0 %v972
        %1458 = vmatpush1.bf16.msra.mxu0 %v971
        %1459 = vmatprep.subr.bf16.mxu0 %v980
        %1460 = vmatpush1.bf16.msra.mxu0 %v979
        %1461 = vmatprep.subr.bf16.mxu0 %v988
        %1462 = vmatpush1.bf16.msra.mxu0 %v987
        %1463 = vmatprep.subr.bf16.mxu0 %v996
        %1464 = vmatpush1.bf16.msra.mxu0 %v995
        %1465 = vmatprep.subr.bf16.mxu0 %v1004
        %1466 = vmatpush1.bf16.msra.mxu0 %v1003
        %1467 = vmatprep.subr.bf16.mxu0 %v1012
        %1468 = vmatpush1.bf16.msra.mxu0 %v1011
        %1469 = vmatprep.subr.bf16.mxu0 %v1020
        %1470 = vmatpush1.bf16.msra.mxu0 %v1019
        %1471 = vmatprep.subr.bf16.mxu0 %v1028
        %1472 = vmatpush1.bf16.msra.mxu0 %v1027
        %1473 = vmatprep.subr.bf16.mxu0 %v1036
        %1474 = vmatpush1.bf16.msra.mxu0 %v1035
        %1475 = vmatprep.subr.bf16.mxu0 %v1044
        %1476 = vmatpush1.bf16.msra.mxu0 %v1043
        %1477 = vmatprep.subr.bf16.mxu0 %v1052
        %1478 = vmatpush1.bf16.msra.mxu0 %v1051
        %1479 = vmatprep.subr.bf16.mxu0 %v1060
        %1480 = vmatpush1.bf16.msra.mxu0 %v1059
        %1481 = vmatprep.subr.bf16.mxu0 %v1068
        %1482 = vmatpush1.bf16.msra.mxu0 %v1067
        %1483 = vmatprep.mubr.bf16.mxu0 %v1157
        %1484 = vmatmul.mubr.bf16.gmra.mrb[0].mxu0 %v1156
        %v1485 = vpop.f32.mrb[0].mxu0
        %v1486 = vadd.f32 %v1445, %v1485
        %v1487 = vpop.f32.mrb[0].mxu0
        %v1488 = vadd.f32 %v1447, %v1487
        %v1489 = vpop.f32.mrb[0].mxu0
        %v1490 = vpop.f32.mrb[0].mxu0
        %1491 = vdwg.mxu0
        %1492 = vmatprep.subr.bf16.mxu0 %v1076
        %1493 = vmatpush1.bf16.msra.mxu0 %v1075
        %1494 = vmatprep.subr.bf16.mxu0 %v1084
        %1495 = vmatpush1.bf16.msra.mxu0 %v1083
        %1496 = vmatprep.subr.bf16.mxu0 %v1092
        %1497 = vmatpush1.bf16.msra.mxu0 %v1091
        %1498 = vmatprep.subr.bf16.mxu0 %v1100
        %1499 = vmatpush1.bf16.msra.mxu0 %v1099
        %1500 = vmatprep.subr.bf16.mxu0 %v1108
        %1501 = vmatpush1.bf16.msra.mxu0 %v1107
        %1502 = vmatprep.subr.bf16.mxu0 %v1116
        %1503 = vmatpush1.bf16.msra.mxu0 %v1115
        %1504 = vmatprep.subr.bf16.mxu0 %v1124
        %1505 = vmatpush1.bf16.msra.mxu0 %v1123
        %1506 = vmatprep.subr.bf16.mxu0 %v1132
        %1507 = vmatpush1.bf16.msra.mxu0 %v1131
        %1508 = vmatprep.subr.bf16.mxu0 0
        %1509 = vmatpush1.bf16.msra.mxu0 0
        %1510 = vmatprep.subr.bf16.mxu0 0
        %1511 = vmatpush1.bf16.msra.mxu0 0
        %1512 = vmatprep.subr.bf16.mxu0 0
        %1513 = vmatpush1.bf16.msra.mxu0 0
        %1514 = vmatprep.subr.bf16.mxu0 0
        %1515 = vmatpush1.bf16.msra.mxu0 0
        %1516 = vmatprep.subr.bf16.mxu0 0
        %1517 = vmatpush1.bf16.msra.mxu0 0
        %1518 = vmatprep.subr.bf16.mxu0 0
        %1519 = vmatpush1.bf16.msra.mxu0 0
        %1520 = vmatprep.subr.bf16.mxu0 0
        %1521 = vmatpush1.bf16.msra.mxu0 0
        %1522 = vmatprep.subr.bf16.mxu0 0
        %1523 = vmatpush1.bf16.msra.mxu0 0
        %1524 = vmatprep.mubr.bf16.mxu0 0
        %1525 = vmatmul.mubr.bf16.gmra.mrb[0].mxu0 %v1158
        %v1526 = vpop.f32.mrb[0].mxu0
        %v1527 = vadd.f32 %v1486, %v1526
        %v1528 = vpop.f32.mrb[0].mxu0
        %v1529 = vadd.f32 %v1488, %v1528
        %v1530 = vpop.f32.mrb[0].mxu0
        %v1531 = vpop.f32.mrb[0].mxu0
        %1532 = vdwg.mxu0
        %1533 = vmatprep.subr.bf16.mxu0 %v822
        %1534 = vmatpush1.bf16.msra.mxu0 %v821
        %1535 = vmatprep.subr.bf16.mxu0 %v830
        %1536 = vmatpush1.bf16.msra.mxu0 %v829
        %1537 = vmatprep.subr.bf16.mxu0 %v838
        %1538 = vmatpush1.bf16.msra.mxu0 %v837
        %1539 = vmatprep.subr.bf16.mxu0 %v846
        %1540 = vmatpush1.bf16.msra.mxu0 %v845
        %1541 = vmatprep.subr.bf16.mxu0 %v854
        %1542 = vmatpush1.bf16.msra.mxu0 %v853
        %1543 = vmatprep.subr.bf16.mxu0 %v862
        %1544 = vmatpush1.bf16.msra.mxu0 %v861
        %1545 = vmatprep.subr.bf16.mxu0 %v870
        %1546 = vmatpush1.bf16.msra.mxu0 %v869
        %1547 = vmatprep.subr.bf16.mxu0 %v878
        %1548 = vmatpush1.bf16.msra.mxu0 %v877
        %1549 = vmatprep.subr.bf16.mxu0 %v886
        %1550 = vmatpush1.bf16.msra.mxu0 %v885
        %1551 = vmatprep.subr.bf16.mxu0 %v894
        %1552 = vmatpush1.bf16.msra.mxu0 %v893
        %1553 = vmatprep.subr.bf16.mxu0 %v902
        %1554 = vmatpush1.bf16.msra.mxu0 %v901
        %1555 = vmatprep.subr.bf16.mxu0 %v910
        %1556 = vmatpush1.bf16.msra.mxu0 %v909
        %1557 = vmatprep.subr.bf16.mxu0 %v918
        %1558 = vmatpush1.bf16.msra.mxu0 %v917
        %1559 = vmatprep.subr.bf16.mxu0 %v926
        %1560 = vmatpush1.bf16.msra.mxu0 %v925
        %1561 = vmatprep.subr.bf16.mxu0 %v934
        %1562 = vmatpush1.bf16.msra.mxu0 %v933
        %1563 = vmatprep.subr.bf16.mxu0 %v942
        %1564 = vmatpush1.bf16.msra.mxu0 %v941
        %1565 = vmatprep.mubr.bf16.mxu0 %v1155
        %1566 = vmatmul.mubr.bf16.gmra.mrb[0].mxu0 %v1154
        %v1567 = vpop.f32.mrb[0].mxu0
        %v1568 = vadd.f32 0.0, %v1567
        %v1569 = vpop.f32.mrb[0].mxu0
        %v1570 = vadd.f32 0.0, %v1569
        %v1571 = vpop.f32.mrb[0].mxu0
        %v1572 = vpop.f32.mrb[0].mxu0
        %1573 = vdwg.mxu0
        %1574 = vmatprep.subr.bf16.mxu0 %v950
        %1575 = vmatpush1.bf16.msra.mxu0 %v949
        %1576 = vmatprep.subr.bf16.mxu0 %v958
        %1577 = vmatpush1.bf16.msra.mxu0 %v957
        %1578 = vmatprep.subr.bf16.mxu0 %v966
        %1579 = vmatpush1.bf16.msra.mxu0 %v965
        %1580 = vmatprep.subr.bf16.mxu0 %v974
        %1581 = vmatpush1.bf16.msra.mxu0 %v973
        %1582 = vmatprep.subr.bf16.mxu0 %v982
        %1583 = vmatpush1.bf16.msra.mxu0 %v981
        %1584 = vmatprep.subr.bf16.mxu0 %v990
        %1585 = vmatpush1.bf16.msra.mxu0 %v989
        %1586 = vmatprep.subr.bf16.mxu0 %v998
        %1587 = vmatpush1.bf16.msra.mxu0 %v997
        %1588 = vmatprep.subr.bf16.mxu0 %v1006
        %1589 = vmatpush1.bf16.msra.mxu0 %v1005
        %1590 = vmatprep.subr.bf16.mxu0 %v1014
        %1591 = vmatpush1.bf16.msra.mxu0 %v1013
        %1592 = vmatprep.subr.bf16.mxu0 %v1022
        %1593 = vmatpush1.bf16.msra.mxu0 %v1021
        %1594 = vmatprep.subr.bf16.mxu0 %v1030
        %1595 = vmatpush1.bf16.msra.mxu0 %v1029
        %1596 = vmatprep.subr.bf16.mxu0 %v1038
        %1597 = vmatpush1.bf16.msra.mxu0 %v1037
        %1598 = vmatprep.subr.bf16.mxu0 %v1046
        %1599 = vmatpush1.bf16.msra.mxu0 %v1045
        %1600 = vmatprep.subr.bf16.mxu0 %v1054
        %1601 = vmatpush1.bf16.msra.mxu0 %v1053
        %1602 = vmatprep.subr.bf16.mxu0 %v1062
        %1603 = vmatpush1.bf16.msra.mxu0 %v1061
        %1604 = vmatprep.subr.bf16.mxu0 %v1070
        %1605 = vmatpush1.bf16.msra.mxu0 %v1069
        %1606 = vmatprep.mubr.bf16.mxu0 %v1157
        %1607 = vmatmul.mubr.bf16.gmra.mrb[0].mxu0 %v1156
        %v1608 = vpop.f32.mrb[0].mxu0
        %v1609 = vadd.f32 %v1568, %v1608
        %v1610 = vpop.f32.mrb[0].mxu0
        %v1611 = vadd.f32 %v1570, %v1610
        %v1612 = vpop.f32.mrb[0].mxu0
        %v1613 = vpop.f32.mrb[0].mxu0
        %1614 = vdwg.mxu0
        %1615 = vmatprep.subr.bf16.mxu0 %v1078
        %1616 = vmatpush1.bf16.msra.mxu0 %v1077
        %1617 = vmatprep.subr.bf16.mxu0 %v1086
        %1618 = vmatpush1.bf16.msra.mxu0 %v1085
        %1619 = vmatprep.subr.bf16.mxu0 %v1094
        %1620 = vmatpush1.bf16.msra.mxu0 %v1093
        %1621 = vmatprep.subr.bf16.mxu0 %v1102
        %1622 = vmatpush1.bf16.msra.mxu0 %v1101
        %1623 = vmatprep.subr.bf16.mxu0 %v1110
        %1624 = vmatpush1.bf16.msra.mxu0 %v1109
        %1625 = vmatprep.subr.bf16.mxu0 %v1118
        %1626 = vmatpush1.bf16.msra.mxu0 %v1117
        %1627 = vmatprep.subr.bf16.mxu0 %v1126
        %1628 = vmatpush1.bf16.msra.mxu0 %v1125
        %1629 = vmatprep.subr.bf16.mxu0 %v1134
        %1630 = vmatpush1.bf16.msra.mxu0 %v1133
        %1631 = vmatprep.subr.bf16.mxu0 0
        %1632 = vmatpush1.bf16.msra.mxu0 0
        %1633 = vmatprep.subr.bf16.mxu0 0
        %1634 = vmatpush1.bf16.msra.mxu0 0
        %1635 = vmatprep.subr.bf16.mxu0 0
        %1636 = vmatpush1.bf16.msra.mxu0 0
        %1637 = vmatprep.subr.bf16.mxu0 0
        %1638 = vmatpush1.bf16.msra.mxu0 0
        %1639 = vmatprep.subr.bf16.mxu0 0
        %1640 = vmatpush1.bf16.msra.mxu0 0
        %1641 = vmatprep.subr.bf16.mxu0 0
        %1642 = vmatpush1.bf16.msra.mxu0 0
        %1643 = vmatprep.subr.bf16.mxu0 0
        %1644 = vmatpush1.bf16.msra.mxu0 0
        %1645 = vmatprep.subr.bf16.mxu0 0
        %1646 = vmatpush1.bf16.msra.mxu0 0
        %1647 = vmatprep.mubr.bf16.mxu0 0
        %1648 = vmatmul.mubr.bf16.gmra.mrb[0].mxu0 %v1158
        %v1649 = vpop.f32.mrb[0].mxu0
        %v1650 = vadd.f32 %v1609, %v1649
        %v1651 = vpop.f32.mrb[0].mxu0
        %v1652 = vadd.f32 %v1611, %v1651
        %v1653 = vpop.f32.mrb[0].mxu0
        %v1654 = vpop.f32.mrb[0].mxu0
        %1655 = vdwg.mxu0
        %v1656 = vadd.f32 %v1135, %v1281
        %v1657 = vadd.f32 %v1136, %v1283
        %v1658 = vadd.f32 %v1137, %v1404
        %v1659 = vadd.f32 %v1138, %v1406
        %v1660 = vadd.f32 %v1139, %v1527
        %v1661 = vadd.f32 %v1140, %v1529
        %v1662 = vadd.f32 %v1141, %v1650
        %v1663 = vadd.f32 %v1142, %v1652
        %1664 = vst [vmem:[#allocation2] sm:$0xff] %v1656
        %1665 = vst [vmem:[#allocation2 + $0x8] sm:$0xff] %v1657
        %1666 = vst [vmem:[#allocation2 + $0x10] sm:$0xff] %v1658
        %1667 = vst [vmem:[#allocation2 + $0x18] sm:$0xff] %v1659
        %1668 = vst [vmem:[#allocation2 + $0x20] sm:$0xff] %v1660
        %1669 = vst [vmem:[#allocation2 + $0x28] sm:$0xff] %v1661
        %1670 = vst [vmem:[#allocation2 + $0x30] sm:$0xff] %v1662
        %1671 = vst [vmem:[#allocation2 + $0x38] sm:$0xff] %v1663
        %p1672 = scmp.eq.s32.totalorder %s34, 7
        // Predicated region
        $region77: #{concat_features_net.2} parent=55 // pred_check
          %p1673 = pneg %p1672
        $region78: #{concat_features_net.2} parent=55 // pred_check_branch
          %1675 = sbr.rel (%p1673) target = $region80
        $region79: #{concat_features_net.2} parent=55 // pred_region
          %v1676 = vld [vmem:[#allocation2] sm:$0xff]
          %v1677 = vld [vmem:[#allocation2 + $0x8] sm:$0xff]
          %v1678 = vld [vmem:[#allocation2 + $0x10] sm:$0xff]
          %v1679 = vld [vmem:[#allocation2 + $0x18] sm:$0xff]
          %v1680 = vld [vmem:[#allocation2 + $0x20] sm:$0xff]
          %v1681 = vld [vmem:[#allocation2 + $0x28] sm:$0xff]
          %v1682 = vld [vmem:[#allocation2 + $0x30] sm:$0xff]
          %v1683 = vld [vmem:[#allocation2 + $0x38] sm:$0xff]
          %v1684 = vmax.f32 %v1676, 0.0
          %v1685 = vmax.f32 %v1677, 0.0
          %v1686 = vmax.f32 %v1678, 0.0
          %v1687 = vmax.f32 %v1679, 0.0
          %v1688 = vmax.f32 %v1680, 0.0
          %v1689 = vmax.f32 %v1681, 0.0
          %v1690 = vmax.f32 %v1682, 0.0
          %v1691 = vmax.f32 %v1683, 0.0
          %v1692 = vld [vmem:[%s579] sm:$0xff]
          %v1693 = vld [vmem:[%s579 + $0x8] sm:$0xff]
          %v1694 = vld [vmem:[%s579 + $0x10] sm:$0xff]
          %v1695 = vld [vmem:[%s579 + $0x18] sm:$0xff]
          %v1696 = vld [vmem:[%s579 + $0x20] sm:$0xff]
          %v1697 = vld [vmem:[%s579 + $0x28] sm:$0xff]
          %v1698 = vld [vmem:[%s579 + $0x30] sm:$0xff]
          %v1699 = vld [vmem:[%s579 + $0x38] sm:$0xff]
          %v1700 = vmul.f32 %v1684, %v1692
          %v1701 = vmul.f32 %v1685, %v1693
          %v1702 = vmul.f32 %v1686, %v1694
          %v1703 = vmul.f32 %v1687, %v1695
          %v1704 = vmul.f32 %v1688, %v1696
          %v1705 = vmul.f32 %v1689, %v1697
          %v1706 = vmul.f32 %v1690, %v1698
          %v1707 = vmul.f32 %v1691, %v1699
          %v1708 = vld [vmem:[%s584] sm:$0xff]
          %v1709 = vld [vmem:[%s584 + $0x8] sm:$0xff]
          %v1710 = vld [vmem:[%s584 + $0x10] sm:$0xff]
          %v1711 = vld [vmem:[%s584 + $0x18] sm:$0xff]
          %v1712 = vld [vmem:[%s584 + $0x20] sm:$0xff]
          %v1713 = vld [vmem:[%s584 + $0x28] sm:$0xff]
          %v1714 = vld [vmem:[%s584 + $0x30] sm:$0xff]
          %v1715 = vld [vmem:[%s584 + $0x38] sm:$0xff]
          %v1716 = vadd.f32 %v1700, %v1708
          %v1717 = vadd.f32 %v1701, %v1709
          %v1718 = vadd.f32 %v1702, %v1710
          %v1719 = vadd.f32 %v1703, %v1711
          %v1720 = vadd.f32 %v1704, %v1712
          %v1721 = vadd.f32 %v1705, %v1713
          %v1722 = vadd.f32 %v1706, %v1714
          %v1723 = vadd.f32 %v1707, %v1715
          %v1724 = vpack.c.bf16 %v1716, %v1716
          %v1725 = vpack.c.bf16 %v1717, %v1717
          %v1726 = vpack.c.bf16 %v1718, %v1718
          %v1727 = vpack.c.bf16 %v1719, %v1719
          %v1728 = vpack.c.bf16 %v1720, %v1720
          %v1729 = vpack.c.bf16 %v1721, %v1721
          %v1730 = vpack.c.bf16 %v1722, %v1722
          %v1731 = vpack.c.bf16 %v1723, %v1723
          %v1732 = vld [vmem:[%s476] sm:$0xff]
          %v1733 = vld [vmem:[%s476 + $0x8] sm:$0xff]
          %v1734 = vld [vmem:[%s476 + $0x10] sm:$0xff]
          %v1735 = vld [vmem:[%s476 + $0x18] sm:$0xff]
          %v1736 = vld [vmem:[%s476 + $0x20] sm:$0xff]
          %v1737 = vld [vmem:[%s476 + $0x28] sm:$0xff]
          %v1738 = vld [vmem:[%s476 + $0x30] sm:$0xff]
          %v1739 = vld [vmem:[%s476 + $0x38] sm:$0xff]
          %v1740 = vld [vmem:[%s476 + $0x40] sm:$0xff]
          %v1741 = vld [vmem:[%s476 + $0x48] sm:$0xff]
          %v1742 = vld [vmem:[%s476 + $0x50] sm:$0xff]
          %v1743 = vld [vmem:[%s476 + $0x58] sm:$0xff]
          %v1744 = vld [vmem:[%s476 + $0x60] sm:$0xff]
          %v1745 = vld [vmem:[%s476 + $0x68] sm:$0xff]
          %v1746 = vld [vmem:[%s476 + $0x70] sm:$0xff]
          %v1747 = vld [vmem:[%s476 + $0x78] sm:$0xff]
          %v1748 = vld [vmem:[%s476 + $0x80] sm:$0xff]
          %v1749 = vld [vmem:[%s476 + $0x88] sm:$0xff]
          %v1750 = vld [vmem:[%s476 + $0x90] sm:$0xff]
          %v1751 = vld [vmem:[%s476 + $0x98] sm:$0xff]
          %v1752 = vld [vmem:[%s476 + $0xa0] sm:$0xff]
          %v1753 = vld [vmem:[%s476 + $0xa8] sm:$0xff]
          %v1754 = vld [vmem:[%s476 + $0xb0] sm:$0xff]
          %v1755 = vld [vmem:[%s476 + $0xb8] sm:$0xff]
          %v1756 = vld [vmem:[%s476 + $0xc0] sm:$0xff]
          %v1757 = vld [vmem:[%s476 + $0xc8] sm:$0xff]
          %v1758 = vld [vmem:[%s476 + $0xd0] sm:$0xff]
          %v1759 = vld [vmem:[%s476 + $0xd8] sm:$0xff]
          %v1760 = vld [vmem:[%s476 + $0xe0] sm:$0xff]
          %v1761 = vld [vmem:[%s476 + $0xe8] sm:$0xff]
          %v1762 = vld [vmem:[%s476 + $0xf0] sm:$0xff]
          %v1763 = vld [vmem:[%s476 + $0xf8] sm:$0xff]
          %v1764 = vld [vmem:[%s476 + $0x100] sm:$0xff]
          %v1765 = vld [vmem:[%s476 + $0x108] sm:$0xff]
          %v1766 = vld [vmem:[%s476 + $0x110] sm:$0xff]
          %v1767 = vld [vmem:[%s476 + $0x118] sm:$0xff]
          %v1768 = vld [vmem:[%s476 + $0x120] sm:$0xff]
          %v1769 = vld [vmem:[%s476 + $0x128] sm:$0xff]
          %v1770 = vld [vmem:[%s476 + $0x130] sm:$0xff]
          %v1771 = vld [vmem:[%s476 + $0x138] sm:$0xff]
          %v1772 = vld [vmem:[%s476 + $0x140] sm:$0xff]
          %v1773 = vld [vmem:[%s476 + $0x148] sm:$0xff]
          %v1774 = vld [vmem:[%s476 + $0x150] sm:$0xff]
          %v1775 = vld [vmem:[%s476 + $0x158] sm:$0xff]
          %v1776 = vld [vmem:[%s476 + $0x160] sm:$0xff]
          %v1777 = vld [vmem:[%s476 + $0x168] sm:$0xff]
          %v1778 = vld [vmem:[%s476 + $0x170] sm:$0xff]
          %v1779 = vld [vmem:[%s476 + $0x178] sm:$0xff]
          %v1780 = vld [vmem:[%s476 + $0x180] sm:$0xff]
          %v1781 = vld [vmem:[%s476 + $0x188] sm:$0xff]
          %v1782 = vld [vmem:[%s476 + $0x190] sm:$0xff]
          %v1783 = vld [vmem:[%s476 + $0x198] sm:$0xff]
          %v1784 = vld [vmem:[%s476 + $0x1a0] sm:$0xff]
          %v1785 = vld [vmem:[%s476 + $0x1a8] sm:$0xff]
          %v1786 = vld [vmem:[%s476 + $0x1b0] sm:$0xff]
          %v1787 = vld [vmem:[%s476 + $0x1b8] sm:$0xff]
          %v1788 = vld [vmem:[%s476 + $0x1c0] sm:$0xff]
          %v1789 = vld [vmem:[%s476 + $0x1c8] sm:$0xff]
          %v1790 = vld [vmem:[%s476 + $0x1d0] sm:$0xff]
          %v1791 = vld [vmem:[%s476 + $0x1d8] sm:$0xff]
          %v1792 = vld [vmem:[%s476 + $0x1e0] sm:$0xff]
          %v1793 = vld [vmem:[%s476 + $0x1e8] sm:$0xff]
          %v1794 = vld [vmem:[%s476 + $0x1f0] sm:$0xff]
          %v1795 = vld [vmem:[%s476 + $0x1f8] sm:$0xff]
          %v1796 = vld [vmem:[%s476 + $0x200] sm:$0xff]
          %v1797 = vld [vmem:[%s476 + $0x208] sm:$0xff]
          %v1798 = vld [vmem:[%s476 + $0x210] sm:$0xff]
          %v1799 = vld [vmem:[%s476 + $0x218] sm:$0xff]
          %v1800 = vld [vmem:[%s476 + $0x220] sm:$0xff]
          %v1801 = vld [vmem:[%s476 + $0x228] sm:$0xff]
          %v1802 = vld [vmem:[%s476 + $0x230] sm:$0xff]
          %v1803 = vld [vmem:[%s476 + $0x238] sm:$0xff]
          %v1804 = vld [vmem:[%s476 + $0x240] sm:$0xff]
          %v1805 = vld [vmem:[%s476 + $0x248] sm:$0xff]
          %v1806 = vld [vmem:[%s476 + $0x250] sm:$0xff]
          %v1807 = vld [vmem:[%s476 + $0x258] sm:$0xff]
          %v1808 = vld [vmem:[%s476 + $0x260] sm:$0xff]
          %v1809 = vld [vmem:[%s476 + $0x268] sm:$0xff]
          %v1810 = vld [vmem:[%s476 + $0x270] sm:$0xff]
          %v1811 = vld [vmem:[%s476 + $0x278] sm:$0xff]
          %v1812 = vld [vmem:[%s476 + $0x280] sm:$0xff]
          %v1813 = vld [vmem:[%s476 + $0x288] sm:$0xff]
          %v1814 = vld [vmem:[%s476 + $0x290] sm:$0xff]
          %v1815 = vld [vmem:[%s476 + $0x298] sm:$0xff]
          %v1816 = vld [vmem:[%s476 + $0x2a0] sm:$0xff]
          %v1817 = vld [vmem:[%s476 + $0x2a8] sm:$0xff]
          %v1818 = vld [vmem:[%s476 + $0x2b0] sm:$0xff]
          %v1819 = vld [vmem:[%s476 + $0x2b8] sm:$0xff]
          %v1820 = vld [vmem:[%s476 + $0x2c0] sm:$0xff]
          %v1821 = vld [vmem:[%s476 + $0x2c8] sm:$0xff]
          %v1822 = vld [vmem:[%s476 + $0x2d0] sm:$0xff]
          %v1823 = vld [vmem:[%s476 + $0x2d8] sm:$0xff]
          %v1824 = vld [vmem:[%s476 + $0x2e0] sm:$0xff]
          %v1825 = vld [vmem:[%s476 + $0x2e8] sm:$0xff]
          %v1826 = vld [vmem:[%s476 + $0x2f0] sm:$0xff]
          %v1827 = vld [vmem:[%s476 + $0x2f8] sm:$0xff]
          %v1828 = vld [vmem:[%s476 + $0x300] sm:$0xff]
          %v1829 = vld [vmem:[%s476 + $0x308] sm:$0xff]
          %v1830 = vld [vmem:[%s476 + $0x310] sm:$0xff]
          %v1831 = vld [vmem:[%s476 + $0x318] sm:$0xff]
          %v1832 = vld [vmem:[%s476 + $0x320] sm:$0xff]
          %v1833 = vld [vmem:[%s476 + $0x328] sm:$0xff]
          %v1834 = vld [vmem:[%s476 + $0x330] sm:$0xff]
          %v1835 = vld [vmem:[%s476 + $0x338] sm:$0xff]
          %v1836 = vld [vmem:[%s476 + $0x340] sm:$0xff]
          %v1837 = vld [vmem:[%s476 + $0x348] sm:$0xff]
          %v1838 = vld [vmem:[%s476 + $0x350] sm:$0xff]
          %v1839 = vld [vmem:[%s476 + $0x358] sm:$0xff]
          %v1840 = vld [vmem:[%s476 + $0x360] sm:$0xff]
          %v1841 = vld [vmem:[%s476 + $0x368] sm:$0xff]
          %v1842 = vld [vmem:[%s476 + $0x370] sm:$0xff]
          %v1843 = vld [vmem:[%s476 + $0x378] sm:$0xff]
          %v1844 = vld [vmem:[%s476 + $0x380] sm:$0xff]
          %v1845 = vld [vmem:[%s476 + $0x388] sm:$0xff]
          %v1846 = vld [vmem:[%s476 + $0x390] sm:$0xff]
          %v1847 = vld [vmem:[%s476 + $0x398] sm:$0xff]
          %v1848 = vld [vmem:[%s476 + $0x3a0] sm:$0xff]
          %v1849 = vld [vmem:[%s476 + $0x3a8] sm:$0xff]
          %v1850 = vld [vmem:[%s476 + $0x3b0] sm:$0xff]
          %v1851 = vld [vmem:[%s476 + $0x3b8] sm:$0xff]
          %v1852 = vld [vmem:[%s476 + $0x3c0] sm:$0xff]
          %v1853 = vld [vmem:[%s476 + $0x3c8] sm:$0xff]
          %v1854 = vld [vmem:[%s476 + $0x3d0] sm:$0xff]
          %v1855 = vld [vmem:[%s476 + $0x3d8] sm:$0xff]
          %v1856 = vld [vmem:[%s476 + $0x3e0] sm:$0xff]
          %v1857 = vld [vmem:[%s476 + $0x3e8] sm:$0xff]
          %v1858 = vld [vmem:[%s476 + $0x3f0] sm:$0xff]
          %v1859 = vld [vmem:[%s476 + $0x3f8] sm:$0xff]
          %v1860 = vld [vmem:[%s476 + $0x400] sm:$0xff]
          %v1861 = vld [vmem:[%s476 + $0x408] sm:$0xff]
          %v1862 = vld [vmem:[%s476 + $0x410] sm:$0xff]
          %v1863 = vld [vmem:[%s476 + $0x418] sm:$0xff]
          %v1864 = vld [vmem:[%s476 + $0x420] sm:$0xff]
          %v1865 = vld [vmem:[%s476 + $0x428] sm:$0xff]
          %v1866 = vld [vmem:[%s476 + $0x430] sm:$0xff]
          %v1867 = vld [vmem:[%s476 + $0x438] sm:$0xff]
          %v1868 = vld [vmem:[%s476 + $0x440] sm:$0xff]
          %v1869 = vld [vmem:[%s476 + $0x448] sm:$0xff]
          %v1870 = vld [vmem:[%s476 + $0x450] sm:$0xff]
          %v1871 = vld [vmem:[%s476 + $0x458] sm:$0xff]
          %v1872 = vld [vmem:[%s476 + $0x460] sm:$0xff]
          %v1873 = vld [vmem:[%s476 + $0x468] sm:$0xff]
          %v1874 = vld [vmem:[%s476 + $0x470] sm:$0xff]
          %v1875 = vld [vmem:[%s476 + $0x478] sm:$0xff]
          %v1876 = vld [vmem:[%s476 + $0x480] sm:$0xff]
          %v1877 = vld [vmem:[%s476 + $0x488] sm:$0xff]
          %v1878 = vld [vmem:[%s476 + $0x490] sm:$0xff]
          %v1879 = vld [vmem:[%s476 + $0x498] sm:$0xff]
          %v1880 = vld [vmem:[%s476 + $0x4a0] sm:$0xff]
          %v1881 = vld [vmem:[%s476 + $0x4a8] sm:$0xff]
          %v1882 = vld [vmem:[%s476 + $0x4b0] sm:$0xff]
          %v1883 = vld [vmem:[%s476 + $0x4b8] sm:$0xff]
          %v1884 = vld [vmem:[%s476 + $0x4c0] sm:$0xff]
          %v1885 = vld [vmem:[%s476 + $0x4c8] sm:$0xff]
          %v1886 = vld [vmem:[%s476 + $0x4d0] sm:$0xff]
          %v1887 = vld [vmem:[%s476 + $0x4d8] sm:$0xff]
          %v1888 = vld [vmem:[%s476 + $0x4e0] sm:$0xff]
          %v1889 = vld [vmem:[%s476 + $0x4e8] sm:$0xff]
          %v1890 = vld [vmem:[%s476 + $0x4f0] sm:$0xff]
          %v1891 = vld [vmem:[%s476 + $0x4f8] sm:$0xff]
          %v1892 = vld [vmem:[%s476 + $0x500] sm:$0xff]
          %v1893 = vld [vmem:[%s476 + $0x508] sm:$0xff]
          %v1894 = vld [vmem:[%s476 + $0x510] sm:$0xff]
          %v1895 = vld [vmem:[%s476 + $0x518] sm:$0xff]
          %v1896 = vld [vmem:[%s476 + $0x520] sm:$0xff]
          %v1897 = vld [vmem:[%s476 + $0x528] sm:$0xff]
          %v1898 = vld [vmem:[%s476 + $0x530] sm:$0xff]
          %v1899 = vld [vmem:[%s476 + $0x538] sm:$0xff]
          %v1900 = vld [vmem:[%s476 + $0x540] sm:$0xff]
          %v1901 = vld [vmem:[%s476 + $0x548] sm:$0xff]
          %v1902 = vld [vmem:[%s476 + $0x550] sm:$0xff]
          %v1903 = vld [vmem:[%s476 + $0x558] sm:$0xff]
          %v1904 = vld [vmem:[%s476 + $0x560] sm:$0xff]
          %v1905 = vld [vmem:[%s476 + $0x568] sm:$0xff]
          %v1906 = vld [vmem:[%s476 + $0x570] sm:$0xff]
          %v1907 = vld [vmem:[%s476 + $0x578] sm:$0xff]
          %v1908 = vld [vmem:[%s476 + $0x580] sm:$0xff]
          %v1909 = vld [vmem:[%s476 + $0x588] sm:$0xff]
          %v1910 = vld [vmem:[%s476 + $0x590] sm:$0xff]
          %v1911 = vld [vmem:[%s476 + $0x598] sm:$0xff]
          %v1912 = vld [vmem:[%s476 + $0x5a0] sm:$0xff]
          %v1913 = vld [vmem:[%s476 + $0x5a8] sm:$0xff]
          %v1914 = vld [vmem:[%s476 + $0x5b0] sm:$0xff]
          %v1915 = vld [vmem:[%s476 + $0x5b8] sm:$0xff]
          %v1916 = vld [vmem:[%s476 + $0x5c0] sm:$0xff]
          %v1917 = vld [vmem:[%s476 + $0x5c8] sm:$0xff]
          %v1918 = vld [vmem:[%s476 + $0x5d0] sm:$0xff]
          %v1919 = vld [vmem:[%s476 + $0x5d8] sm:$0xff]
          %v1920 = vld [vmem:[%s476 + $0x5e0] sm:$0xff]
          %v1921 = vld [vmem:[%s476 + $0x5e8] sm:$0xff]
          %v1922 = vld [vmem:[%s476 + $0x5f0] sm:$0xff]
          %v1923 = vld [vmem:[%s476 + $0x5f8] sm:$0xff]
          %v1924 = vld [vmem:[%s476 + $0x600] sm:$0xff]
          %v1925 = vld [vmem:[%s476 + $0x608] sm:$0xff]
          %v1926 = vld [vmem:[%s476 + $0x610] sm:$0xff]
          %v1927 = vld [vmem:[%s476 + $0x618] sm:$0xff]
          %v1928 = vld [vmem:[%s476 + $0x620] sm:$0xff]
          %v1929 = vld [vmem:[%s476 + $0x628] sm:$0xff]
          %v1930 = vld [vmem:[%s476 + $0x630] sm:$0xff]
          %v1931 = vld [vmem:[%s476 + $0x638] sm:$0xff]
          %v1932 = vld [vmem:[%s476 + $0x640] sm:$0xff]
          %v1933 = vld [vmem:[%s476 + $0x648] sm:$0xff]
          %v1934 = vld [vmem:[%s476 + $0x650] sm:$0xff]
          %v1935 = vld [vmem:[%s476 + $0x658] sm:$0xff]
          %v1936 = vld [vmem:[%s476 + $0x660] sm:$0xff]
          %v1937 = vld [vmem:[%s476 + $0x668] sm:$0xff]
          %v1938 = vld [vmem:[%s476 + $0x670] sm:$0xff]
          %v1939 = vld [vmem:[%s476 + $0x678] sm:$0xff]
          %v1940 = vld [vmem:[%s476 + $0x680] sm:$0xff]
          %v1941 = vld [vmem:[%s476 + $0x688] sm:$0xff]
          %v1942 = vld [vmem:[%s476 + $0x690] sm:$0xff]
          %v1943 = vld [vmem:[%s476 + $0x698] sm:$0xff]
          %v1944 = vld [vmem:[%s476 + $0x6a0] sm:$0xff]
          %v1945 = vld [vmem:[%s476 + $0x6a8] sm:$0xff]
          %v1946 = vld [vmem:[%s476 + $0x6b0] sm:$0xff]
          %v1947 = vld [vmem:[%s476 + $0x6b8] sm:$0xff]
          %v1948 = vld [vmem:[%s476 + $0x6c0] sm:$0xff]
          %v1949 = vld [vmem:[%s476 + $0x6c8] sm:$0xff]
          %v1950 = vld [vmem:[%s476 + $0x6d0] sm:$0xff]
          %v1951 = vld [vmem:[%s476 + $0x6d8] sm:$0xff]
          %v1952 = vld [vmem:[%s476 + $0x6e0] sm:$0xff]
          %v1953 = vld [vmem:[%s476 + $0x6e8] sm:$0xff]
          %v1954 = vld [vmem:[%s476 + $0x6f0] sm:$0xff]
          %v1955 = vld [vmem:[%s476 + $0x6f8] sm:$0xff]
          %v1956 = vld [vmem:[%s476 + $0x700] sm:$0xff]
          %v1957 = vld [vmem:[%s476 + $0x708] sm:$0xff]
          %v1958 = vld [vmem:[%s476 + $0x710] sm:$0xff]
          %v1959 = vld [vmem:[%s476 + $0x718] sm:$0xff]
          %v1960 = vld [vmem:[%s476 + $0x720] sm:$0xff]
          %v1961 = vld [vmem:[%s476 + $0x728] sm:$0xff]
          %v1962 = vld [vmem:[%s476 + $0x730] sm:$0xff]
          %v1963 = vld [vmem:[%s476 + $0x738] sm:$0xff]
          %v1964 = vld [vmem:[%s476 + $0x740] sm:$0xff]
          %v1965 = vld [vmem:[%s476 + $0x748] sm:$0xff]
          %v1966 = vld [vmem:[%s476 + $0x750] sm:$0xff]
          %v1967 = vld [vmem:[%s476 + $0x758] sm:$0xff]
          %v1968 = vld [vmem:[%s476 + $0x760] sm:$0xff]
          %v1969 = vld [vmem:[%s476 + $0x768] sm:$0xff]
          %v1970 = vld [vmem:[%s476 + $0x770] sm:$0xff]
          %v1971 = vld [vmem:[%s476 + $0x778] sm:$0xff]
          %v1972 = vld [vmem:[%s476 + $0x780] sm:$0xff]
          %v1973 = vld [vmem:[%s476 + $0x788] sm:$0xff]
          %v1974 = vld [vmem:[%s476 + $0x790] sm:$0xff]
          %v1975 = vld [vmem:[%s476 + $0x798] sm:$0xff]
          %v1976 = vld [vmem:[%s476 + $0x7a0] sm:$0xff]
          %v1977 = vld [vmem:[%s476 + $0x7a8] sm:$0xff]
          %v1978 = vld [vmem:[%s476 + $0x7b0] sm:$0xff]
          %v1979 = vld [vmem:[%s476 + $0x7b8] sm:$0xff]
          %v1980 = vld [vmem:[%s476 + $0x7c0] sm:$0xff]
          %v1981 = vld [vmem:[%s476 + $0x7c8] sm:$0xff]
          %v1982 = vld [vmem:[%s476 + $0x7d0] sm:$0xff]
          %v1983 = vld [vmem:[%s476 + $0x7d8] sm:$0xff]
          %v1984 = vld [vmem:[%s476 + $0x7e0] sm:$0xff]
          %v1985 = vld [vmem:[%s476 + $0x7e8] sm:$0xff]
          %v1986 = vld [vmem:[%s476 + $0x7f0] sm:$0xff]
          %v1987 = vld [vmem:[%s476 + $0x7f8] sm:$0xff]
          %v1988 = vld [vmem:[%s485] sm:$0xf]
          %v1990 = vlaneseq
          %v1991 = vshrl.u32 %v1990, 7
          %v1992 = vsub.s32 0, %v1991
          %v1993 = vrot.slane %v1988, %v1992
          %v1994 = vlaneseq
          %v1995 = vshrl.u32 %v1994, 7
          %v1996 = vsub.s32 1, %v1995
          %v1997 = vrot.slane %v1988, %v1996
          %v1998 = vlaneseq
          %v1999 = vshrl.u32 %v1998, 7
          %v2000 = vsub.s32 2, %v1999
          %v2001 = vrot.slane %v1988, %v2000
          %v2002 = vlaneseq
          %v2003 = vshrl.u32 %v2002, 7
          %v2004 = vsub.s32 3, %v2003
          %v2005 = vrot.slane %v1988, %v2004
          %v2266 = vunpack.c.l.b16 %v1732
          %v2267 = vunpack.c.h.b16 %v1732
          %v2268 = vunpack.c.l.b16 %v1733
          %v2269 = vunpack.c.h.b16 %v1733
          %v2270 = vunpack.c.l.b16 %v1734
          %v2271 = vunpack.c.h.b16 %v1734
          %v2272 = vunpack.c.l.b16 %v1735
          %v2273 = vunpack.c.h.b16 %v1735
          %v2274 = vunpack.c.l.b16 %v1736
          %v2275 = vunpack.c.h.b16 %v1736
          %v2276 = vunpack.c.l.b16 %v1737
          %v2277 = vunpack.c.h.b16 %v1737
          %v2278 = vunpack.c.l.b16 %v1738
          %v2279 = vunpack.c.h.b16 %v1738
          %v2280 = vunpack.c.l.b16 %v1739
          %v2281 = vunpack.c.h.b16 %v1739
          %v2282 = vunpack.c.l.b16 %v1740
          %v2283 = vunpack.c.h.b16 %v1740
          %v2284 = vunpack.c.l.b16 %v1741
          %v2285 = vunpack.c.h.b16 %v1741
          %v2286 = vunpack.c.l.b16 %v1742
          %v2287 = vunpack.c.h.b16 %v1742
          %v2288 = vunpack.c.l.b16 %v1743
          %v2289 = vunpack.c.h.b16 %v1743
          %v2290 = vunpack.c.l.b16 %v1744
          %v2291 = vunpack.c.h.b16 %v1744
          %v2292 = vunpack.c.l.b16 %v1745
          %v2293 = vunpack.c.h.b16 %v1745
          %v2294 = vunpack.c.l.b16 %v1746
          %v2295 = vunpack.c.h.b16 %v1746
          %v2296 = vunpack.c.l.b16 %v1747
          %v2297 = vunpack.c.h.b16 %v1747
          %v2298 = vunpack.c.l.b16 %v1748
          %v2299 = vunpack.c.h.b16 %v1748
          %v2300 = vunpack.c.l.b16 %v1749
          %v2301 = vunpack.c.h.b16 %v1749
          %v2302 = vunpack.c.l.b16 %v1750
          %v2303 = vunpack.c.h.b16 %v1750
          %v2304 = vunpack.c.l.b16 %v1751
          %v2305 = vunpack.c.h.b16 %v1751
          %v2306 = vunpack.c.l.b16 %v1752
          %v2307 = vunpack.c.h.b16 %v1752
          %v2308 = vunpack.c.l.b16 %v1753
          %v2309 = vunpack.c.h.b16 %v1753
          %v2310 = vunpack.c.l.b16 %v1754
          %v2311 = vunpack.c.h.b16 %v1754
          %v2312 = vunpack.c.l.b16 %v1755
          %v2313 = vunpack.c.h.b16 %v1755
          %v2314 = vunpack.c.l.b16 %v1756
          %v2315 = vunpack.c.h.b16 %v1756
          %v2316 = vunpack.c.l.b16 %v1757
          %v2317 = vunpack.c.h.b16 %v1757
          %v2318 = vunpack.c.l.b16 %v1758
          %v2319 = vunpack.c.h.b16 %v1758
          %v2320 = vunpack.c.l.b16 %v1759
          %v2321 = vunpack.c.h.b16 %v1759
          %v2322 = vunpack.c.l.b16 %v1760
          %v2323 = vunpack.c.h.b16 %v1760
          %v2324 = vunpack.c.l.b16 %v1761
          %v2325 = vunpack.c.h.b16 %v1761
          %v2326 = vunpack.c.l.b16 %v1762
          %v2327 = vunpack.c.h.b16 %v1762
          %v2328 = vunpack.c.l.b16 %v1763
          %v2329 = vunpack.c.h.b16 %v1763
          %v2330 = vunpack.c.l.b16 %v1764
          %v2331 = vunpack.c.h.b16 %v1764
          %v2332 = vunpack.c.l.b16 %v1765
          %v2333 = vunpack.c.h.b16 %v1765
          %v2334 = vunpack.c.l.b16 %v1766
          %v2335 = vunpack.c.h.b16 %v1766
          %v2336 = vunpack.c.l.b16 %v1767
          %v2337 = vunpack.c.h.b16 %v1767
          %v2338 = vunpack.c.l.b16 %v1768
          %v2339 = vunpack.c.h.b16 %v1768
          %v2340 = vunpack.c.l.b16 %v1769
          %v2341 = vunpack.c.h.b16 %v1769
          %v2342 = vunpack.c.l.b16 %v1770
          %v2343 = vunpack.c.h.b16 %v1770
          %v2344 = vunpack.c.l.b16 %v1771
          %v2345 = vunpack.c.h.b16 %v1771
          %v2346 = vunpack.c.l.b16 %v1772
          %v2347 = vunpack.c.h.b16 %v1772
          %v2348 = vunpack.c.l.b16 %v1773
          %v2349 = vunpack.c.h.b16 %v1773
          %v2350 = vunpack.c.l.b16 %v1774
          %v2351 = vunpack.c.h.b16 %v1774
          %v2352 = vunpack.c.l.b16 %v1775
          %v2353 = vunpack.c.h.b16 %v1775
          %v2354 = vunpack.c.l.b16 %v1776
          %v2355 = vunpack.c.h.b16 %v1776
          %v2356 = vunpack.c.l.b16 %v1777
          %v2357 = vunpack.c.h.b16 %v1777
          %v2358 = vunpack.c.l.b16 %v1778
          %v2359 = vunpack.c.h.b16 %v1778
          %v2360 = vunpack.c.l.b16 %v1779
          %v2361 = vunpack.c.h.b16 %v1779
          %v2362 = vunpack.c.l.b16 %v1780
          %v2363 = vunpack.c.h.b16 %v1780
          %v2364 = vunpack.c.l.b16 %v1781
          %v2365 = vunpack.c.h.b16 %v1781
          %v2366 = vunpack.c.l.b16 %v1782
          %v2367 = vunpack.c.h.b16 %v1782
          %v2368 = vunpack.c.l.b16 %v1783
          %v2369 = vunpack.c.h.b16 %v1783
          %v2370 = vunpack.c.l.b16 %v1784
          %v2371 = vunpack.c.h.b16 %v1784
          %v2372 = vunpack.c.l.b16 %v1785
          %v2373 = vunpack.c.h.b16 %v1785
          %v2374 = vunpack.c.l.b16 %v1786
          %v2375 = vunpack.c.h.b16 %v1786
          %v2376 = vunpack.c.l.b16 %v1787
          %v2377 = vunpack.c.h.b16 %v1787
          %v2378 = vunpack.c.l.b16 %v1788
          %v2379 = vunpack.c.h.b16 %v1788
          %v2380 = vunpack.c.l.b16 %v1789
          %v2381 = vunpack.c.h.b16 %v1789
          %v2382 = vunpack.c.l.b16 %v1790
          %v2383 = vunpack.c.h.b16 %v1790
          %v2384 = vunpack.c.l.b16 %v1791
          %v2385 = vunpack.c.h.b16 %v1791
          %v2386 = vunpack.c.l.b16 %v1792
          %v2387 = vunpack.c.h.b16 %v1792
          %v2388 = vunpack.c.l.b16 %v1793
          %v2389 = vunpack.c.h.b16 %v1793
          %v2390 = vunpack.c.l.b16 %v1794
          %v2391 = vunpack.c.h.b16 %v1794
          %v2392 = vunpack.c.l.b16 %v1795
          %v2393 = vunpack.c.h.b16 %v1795
          %v2394 = vunpack.c.l.b16 %v1796
          %v2395 = vunpack.c.h.b16 %v1796
          %v2396 = vunpack.c.l.b16 %v1797
          %v2397 = vunpack.c.h.b16 %v1797
          %v2398 = vunpack.c.l.b16 %v1798
          %v2399 = vunpack.c.h.b16 %v1798
          %v2400 = vunpack.c.l.b16 %v1799
          %v2401 = vunpack.c.h.b16 %v1799
          %v2402 = vunpack.c.l.b16 %v1800
          %v2403 = vunpack.c.h.b16 %v1800
          %v2404 = vunpack.c.l.b16 %v1801
          %v2405 = vunpack.c.h.b16 %v1801
          %v2406 = vunpack.c.l.b16 %v1802
          %v2407 = vunpack.c.h.b16 %v1802
          %v2408 = vunpack.c.l.b16 %v1803
          %v2409 = vunpack.c.h.b16 %v1803
          %v2410 = vunpack.c.l.b16 %v1804
          %v2411 = vunpack.c.h.b16 %v1804
          %v2412 = vunpack.c.l.b16 %v1805
          %v2413 = vunpack.c.h.b16 %v1805
          %v2414 = vunpack.c.l.b16 %v1806
          %v2415 = vunpack.c.h.b16 %v1806
          %v2416 = vunpack.c.l.b16 %v1807
          %v2417 = vunpack.c.h.b16 %v1807
          %v2418 = vunpack.c.l.b16 %v1808
          %v2419 = vunpack.c.h.b16 %v1808
          %v2420 = vunpack.c.l.b16 %v1809
          %v2421 = vunpack.c.h.b16 %v1809
          %v2422 = vunpack.c.l.b16 %v1810
          %v2423 = vunpack.c.h.b16 %v1810
          %v2424 = vunpack.c.l.b16 %v1811
          %v2425 = vunpack.c.h.b16 %v1811
          %v2426 = vunpack.c.l.b16 %v1812
          %v2427 = vunpack.c.h.b16 %v1812
          %v2428 = vunpack.c.l.b16 %v1813
          %v2429 = vunpack.c.h.b16 %v1813
          %v2430 = vunpack.c.l.b16 %v1814
          %v2431 = vunpack.c.h.b16 %v1814
          %v2432 = vunpack.c.l.b16 %v1815
          %v2433 = vunpack.c.h.b16 %v1815
          %v2434 = vunpack.c.l.b16 %v1816
          %v2435 = vunpack.c.h.b16 %v1816
          %v2436 = vunpack.c.l.b16 %v1817
          %v2437 = vunpack.c.h.b16 %v1817
          %v2438 = vunpack.c.l.b16 %v1818
          %v2439 = vunpack.c.h.b16 %v1818
          %v2440 = vunpack.c.l.b16 %v1819
          %v2441 = vunpack.c.h.b16 %v1819
          %v2442 = vunpack.c.l.b16 %v1820
          %v2443 = vunpack.c.h.b16 %v1820
          %v2444 = vunpack.c.l.b16 %v1821
          %v2445 = vunpack.c.h.b16 %v1821
          %v2446 = vunpack.c.l.b16 %v1822
          %v2447 = vunpack.c.h.b16 %v1822
          %v2448 = vunpack.c.l.b16 %v1823
          %v2449 = vunpack.c.h.b16 %v1823
          %v2450 = vunpack.c.l.b16 %v1824
          %v2451 = vunpack.c.h.b16 %v1824
          %v2452 = vunpack.c.l.b16 %v1825
          %v2453 = vunpack.c.h.b16 %v1825
          %v2454 = vunpack.c.l.b16 %v1826
          %v2455 = vunpack.c.h.b16 %v1826
          %v2456 = vunpack.c.l.b16 %v1827
          %v2457 = vunpack.c.h.b16 %v1827
          %v2458 = vunpack.c.l.b16 %v1828
          %v2459 = vunpack.c.h.b16 %v1828
          %v2460 = vunpack.c.l.b16 %v1829
          %v2461 = vunpack.c.h.b16 %v1829
          %v2462 = vunpack.c.l.b16 %v1830
          %v2463 = vunpack.c.h.b16 %v1830
          %v2464 = vunpack.c.l.b16 %v1831
          %v2465 = vunpack.c.h.b16 %v1831
          %v2466 = vunpack.c.l.b16 %v1832
          %v2467 = vunpack.c.h.b16 %v1832
          %v2468 = vunpack.c.l.b16 %v1833
          %v2469 = vunpack.c.h.b16 %v1833
          %v2470 = vunpack.c.l.b16 %v1834
          %v2471 = vunpack.c.h.b16 %v1834
          %v2472 = vunpack.c.l.b16 %v1835
          %v2473 = vunpack.c.h.b16 %v1835
          %v2474 = vunpack.c.l.b16 %v1836
          %v2475 = vunpack.c.h.b16 %v1836
          %v2476 = vunpack.c.l.b16 %v1837
          %v2477 = vunpack.c.h.b16 %v1837
          %v2478 = vunpack.c.l.b16 %v1838
          %v2479 = vunpack.c.h.b16 %v1838
          %v2480 = vunpack.c.l.b16 %v1839
          %v2481 = vunpack.c.h.b16 %v1839
          %v2482 = vunpack.c.l.b16 %v1840
          %v2483 = vunpack.c.h.b16 %v1840
          %v2484 = vunpack.c.l.b16 %v1841
          %v2485 = vunpack.c.h.b16 %v1841
          %v2486 = vunpack.c.l.b16 %v1842
          %v2487 = vunpack.c.h.b16 %v1842
          %v2488 = vunpack.c.l.b16 %v1843
          %v2489 = vunpack.c.h.b16 %v1843
          %v2490 = vunpack.c.l.b16 %v1844
          %v2491 = vunpack.c.h.b16 %v1844
          %v2492 = vunpack.c.l.b16 %v1845
          %v2493 = vunpack.c.h.b16 %v1845
          %v2494 = vunpack.c.l.b16 %v1846
          %v2495 = vunpack.c.h.b16 %v1846
          %v2496 = vunpack.c.l.b16 %v1847
          %v2497 = vunpack.c.h.b16 %v1847
          %v2498 = vunpack.c.l.b16 %v1848
          %v2499 = vunpack.c.h.b16 %v1848
          %v2500 = vunpack.c.l.b16 %v1849
          %v2501 = vunpack.c.h.b16 %v1849
          %v2502 = vunpack.c.l.b16 %v1850
          %v2503 = vunpack.c.h.b16 %v1850
          %v2504 = vunpack.c.l.b16 %v1851
          %v2505 = vunpack.c.h.b16 %v1851
          %v2506 = vunpack.c.l.b16 %v1852
          %v2507 = vunpack.c.h.b16 %v1852
          %v2508 = vunpack.c.l.b16 %v1853
          %v2509 = vunpack.c.h.b16 %v1853
          %v2510 = vunpack.c.l.b16 %v1854
          %v2511 = vunpack.c.h.b16 %v1854
          %v2512 = vunpack.c.l.b16 %v1855
          %v2513 = vunpack.c.h.b16 %v1855
          %v2514 = vunpack.c.l.b16 %v1856
          %v2515 = vunpack.c.h.b16 %v1856
          %v2516 = vunpack.c.l.b16 %v1857
          %v2517 = vunpack.c.h.b16 %v1857
          %v2518 = vunpack.c.l.b16 %v1858
          %v2519 = vunpack.c.h.b16 %v1858
          %v2520 = vunpack.c.l.b16 %v1859
          %v2521 = vunpack.c.h.b16 %v1859
          %v2522 = vunpack.c.l.b16 %v1860
          %v2523 = vunpack.c.h.b16 %v1860
          %v2524 = vunpack.c.l.b16 %v1861
          %v2525 = vunpack.c.h.b16 %v1861
          %v2526 = vunpack.c.l.b16 %v1862
          %v2527 = vunpack.c.h.b16 %v1862
          %v2528 = vunpack.c.l.b16 %v1863
          %v2529 = vunpack.c.h.b16 %v1863
          %v2530 = vunpack.c.l.b16 %v1864
          %v2531 = vunpack.c.h.b16 %v1864
          %v2532 = vunpack.c.l.b16 %v1865
          %v2533 = vunpack.c.h.b16 %v1865
          %v2534 = vunpack.c.l.b16 %v1866
          %v2535 = vunpack.c.h.b16 %v1866
          %v2536 = vunpack.c.l.b16 %v1867
          %v2537 = vunpack.c.h.b16 %v1867
          %v2538 = vunpack.c.l.b16 %v1868
          %v2539 = vunpack.c.h.b16 %v1868
          %v2540 = vunpack.c.l.b16 %v1869
          %v2541 = vunpack.c.h.b16 %v1869
          %v2542 = vunpack.c.l.b16 %v1870
          %v2543 = vunpack.c.h.b16 %v1870
          %v2544 = vunpack.c.l.b16 %v1871
          %v2545 = vunpack.c.h.b16 %v1871
          %v2546 = vunpack.c.l.b16 %v1872
          %v2547 = vunpack.c.h.b16 %v1872
          %v2548 = vunpack.c.l.b16 %v1873
          %v2549 = vunpack.c.h.b16 %v1873
          %v2550 = vunpack.c.l.b16 %v1874
          %v2551 = vunpack.c.h.b16 %v1874
          %v2552 = vunpack.c.l.b16 %v1875
          %v2553 = vunpack.c.h.b16 %v1875
          %v2554 = vunpack.c.l.b16 %v1876
          %v2555 = vunpack.c.h.b16 %v1876
          %v2556 = vunpack.c.l.b16 %v1877
          %v2557 = vunpack.c.h.b16 %v1877
          %v2558 = vunpack.c.l.b16 %v1878
          %v2559 = vunpack.c.h.b16 %v1878
          %v2560 = vunpack.c.l.b16 %v1879
          %v2561 = vunpack.c.h.b16 %v1879
          %v2562 = vunpack.c.l.b16 %v1880
          %v2563 = vunpack.c.h.b16 %v1880
          %v2564 = vunpack.c.l.b16 %v1881
          %v2565 = vunpack.c.h.b16 %v1881
          %v2566 = vunpack.c.l.b16 %v1882
          %v2567 = vunpack.c.h.b16 %v1882
          %v2568 = vunpack.c.l.b16 %v1883
          %v2569 = vunpack.c.h.b16 %v1883
          %v2570 = vunpack.c.l.b16 %v1884
          %v2571 = vunpack.c.h.b16 %v1884
          %v2572 = vunpack.c.l.b16 %v1885
          %v2573 = vunpack.c.h.b16 %v1885
          %v2574 = vunpack.c.l.b16 %v1886
          %v2575 = vunpack.c.h.b16 %v1886
          %v2576 = vunpack.c.l.b16 %v1887
          %v2577 = vunpack.c.h.b16 %v1887
          %v2578 = vunpack.c.l.b16 %v1888
          %v2579 = vunpack.c.h.b16 %v1888
          %v2580 = vunpack.c.l.b16 %v1889
          %v2581 = vunpack.c.h.b16 %v1889
          %v2582 = vunpack.c.l.b16 %v1890
          %v2583 = vunpack.c.h.b16 %v1890
          %v2584 = vunpack.c.l.b16 %v1891
          %v2585 = vunpack.c.h.b16 %v1891
          %v2586 = vunpack.c.l.b16 %v1892
          %v2587 = vunpack.c.h.b16 %v1892
          %v2588 = vunpack.c.l.b16 %v1893
          %v2589 = vunpack.c.h.b16 %v1893
          %v2590 = vunpack.c.l.b16 %v1894
          %v2591 = vunpack.c.h.b16 %v1894
          %v2592 = vunpack.c.l.b16 %v1895
          %v2593 = vunpack.c.h.b16 %v1895
          %v2594 = vunpack.c.l.b16 %v1896
          %v2595 = vunpack.c.h.b16 %v1896
          %v2596 = vunpack.c.l.b16 %v1897
          %v2597 = vunpack.c.h.b16 %v1897
          %v2598 = vunpack.c.l.b16 %v1898
          %v2599 = vunpack.c.h.b16 %v1898
          %v2600 = vunpack.c.l.b16 %v1899
          %v2601 = vunpack.c.h.b16 %v1899
          %v2602 = vunpack.c.l.b16 %v1900
          %v2603 = vunpack.c.h.b16 %v1900
          %v2604 = vunpack.c.l.b16 %v1901
          %v2605 = vunpack.c.h.b16 %v1901
          %v2606 = vunpack.c.l.b16 %v1902
          %v2607 = vunpack.c.h.b16 %v1902
          %v2608 = vunpack.c.l.b16 %v1903
          %v2609 = vunpack.c.h.b16 %v1903
          %v2610 = vunpack.c.l.b16 %v1904
          %v2611 = vunpack.c.h.b16 %v1904
          %v2612 = vunpack.c.l.b16 %v1905
          %v2613 = vunpack.c.h.b16 %v1905
          %v2614 = vunpack.c.l.b16 %v1906
          %v2615 = vunpack.c.h.b16 %v1906
          %v2616 = vunpack.c.l.b16 %v1907
          %v2617 = vunpack.c.h.b16 %v1907
          %v2618 = vunpack.c.l.b16 %v1908
          %v2619 = vunpack.c.h.b16 %v1908
          %v2620 = vunpack.c.l.b16 %v1909
          %v2621 = vunpack.c.h.b16 %v1909
          %v2622 = vunpack.c.l.b16 %v1910
          %v2623 = vunpack.c.h.b16 %v1910
          %v2624 = vunpack.c.l.b16 %v1911
          %v2625 = vunpack.c.h.b16 %v1911
          %v2626 = vunpack.c.l.b16 %v1912
          %v2627 = vunpack.c.h.b16 %v1912
          %v2628 = vunpack.c.l.b16 %v1913
          %v2629 = vunpack.c.h.b16 %v1913
          %v2630 = vunpack.c.l.b16 %v1914
          %v2631 = vunpack.c.h.b16 %v1914
          %v2632 = vunpack.c.l.b16 %v1915
          %v2633 = vunpack.c.h.b16 %v1915
          %v2634 = vunpack.c.l.b16 %v1916
          %v2635 = vunpack.c.h.b16 %v1916
          %v2636 = vunpack.c.l.b16 %v1917
          %v2637 = vunpack.c.h.b16 %v1917
          %v2638 = vunpack.c.l.b16 %v1918
          %v2639 = vunpack.c.h.b16 %v1918
          %v2640 = vunpack.c.l.b16 %v1919
          %v2641 = vunpack.c.h.b16 %v1919
          %v2642 = vunpack.c.l.b16 %v1920
          %v2643 = vunpack.c.h.b16 %v1920
          %v2644 = vunpack.c.l.b16 %v1921
          %v2645 = vunpack.c.h.b16 %v1921
          %v2646 = vunpack.c.l.b16 %v1922
          %v2647 = vunpack.c.h.b16 %v1922
          %v2648 = vunpack.c.l.b16 %v1923
          %v2649 = vunpack.c.h.b16 %v1923
          %v2650 = vunpack.c.l.b16 %v1924
          %v2651 = vunpack.c.h.b16 %v1924
          %v2652 = vunpack.c.l.b16 %v1925
          %v2653 = vunpack.c.h.b16 %v1925
          %v2654 = vunpack.c.l.b16 %v1926
          %v2655 = vunpack.c.h.b16 %v1926
          %v2656 = vunpack.c.l.b16 %v1927
          %v2657 = vunpack.c.h.b16 %v1927
          %v2658 = vunpack.c.l.b16 %v1928
          %v2659 = vunpack.c.h.b16 %v1928
          %v2660 = vunpack.c.l.b16 %v1929
          %v2661 = vunpack.c.h.b16 %v1929
          %v2662 = vunpack.c.l.b16 %v1930
          %v2663 = vunpack.c.h.b16 %v1930
          %v2664 = vunpack.c.l.b16 %v1931
          %v2665 = vunpack.c.h.b16 %v1931
          %v2666 = vunpack.c.l.b16 %v1932
          %v2667 = vunpack.c.h.b16 %v1932
          %v2668 = vunpack.c.l.b16 %v1933
          %v2669 = vunpack.c.h.b16 %v1933
          %v2670 = vunpack.c.l.b16 %v1934
          %v2671 = vunpack.c.h.b16 %v1934
          %v2672 = vunpack.c.l.b16 %v1935
          %v2673 = vunpack.c.h.b16 %v1935
          %v2674 = vunpack.c.l.b16 %v1936
          %v2675 = vunpack.c.h.b16 %v1936
          %v2676 = vunpack.c.l.b16 %v1937
          %v2677 = vunpack.c.h.b16 %v1937
          %v2678 = vunpack.c.l.b16 %v1938
          %v2679 = vunpack.c.h.b16 %v1938
          %v2680 = vunpack.c.l.b16 %v1939
          %v2681 = vunpack.c.h.b16 %v1939
          %v2682 = vunpack.c.l.b16 %v1940
          %v2683 = vunpack.c.h.b16 %v1940
          %v2684 = vunpack.c.l.b16 %v1941
          %v2685 = vunpack.c.h.b16 %v1941
          %v2686 = vunpack.c.l.b16 %v1942
          %v2687 = vunpack.c.h.b16 %v1942
          %v2688 = vunpack.c.l.b16 %v1943
          %v2689 = vunpack.c.h.b16 %v1943
          %v2690 = vunpack.c.l.b16 %v1944
          %v2691 = vunpack.c.h.b16 %v1944
          %v2692 = vunpack.c.l.b16 %v1945
          %v2693 = vunpack.c.h.b16 %v1945
          %v2694 = vunpack.c.l.b16 %v1946
          %v2695 = vunpack.c.h.b16 %v1946
          %v2696 = vunpack.c.l.b16 %v1947
          %v2697 = vunpack.c.h.b16 %v1947
          %v2698 = vunpack.c.l.b16 %v1948
          %v2699 = vunpack.c.h.b16 %v1948
          %v2700 = vunpack.c.l.b16 %v1949
          %v2701 = vunpack.c.h.b16 %v1949
          %v2702 = vunpack.c.l.b16 %v1950
          %v2703 = vunpack.c.h.b16 %v1950
          %v2704 = vunpack.c.l.b16 %v1951
          %v2705 = vunpack.c.h.b16 %v1951
          %v2706 = vunpack.c.l.b16 %v1952
          %v2707 = vunpack.c.h.b16 %v1952
          %v2708 = vunpack.c.l.b16 %v1953
          %v2709 = vunpack.c.h.b16 %v1953
          %v2710 = vunpack.c.l.b16 %v1954
          %v2711 = vunpack.c.h.b16 %v1954
          %v2712 = vunpack.c.l.b16 %v1955
          %v2713 = vunpack.c.h.b16 %v1955
          %v2714 = vunpack.c.l.b16 %v1956
          %v2715 = vunpack.c.h.b16 %v1956
          %v2716 = vunpack.c.l.b16 %v1957
          %v2717 = vunpack.c.h.b16 %v1957
          %v2718 = vunpack.c.l.b16 %v1958
          %v2719 = vunpack.c.h.b16 %v1958
          %v2720 = vunpack.c.l.b16 %v1959
          %v2721 = vunpack.c.h.b16 %v1959
          %v2722 = vunpack.c.l.b16 %v1960
          %v2723 = vunpack.c.h.b16 %v1960
          %v2724 = vunpack.c.l.b16 %v1961
          %v2725 = vunpack.c.h.b16 %v1961
          %v2726 = vunpack.c.l.b16 %v1962
          %v2727 = vunpack.c.h.b16 %v1962
          %v2728 = vunpack.c.l.b16 %v1963
          %v2729 = vunpack.c.h.b16 %v1963
          %v2730 = vunpack.c.l.b16 %v1964
          %v2731 = vunpack.c.h.b16 %v1964
          %v2732 = vunpack.c.l.b16 %v1965
          %v2733 = vunpack.c.h.b16 %v1965
          %v2734 = vunpack.c.l.b16 %v1966
          %v2735 = vunpack.c.h.b16 %v1966
          %v2736 = vunpack.c.l.b16 %v1967
          %v2737 = vunpack.c.h.b16 %v1967
          %v2738 = vunpack.c.l.b16 %v1968
          %v2739 = vunpack.c.h.b16 %v1968
          %v2740 = vunpack.c.l.b16 %v1969
          %v2741 = vunpack.c.h.b16 %v1969
          %v2742 = vunpack.c.l.b16 %v1970
          %v2743 = vunpack.c.h.b16 %v1970
          %v2744 = vunpack.c.l.b16 %v1971
          %v2745 = vunpack.c.h.b16 %v1971
          %v2746 = vunpack.c.l.b16 %v1972
          %v2747 = vunpack.c.h.b16 %v1972
          %v2748 = vunpack.c.l.b16 %v1973
          %v2749 = vunpack.c.h.b16 %v1973
          %v2750 = vunpack.c.l.b16 %v1974
          %v2751 = vunpack.c.h.b16 %v1974
          %v2752 = vunpack.c.l.b16 %v1975
          %v2753 = vunpack.c.h.b16 %v1975
          %v2754 = vunpack.c.l.b16 %v1976
          %v2755 = vunpack.c.h.b16 %v1976
          %v2756 = vunpack.c.l.b16 %v1977
          %v2757 = vunpack.c.h.b16 %v1977
          %v2758 = vunpack.c.l.b16 %v1978
          %v2759 = vunpack.c.h.b16 %v1978
          %v2760 = vunpack.c.l.b16 %v1979
          %v2761 = vunpack.c.h.b16 %v1979
          %v2762 = vunpack.c.l.b16 %v1980
          %v2763 = vunpack.c.h.b16 %v1980
          %v2764 = vunpack.c.l.b16 %v1981
          %v2765 = vunpack.c.h.b16 %v1981
          %v2766 = vunpack.c.l.b16 %v1982
          %v2767 = vunpack.c.h.b16 %v1982
          %v2768 = vunpack.c.l.b16 %v1983
          %v2769 = vunpack.c.h.b16 %v1983
          %v2770 = vunpack.c.l.b16 %v1984
          %v2771 = vunpack.c.h.b16 %v1984
          %v2772 = vunpack.c.l.b16 %v1985
          %v2773 = vunpack.c.h.b16 %v1985
          %v2774 = vunpack.c.l.b16 %v1986
          %v2775 = vunpack.c.h.b16 %v1986
          %v2776 = vunpack.c.l.b16 %v1987
          %v2777 = vunpack.c.h.b16 %v1987
          %v2778 = vpack.c.b16 %v2270, %v2266
          %v2779 = vpack.c.b16 %v2271, %v2267
          %v2780 = vpack.c.b16 %v2272, %v2268
          %v2781 = vpack.c.b16 %v2273, %v2269
          %v2782 = vpack.c.b16 %v2278, %v2274
          %v2783 = vpack.c.b16 %v2279, %v2275
          %v2784 = vpack.c.b16 %v2280, %v2276
          %v2785 = vpack.c.b16 %v2281, %v2277
          %v2786 = vpack.c.b16 %v2286, %v2282
          %v2787 = vpack.c.b16 %v2287, %v2283
          %v2788 = vpack.c.b16 %v2288, %v2284
          %v2789 = vpack.c.b16 %v2289, %v2285
          %v2790 = vpack.c.b16 %v2294, %v2290
          %v2791 = vpack.c.b16 %v2295, %v2291
          %v2792 = vpack.c.b16 %v2296, %v2292
          %v2793 = vpack.c.b16 %v2297, %v2293
          %v2794 = vpack.c.b16 %v2302, %v2298
          %v2795 = vpack.c.b16 %v2303, %v2299
          %v2796 = vpack.c.b16 %v2304, %v2300
          %v2797 = vpack.c.b16 %v2305, %v2301
          %v2798 = vpack.c.b16 %v2310, %v2306
          %v2799 = vpack.c.b16 %v2311, %v2307
          %v2800 = vpack.c.b16 %v2312, %v2308
          %v2801 = vpack.c.b16 %v2313, %v2309
          %v2802 = vpack.c.b16 %v2318, %v2314
          %v2803 = vpack.c.b16 %v2319, %v2315
          %v2804 = vpack.c.b16 %v2320, %v2316
          %v2805 = vpack.c.b16 %v2321, %v2317
          %v2806 = vpack.c.b16 %v2326, %v2322
          %v2807 = vpack.c.b16 %v2327, %v2323
          %v2808 = vpack.c.b16 %v2328, %v2324
          %v2809 = vpack.c.b16 %v2329, %v2325
          %v2810 = vpack.c.b16 %v2334, %v2330
          %v2811 = vpack.c.b16 %v2335, %v2331
          %v2812 = vpack.c.b16 %v2336, %v2332
          %v2813 = vpack.c.b16 %v2337, %v2333
          %v2814 = vpack.c.b16 %v2342, %v2338
          %v2815 = vpack.c.b16 %v2343, %v2339
          %v2816 = vpack.c.b16 %v2344, %v2340
          %v2817 = vpack.c.b16 %v2345, %v2341
          %v2818 = vpack.c.b16 %v2350, %v2346
          %v2819 = vpack.c.b16 %v2351, %v2347
          %v2820 = vpack.c.b16 %v2352, %v2348
          %v2821 = vpack.c.b16 %v2353, %v2349
          %v2822 = vpack.c.b16 %v2358, %v2354
          %v2823 = vpack.c.b16 %v2359, %v2355
          %v2824 = vpack.c.b16 %v2360, %v2356
          %v2825 = vpack.c.b16 %v2361, %v2357
          %v2826 = vpack.c.b16 %v2366, %v2362
          %v2827 = vpack.c.b16 %v2367, %v2363
          %v2828 = vpack.c.b16 %v2368, %v2364
          %v2829 = vpack.c.b16 %v2369, %v2365
          %v2830 = vpack.c.b16 %v2374, %v2370
          %v2831 = vpack.c.b16 %v2375, %v2371
          %v2832 = vpack.c.b16 %v2376, %v2372
          %v2833 = vpack.c.b16 %v2377, %v2373
          %v2834 = vpack.c.b16 %v2382, %v2378
          %v2835 = vpack.c.b16 %v2383, %v2379
          %v2836 = vpack.c.b16 %v2384, %v2380
          %v2837 = vpack.c.b16 %v2385, %v2381
          %v2838 = vpack.c.b16 %v2390, %v2386
          %v2839 = vpack.c.b16 %v2391, %v2387
          %v2840 = vpack.c.b16 %v2392, %v2388
          %v2841 = vpack.c.b16 %v2393, %v2389
          %v2842 = vpack.c.b16 %v2398, %v2394
          %v2843 = vpack.c.b16 %v2399, %v2395
          %v2844 = vpack.c.b16 %v2400, %v2396
          %v2845 = vpack.c.b16 %v2401, %v2397
          %v2846 = vpack.c.b16 %v2406, %v2402
          %v2847 = vpack.c.b16 %v2407, %v2403
          %v2848 = vpack.c.b16 %v2408, %v2404
          %v2849 = vpack.c.b16 %v2409, %v2405
          %v2850 = vpack.c.b16 %v2414, %v2410
          %v2851 = vpack.c.b16 %v2415, %v2411
          %v2852 = vpack.c.b16 %v2416, %v2412
          %v2853 = vpack.c.b16 %v2417, %v2413
          %v2854 = vpack.c.b16 %v2422, %v2418
          %v2855 = vpack.c.b16 %v2423, %v2419
          %v2856 = vpack.c.b16 %v2424, %v2420
          %v2857 = vpack.c.b16 %v2425, %v2421
          %v2858 = vpack.c.b16 %v2430, %v2426
          %v2859 = vpack.c.b16 %v2431, %v2427
          %v2860 = vpack.c.b16 %v2432, %v2428
          %v2861 = vpack.c.b16 %v2433, %v2429
          %v2862 = vpack.c.b16 %v2438, %v2434
          %v2863 = vpack.c.b16 %v2439, %v2435
          %v2864 = vpack.c.b16 %v2440, %v2436
          %v2865 = vpack.c.b16 %v2441, %v2437
          %v2866 = vpack.c.b16 %v2446, %v2442
          %v2867 = vpack.c.b16 %v2447, %v2443
          %v2868 = vpack.c.b16 %v2448, %v2444
          %v2869 = vpack.c.b16 %v2449, %v2445
          %v2870 = vpack.c.b16 %v2454, %v2450
          %v2871 = vpack.c.b16 %v2455, %v2451
          %v2872 = vpack.c.b16 %v2456, %v2452
          %v2873 = vpack.c.b16 %v2457, %v2453
          %v2874 = vpack.c.b16 %v2462, %v2458
          %v2875 = vpack.c.b16 %v2463, %v2459
          %v2876 = vpack.c.b16 %v2464, %v2460
          %v2877 = vpack.c.b16 %v2465, %v2461
          %v2878 = vpack.c.b16 %v2470, %v2466
          %v2879 = vpack.c.b16 %v2471, %v2467
          %v2880 = vpack.c.b16 %v2472, %v2468
          %v2881 = vpack.c.b16 %v2473, %v2469
          %v2882 = vpack.c.b16 %v2478, %v2474
          %v2883 = vpack.c.b16 %v2479, %v2475
          %v2884 = vpack.c.b16 %v2480, %v2476
          %v2885 = vpack.c.b16 %v2481, %v2477
          %v2886 = vpack.c.b16 %v2486, %v2482
          %v2887 = vpack.c.b16 %v2487, %v2483
          %v2888 = vpack.c.b16 %v2488, %v2484
          %v2889 = vpack.c.b16 %v2489, %v2485
          %v2890 = vpack.c.b16 %v2494, %v2490
          %v2891 = vpack.c.b16 %v2495, %v2491
          %v2892 = vpack.c.b16 %v2496, %v2492
          %v2893 = vpack.c.b16 %v2497, %v2493
          %v2894 = vpack.c.b16 %v2502, %v2498
          %v2895 = vpack.c.b16 %v2503, %v2499
          %v2896 = vpack.c.b16 %v2504, %v2500
          %v2897 = vpack.c.b16 %v2505, %v2501
          %v2898 = vpack.c.b16 %v2510, %v2506
          %v2899 = vpack.c.b16 %v2511, %v2507
          %v2900 = vpack.c.b16 %v2512, %v2508
          %v2901 = vpack.c.b16 %v2513, %v2509
          %v2902 = vpack.c.b16 %v2518, %v2514
          %v2903 = vpack.c.b16 %v2519, %v2515
          %v2904 = vpack.c.b16 %v2520, %v2516
          %v2905 = vpack.c.b16 %v2521, %v2517
          %v2906 = vpack.c.b16 %v2526, %v2522
          %v2907 = vpack.c.b16 %v2527, %v2523
          %v2908 = vpack.c.b16 %v2528, %v2524
          %v2909 = vpack.c.b16 %v2529, %v2525
          %v2910 = vpack.c.b16 %v2534, %v2530
          %v2911 = vpack.c.b16 %v2535, %v2531
          %v2912 = vpack.c.b16 %v2536, %v2532
          %v2913 = vpack.c.b16 %v2537, %v2533
          %v2914 = vpack.c.b16 %v2542, %v2538
          %v2915 = vpack.c.b16 %v2543, %v2539
          %v2916 = vpack.c.b16 %v2544, %v2540
          %v2917 = vpack.c.b16 %v2545, %v2541
          %v2918 = vpack.c.b16 %v2550, %v2546
          %v2919 = vpack.c.b16 %v2551, %v2547
          %v2920 = vpack.c.b16 %v2552, %v2548
          %v2921 = vpack.c.b16 %v2553, %v2549
          %v2922 = vpack.c.b16 %v2558, %v2554
          %v2923 = vpack.c.b16 %v2559, %v2555
          %v2924 = vpack.c.b16 %v2560, %v2556
          %v2925 = vpack.c.b16 %v2561, %v2557
          %v2926 = vpack.c.b16 %v2566, %v2562
          %v2927 = vpack.c.b16 %v2567, %v2563
          %v2928 = vpack.c.b16 %v2568, %v2564
          %v2929 = vpack.c.b16 %v2569, %v2565
          %v2930 = vpack.c.b16 %v2574, %v2570
          %v2931 = vpack.c.b16 %v2575, %v2571
          %v2932 = vpack.c.b16 %v2576, %v2572
          %v2933 = vpack.c.b16 %v2577, %v2573
          %v2934 = vpack.c.b16 %v2582, %v2578
          %v2935 = vpack.c.b16 %v2583, %v2579
          %v2936 = vpack.c.b16 %v2584, %v2580
          %v2937 = vpack.c.b16 %v2585, %v2581
          %v2938 = vpack.c.b16 %v2590, %v2586
          %v2939 = vpack.c.b16 %v2591, %v2587
          %v2940 = vpack.c.b16 %v2592, %v2588
          %v2941 = vpack.c.b16 %v2593, %v2589
          %v2942 = vpack.c.b16 %v2598, %v2594
          %v2943 = vpack.c.b16 %v2599, %v2595
          %v2944 = vpack.c.b16 %v2600, %v2596
          %v2945 = vpack.c.b16 %v2601, %v2597
          %v2946 = vpack.c.b16 %v2606, %v2602
          %v2947 = vpack.c.b16 %v2607, %v2603
          %v2948 = vpack.c.b16 %v2608, %v2604
          %v2949 = vpack.c.b16 %v2609, %v2605
          %v2950 = vpack.c.b16 %v2614, %v2610
          %v2951 = vpack.c.b16 %v2615, %v2611
          %v2952 = vpack.c.b16 %v2616, %v2612
          %v2953 = vpack.c.b16 %v2617, %v2613
          %v2954 = vpack.c.b16 %v2622, %v2618
          %v2955 = vpack.c.b16 %v2623, %v2619
          %v2956 = vpack.c.b16 %v2624, %v2620
          %v2957 = vpack.c.b16 %v2625, %v2621
          %v2958 = vpack.c.b16 %v2630, %v2626
          %v2959 = vpack.c.b16 %v2631, %v2627
          %v2960 = vpack.c.b16 %v2632, %v2628
          %v2961 = vpack.c.b16 %v2633, %v2629
          %v2962 = vpack.c.b16 %v2638, %v2634
          %v2963 = vpack.c.b16 %v2639, %v2635
          %v2964 = vpack.c.b16 %v2640, %v2636
          %v2965 = vpack.c.b16 %v2641, %v2637
          %v2966 = vpack.c.b16 %v2646, %v2642
          %v2967 = vpack.c.b16 %v2647, %v2643
          %v2968 = vpack.c.b16 %v2648, %v2644
          %v2969 = vpack.c.b16 %v2649, %v2645
          %v2970 = vpack.c.b16 %v2654, %v2650
          %v2971 = vpack.c.b16 %v2655, %v2651
          %v2972 = vpack.c.b16 %v2656, %v2652
          %v2973 = vpack.c.b16 %v2657, %v2653
          %v2974 = vpack.c.b16 %v2662, %v2658
          %v2975 = vpack.c.b16 %v2663, %v2659
          %v2976 = vpack.c.b16 %v2664, %v2660
          %v2977 = vpack.c.b16 %v2665, %v2661
          %v2978 = vpack.c.b16 %v2670, %v2666
          %v2979 = vpack.c.b16 %v2671, %v2667
          %v2980 = vpack.c.b16 %v2672, %v2668
          %v2981 = vpack.c.b16 %v2673, %v2669
          %v2982 = vpack.c.b16 %v2678, %v2674
          %v2983 = vpack.c.b16 %v2679, %v2675
          %v2984 = vpack.c.b16 %v2680, %v2676
          %v2985 = vpack.c.b16 %v2681, %v2677
          %v2986 = vpack.c.b16 %v2686, %v2682
          %v2987 = vpack.c.b16 %v2687, %v2683
          %v2988 = vpack.c.b16 %v2688, %v2684
          %v2989 = vpack.c.b16 %v2689, %v2685
          %v2990 = vpack.c.b16 %v2694, %v2690
          %v2991 = vpack.c.b16 %v2695, %v2691
          %v2992 = vpack.c.b16 %v2696, %v2692
          %v2993 = vpack.c.b16 %v2697, %v2693
          %v2994 = vpack.c.b16 %v2702, %v2698
          %v2995 = vpack.c.b16 %v2703, %v2699
          %v2996 = vpack.c.b16 %v2704, %v2700
          %v2997 = vpack.c.b16 %v2705, %v2701
          %v2998 = vpack.c.b16 %v2710, %v2706
          %v2999 = vpack.c.b16 %v2711, %v2707
          %v3000 = vpack.c.b16 %v2712, %v2708
          %v3001 = vpack.c.b16 %v2713, %v2709
          %v3002 = vpack.c.b16 %v2718, %v2714
          %v3003 = vpack.c.b16 %v2719, %v2715
          %v3004 = vpack.c.b16 %v2720, %v2716
          %v3005 = vpack.c.b16 %v2721, %v2717
          %v3006 = vpack.c.b16 %v2726, %v2722
          %v3007 = vpack.c.b16 %v2727, %v2723
          %v3008 = vpack.c.b16 %v2728, %v2724
          %v3009 = vpack.c.b16 %v2729, %v2725
          %v3010 = vpack.c.b16 %v2734, %v2730
          %v3011 = vpack.c.b16 %v2735, %v2731
          %v3012 = vpack.c.b16 %v2736, %v2732
          %v3013 = vpack.c.b16 %v2737, %v2733
          %v3014 = vpack.c.b16 %v2742, %v2738
          %v3015 = vpack.c.b16 %v2743, %v2739
          %v3016 = vpack.c.b16 %v2744, %v2740
          %v3017 = vpack.c.b16 %v2745, %v2741
          %v3018 = vpack.c.b16 %v2750, %v2746
          %v3019 = vpack.c.b16 %v2751, %v2747
          %v3020 = vpack.c.b16 %v2752, %v2748
          %v3021 = vpack.c.b16 %v2753, %v2749
          %v3022 = vpack.c.b16 %v2758, %v2754
          %v3023 = vpack.c.b16 %v2759, %v2755
          %v3024 = vpack.c.b16 %v2760, %v2756
          %v3025 = vpack.c.b16 %v2761, %v2757
          %v3026 = vpack.c.b16 %v2766, %v2762
          %v3027 = vpack.c.b16 %v2767, %v2763
          %v3028 = vpack.c.b16 %v2768, %v2764
          %v3029 = vpack.c.b16 %v2769, %v2765
          %v3030 = vpack.c.b16 %v2774, %v2770
          %v3031 = vpack.c.b16 %v2775, %v2771
          %v3032 = vpack.c.b16 %v2776, %v2772
          %v3033 = vpack.c.b16 %v2777, %v2773
          %3290 = vmatprep.subr.bf16.mxu0 %v2779
          %3291 = vmatpush1.bf16.msra.mxu0 %v2778
          %3292 = vmatprep.subr.bf16.mxu0 %v2783
          %3293 = vmatpush1.bf16.msra.mxu0 %v2782
          %3294 = vmatprep.subr.bf16.mxu0 %v2787
          %3295 = vmatpush1.bf16.msra.mxu0 %v2786
          %3296 = vmatprep.subr.bf16.mxu0 %v2791
          %3297 = vmatpush1.bf16.msra.mxu0 %v2790
          %3298 = vmatprep.subr.bf16.mxu0 %v2795
          %3299 = vmatpush1.bf16.msra.mxu0 %v2794
          %3300 = vmatprep.subr.bf16.mxu0 %v2799
          %3301 = vmatpush1.bf16.msra.mxu0 %v2798
          %3302 = vmatprep.subr.bf16.mxu0 %v2803
          %3303 = vmatpush1.bf16.msra.mxu0 %v2802
          %3304 = vmatprep.subr.bf16.mxu0 %v2807
          %3305 = vmatpush1.bf16.msra.mxu0 %v2806
          %3306 = vmatprep.subr.bf16.mxu0 %v2811
          %3307 = vmatpush1.bf16.msra.mxu0 %v2810
          %3308 = vmatprep.subr.bf16.mxu0 %v2815
          %3309 = vmatpush1.bf16.msra.mxu0 %v2814
          %3310 = vmatprep.subr.bf16.mxu0 %v2819
          %3311 = vmatpush1.bf16.msra.mxu0 %v2818
          %3312 = vmatprep.subr.bf16.mxu0 %v2823
          %3313 = vmatpush1.bf16.msra.mxu0 %v2822
          %3314 = vmatprep.subr.bf16.mxu0 %v2827
          %3315 = vmatpush1.bf16.msra.mxu0 %v2826
          %3316 = vmatprep.subr.bf16.mxu0 %v2831
          %3317 = vmatpush1.bf16.msra.mxu0 %v2830
          %3318 = vmatprep.subr.bf16.mxu0 %v2835
          %3319 = vmatpush1.bf16.msra.mxu0 %v2834
          %3320 = vmatprep.subr.bf16.mxu0 %v2839
          %3321 = vmatpush1.bf16.msra.mxu0 %v2838
          %3322 = vmatprep.mubr.bf16.mxu0 %v1725
          %3323 = vmatmul.mubr.bf16.gmra.mrb[0].mxu0 %v1724
          %v3324 = vpop.f32.mrb[0].mxu0
          %v3325 = vadd.f32 %v1993, %v3324
          %v3326 = vpop.f32.mrb[0].mxu0
          %v3327 = vadd.f32 %v1997, %v3326
          %v3328 = vpop.f32.mrb[0].mxu0
          %v3329 = vpop.f32.mrb[0].mxu0
          %3330 = vdwg.mxu0
          %3331 = vmatprep.subr.bf16.mxu0 %v2843
          %3332 = vmatpush1.bf16.msra.mxu0 %v2842
          %3333 = vmatprep.subr.bf16.mxu0 %v2847
          %3334 = vmatpush1.bf16.msra.mxu0 %v2846
          %3335 = vmatprep.subr.bf16.mxu0 %v2851
          %3336 = vmatpush1.bf16.msra.mxu0 %v2850
          %3337 = vmatprep.subr.bf16.mxu0 %v2855
          %3338 = vmatpush1.bf16.msra.mxu0 %v2854
          %3339 = vmatprep.subr.bf16.mxu0 %v2859
          %3340 = vmatpush1.bf16.msra.mxu0 %v2858
          %3341 = vmatprep.subr.bf16.mxu0 %v2863
          %3342 = vmatpush1.bf16.msra.mxu0 %v2862
          %3343 = vmatprep.subr.bf16.mxu0 %v2867
          %3344 = vmatpush1.bf16.msra.mxu0 %v2866
          %3345 = vmatprep.subr.bf16.mxu0 %v2871
          %3346 = vmatpush1.bf16.msra.mxu0 %v2870
          %3347 = vmatprep.subr.bf16.mxu0 %v2875
          %3348 = vmatpush1.bf16.msra.mxu0 %v2874
          %3349 = vmatprep.subr.bf16.mxu0 %v2879
          %3350 = vmatpush1.bf16.msra.mxu0 %v2878
          %3351 = vmatprep.subr.bf16.mxu0 %v2883
          %3352 = vmatpush1.bf16.msra.mxu0 %v2882
          %3353 = vmatprep.subr.bf16.mxu0 %v2887
          %3354 = vmatpush1.bf16.msra.mxu0 %v2886
          %3355 = vmatprep.subr.bf16.mxu0 %v2891
          %3356 = vmatpush1.bf16.msra.mxu0 %v2890
          %3357 = vmatprep.subr.bf16.mxu0 %v2895
          %3358 = vmatpush1.bf16.msra.mxu0 %v2894
          %3359 = vmatprep.subr.bf16.mxu0 %v2899
          %3360 = vmatpush1.bf16.msra.mxu0 %v2898
          %3361 = vmatprep.subr.bf16.mxu0 %v2903
          %3362 = vmatpush1.bf16.msra.mxu0 %v2902
          %3363 = vmatprep.mubr.bf16.mxu0 %v1727
          %3364 = vmatmul.mubr.bf16.gmra.mrb[0].mxu0 %v1726
          %v3365 = vpop.f32.mrb[0].mxu0
          %v3366 = vadd.f32 %v3325, %v3365
          %v3367 = vpop.f32.mrb[0].mxu0
          %v3368 = vadd.f32 %v3327, %v3367
          %v3369 = vpop.f32.mrb[0].mxu0
          %v3370 = vpop.f32.mrb[0].mxu0
          %3371 = vdwg.mxu0
          %3372 = vmatprep.subr.bf16.mxu0 %v2907
          %3373 = vmatpush1.bf16.msra.mxu0 %v2906
          %3374 = vmatprep.subr.bf16.mxu0 %v2911
          %3375 = vmatpush1.bf16.msra.mxu0 %v2910
          %3376 = vmatprep.subr.bf16.mxu0 %v2915
          %3377 = vmatpush1.bf16.msra.mxu0 %v2914
          %3378 = vmatprep.subr.bf16.mxu0 %v2919
          %3379 = vmatpush1.bf16.msra.mxu0 %v2918
          %3380 = vmatprep.subr.bf16.mxu0 %v2923
          %3381 = vmatpush1.bf16.msra.mxu0 %v2922
          %3382 = vmatprep.subr.bf16.mxu0 %v2927
          %3383 = vmatpush1.bf16.msra.mxu0 %v2926
          %3384 = vmatprep.subr.bf16.mxu0 %v2931
          %3385 = vmatpush1.bf16.msra.mxu0 %v2930
          %3386 = vmatprep.subr.bf16.mxu0 %v2935
          %3387 = vmatpush1.bf16.msra.mxu0 %v2934
          %3388 = vmatprep.subr.bf16.mxu0 %v2939
          %3389 = vmatpush1.bf16.msra.mxu0 %v2938
          %3390 = vmatprep.subr.bf16.mxu0 %v2943
          %3391 = vmatpush1.bf16.msra.mxu0 %v2942
          %3392 = vmatprep.subr.bf16.mxu0 %v2947
          %3393 = vmatpush1.bf16.msra.mxu0 %v2946
          %3394 = vmatprep.subr.bf16.mxu0 %v2951
          %3395 = vmatpush1.bf16.msra.mxu0 %v2950
          %3396 = vmatprep.subr.bf16.mxu0 %v2955
          %3397 = vmatpush1.bf16.msra.mxu0 %v2954
          %3398 = vmatprep.subr.bf16.mxu0 %v2959
          %3399 = vmatpush1.bf16.msra.mxu0 %v2958
          %3400 = vmatprep.subr.bf16.mxu0 %v2963
          %3401 = vmatpush1.bf16.msra.mxu0 %v2962
          %3402 = vmatprep.subr.bf16.mxu0 %v2967
          %3403 = vmatpush1.bf16.msra.mxu0 %v2966
          %3404 = vmatprep.mubr.bf16.mxu0 %v1729
          %3405 = vmatmul.mubr.bf16.gmra.mrb[0].mxu0 %v1728
          %v3406 = vpop.f32.mrb[0].mxu0
          %v3407 = vadd.f32 %v3366, %v3406
          %v3408 = vpop.f32.mrb[0].mxu0
          %v3409 = vadd.f32 %v3368, %v3408
          %v3410 = vpop.f32.mrb[0].mxu0
          %v3411 = vpop.f32.mrb[0].mxu0
          %3412 = vdwg.mxu0
          %3413 = vmatprep.subr.bf16.mxu0 %v2971
          %3414 = vmatpush1.bf16.msra.mxu0 %v2970
          %3415 = vmatprep.subr.bf16.mxu0 %v2975
          %3416 = vmatpush1.bf16.msra.mxu0 %v2974
          %3417 = vmatprep.subr.bf16.mxu0 %v2979
          %3418 = vmatpush1.bf16.msra.mxu0 %v2978
          %3419 = vmatprep.subr.bf16.mxu0 %v2983
          %3420 = vmatpush1.bf16.msra.mxu0 %v2982
          %3421 = vmatprep.subr.bf16.mxu0 %v2987
          %3422 = vmatpush1.bf16.msra.mxu0 %v2986
          %3423 = vmatprep.subr.bf16.mxu0 %v2991
          %3424 = vmatpush1.bf16.msra.mxu0 %v2990
          %3425 = vmatprep.subr.bf16.mxu0 %v2995
          %3426 = vmatpush1.bf16.msra.mxu0 %v2994
          %3427 = vmatprep.subr.bf16.mxu0 %v2999
          %3428 = vmatpush1.bf16.msra.mxu0 %v2998
          %3429 = vmatprep.subr.bf16.mxu0 %v3003
          %3430 = vmatpush1.bf16.msra.mxu0 %v3002
          %3431 = vmatprep.subr.bf16.mxu0 %v3007
          %3432 = vmatpush1.bf16.msra.mxu0 %v3006
          %3433 = vmatprep.subr.bf16.mxu0 %v3011
          %3434 = vmatpush1.bf16.msra.mxu0 %v3010
          %3435 = vmatprep.subr.bf16.mxu0 %v3015
          %3436 = vmatpush1.bf16.msra.mxu0 %v3014
          %3437 = vmatprep.subr.bf16.mxu0 %v3019
          %3438 = vmatpush1.bf16.msra.mxu0 %v3018
          %3439 = vmatprep.subr.bf16.mxu0 %v3023
          %3440 = vmatpush1.bf16.msra.mxu0 %v3022
          %3441 = vmatprep.subr.bf16.mxu0 %v3027
          %3442 = vmatpush1.bf16.msra.mxu0 %v3026
          %3443 = vmatprep.subr.bf16.mxu0 %v3031
          %3444 = vmatpush1.bf16.msra.mxu0 %v3030
          %3445 = vmatprep.mubr.bf16.mxu0 %v1731
          %3446 = vmatmul.mubr.bf16.gmra.mrb[0].mxu0 %v1730
          %v3447 = vpop.f32.mrb[0].mxu0
          %v3448 = vadd.f32 %v3407, %v3447
          %v3449 = vpop.f32.mrb[0].mxu0
          %v3450 = vadd.f32 %v3409, %v3449
          %v3451 = vpop.f32.mrb[0].mxu0
          %v3452 = vpop.f32.mrb[0].mxu0
          %3453 = vdwg.mxu0
          %3454 = vmatprep.subr.bf16.mxu0 %v2781
          %3455 = vmatpush1.bf16.msra.mxu0 %v2780
          %3456 = vmatprep.subr.bf16.mxu0 %v2785
          %3457 = vmatpush1.bf16.msra.mxu0 %v2784
          %3458 = vmatprep.subr.bf16.mxu0 %v2789
          %3459 = vmatpush1.bf16.msra.mxu0 %v2788
          %3460 = vmatprep.subr.bf16.mxu0 %v2793
          %3461 = vmatpush1.bf16.msra.mxu0 %v2792
          %3462 = vmatprep.subr.bf16.mxu0 %v2797
          %3463 = vmatpush1.bf16.msra.mxu0 %v2796
          %3464 = vmatprep.subr.bf16.mxu0 %v2801
          %3465 = vmatpush1.bf16.msra.mxu0 %v2800
          %3466 = vmatprep.subr.bf16.mxu0 %v2805
          %3467 = vmatpush1.bf16.msra.mxu0 %v2804
          %3468 = vmatprep.subr.bf16.mxu0 %v2809
          %3469 = vmatpush1.bf16.msra.mxu0 %v2808
          %3470 = vmatprep.subr.bf16.mxu0 %v2813
          %3471 = vmatpush1.bf16.msra.mxu0 %v2812
          %3472 = vmatprep.subr.bf16.mxu0 %v2817
          %3473 = vmatpush1.bf16.msra.mxu0 %v2816
          %3474 = vmatprep.subr.bf16.mxu0 %v2821
          %3475 = vmatpush1.bf16.msra.mxu0 %v2820
          %3476 = vmatprep.subr.bf16.mxu0 %v2825
          %3477 = vmatpush1.bf16.msra.mxu0 %v2824
          %3478 = vmatprep.subr.bf16.mxu0 %v2829
          %3479 = vmatpush1.bf16.msra.mxu0 %v2828
          %3480 = vmatprep.subr.bf16.mxu0 %v2833
          %3481 = vmatpush1.bf16.msra.mxu0 %v2832
          %3482 = vmatprep.subr.bf16.mxu0 %v2837
          %3483 = vmatpush1.bf16.msra.mxu0 %v2836
          %3484 = vmatprep.subr.bf16.mxu0 %v2841
          %3485 = vmatpush1.bf16.msra.mxu0 %v2840
          %3486 = vmatprep.mubr.bf16.mxu0 %v1725
          %3487 = vmatmul.mubr.bf16.gmra.mrb[0].mxu0 %v1724
          %v3488 = vpop.f32.mrb[0].mxu0
          %v3489 = vadd.f32 %v2001, %v3488
          %v3490 = vpop.f32.mrb[0].mxu0
          %v3491 = vadd.f32 %v2005, %v3490
          %v3492 = vpop.f32.mrb[0].mxu0
          %v3493 = vpop.f32.mrb[0].mxu0
          %3494 = vdwg.mxu0
          %3495 = vmatprep.subr.bf16.mxu0 %v2845
          %3496 = vmatpush1.bf16.msra.mxu0 %v2844
          %3497 = vmatprep.subr.bf16.mxu0 %v2849
          %3498 = vmatpush1.bf16.msra.mxu0 %v2848
          %3499 = vmatprep.subr.bf16.mxu0 %v2853
          %3500 = vmatpush1.bf16.msra.mxu0 %v2852
          %3501 = vmatprep.subr.bf16.mxu0 %v2857
          %3502 = vmatpush1.bf16.msra.mxu0 %v2856
          %3503 = vmatprep.subr.bf16.mxu0 %v2861
          %3504 = vmatpush1.bf16.msra.mxu0 %v2860
          %3505 = vmatprep.subr.bf16.mxu0 %v2865
          %3506 = vmatpush1.bf16.msra.mxu0 %v2864
          %3507 = vmatprep.subr.bf16.mxu0 %v2869
          %3508 = vmatpush1.bf16.msra.mxu0 %v2868
          %3509 = vmatprep.subr.bf16.mxu0 %v2873
          %3510 = vmatpush1.bf16.msra.mxu0 %v2872
          %3511 = vmatprep.subr.bf16.mxu0 %v2877
          %3512 = vmatpush1.bf16.msra.mxu0 %v2876
          %3513 = vmatprep.subr.bf16.mxu0 %v2881
          %3514 = vmatpush1.bf16.msra.mxu0 %v2880
          %3515 = vmatprep.subr.bf16.mxu0 %v2885
          %3516 = vmatpush1.bf16.msra.mxu0 %v2884
          %3517 = vmatprep.subr.bf16.mxu0 %v2889
          %3518 = vmatpush1.bf16.msra.mxu0 %v2888
          %3519 = vmatprep.subr.bf16.mxu0 %v2893
          %3520 = vmatpush1.bf16.msra.mxu0 %v2892
          %3521 = vmatprep.subr.bf16.mxu0 %v2897
          %3522 = vmatpush1.bf16.msra.mxu0 %v2896
          %3523 = vmatprep.subr.bf16.mxu0 %v2901
          %3524 = vmatpush1.bf16.msra.mxu0 %v2900
          %3525 = vmatprep.subr.bf16.mxu0 %v2905
          %3526 = vmatpush1.bf16.msra.mxu0 %v2904
          %3527 = vmatprep.mubr.bf16.mxu0 %v1727
          %3528 = vmatmul.mubr.bf16.gmra.mrb[0].mxu0 %v1726
          %v3529 = vpop.f32.mrb[0].mxu0
          %v3530 = vadd.f32 %v3489, %v3529
          %v3531 = vpop.f32.mrb[0].mxu0
          %v3532 = vadd.f32 %v3491, %v3531
          %v3533 = vpop.f32.mrb[0].mxu0
          %v3534 = vpop.f32.mrb[0].mxu0
          %3535 = vdwg.mxu0
          %3536 = vmatprep.subr.bf16.mxu0 %v2909
          %3537 = vmatpush1.bf16.msra.mxu0 %v2908
          %3538 = vmatprep.subr.bf16.mxu0 %v2913
          %3539 = vmatpush1.bf16.msra.mxu0 %v2912
          %3540 = vmatprep.subr.bf16.mxu0 %v2917
          %3541 = vmatpush1.bf16.msra.mxu0 %v2916
          %3542 = vmatprep.subr.bf16.mxu0 %v2921
          %3543 = vmatpush1.bf16.msra.mxu0 %v2920
          %3544 = vmatprep.subr.bf16.mxu0 %v2925
          %3545 = vmatpush1.bf16.msra.mxu0 %v2924
          %3546 = vmatprep.subr.bf16.mxu0 %v2929
          %3547 = vmatpush1.bf16.msra.mxu0 %v2928
          %3548 = vmatprep.subr.bf16.mxu0 %v2933
          %3549 = vmatpush1.bf16.msra.mxu0 %v2932
          %3550 = vmatprep.subr.bf16.mxu0 %v2937
          %3551 = vmatpush1.bf16.msra.mxu0 %v2936
          %3552 = vmatprep.subr.bf16.mxu0 %v2941
          %3553 = vmatpush1.bf16.msra.mxu0 %v2940
          %3554 = vmatprep.subr.bf16.mxu0 %v2945
          %3555 = vmatpush1.bf16.msra.mxu0 %v2944
          %3556 = vmatprep.subr.bf16.mxu0 %v2949
          %3557 = vmatpush1.bf16.msra.mxu0 %v2948
          %3558 = vmatprep.subr.bf16.mxu0 %v2953
          %3559 = vmatpush1.bf16.msra.mxu0 %v2952
          %3560 = vmatprep.subr.bf16.mxu0 %v2957
          %3561 = vmatpush1.bf16.msra.mxu0 %v2956
          %3562 = vmatprep.subr.bf16.mxu0 %v2961
          %3563 = vmatpush1.bf16.msra.mxu0 %v2960
          %3564 = vmatprep.subr.bf16.mxu0 %v2965
          %3565 = vmatpush1.bf16.msra.mxu0 %v2964
          %3566 = vmatprep.subr.bf16.mxu0 %v2969
          %3567 = vmatpush1.bf16.msra.mxu0 %v2968
          %3568 = vmatprep.mubr.bf16.mxu0 %v1729
          %3569 = vmatmul.mubr.bf16.gmra.mrb[0].mxu0 %v1728
          %v3570 = vpop.f32.mrb[0].mxu0
          %v3571 = vadd.f32 %v3530, %v3570
          %v3572 = vpop.f32.mrb[0].mxu0
          %v3573 = vadd.f32 %v3532, %v3572
          %v3574 = vpop.f32.mrb[0].mxu0
          %v3575 = vpop.f32.mrb[0].mxu0
          %3576 = vdwg.mxu0
          %3577 = vmatprep.subr.bf16.mxu0 %v2973
          %3578 = vmatpush1.bf16.msra.mxu0 %v2972
          %3579 = vmatprep.subr.bf16.mxu0 %v2977
          %3580 = vmatpush1.bf16.msra.mxu0 %v2976
          %3581 = vmatprep.subr.bf16.mxu0 %v2981
          %3582 = vmatpush1.bf16.msra.mxu0 %v2980
          %3583 = vmatprep.subr.bf16.mxu0 %v2985
          %3584 = vmatpush1.bf16.msra.mxu0 %v2984
          %3585 = vmatprep.subr.bf16.mxu0 %v2989
          %3586 = vmatpush1.bf16.msra.mxu0 %v2988
          %3587 = vmatprep.subr.bf16.mxu0 %v2993
          %3588 = vmatpush1.bf16.msra.mxu0 %v2992
          %3589 = vmatprep.subr.bf16.mxu0 %v2997
          %3590 = vmatpush1.bf16.msra.mxu0 %v2996
          %3591 = vmatprep.subr.bf16.mxu0 %v3001
          %3592 = vmatpush1.bf16.msra.mxu0 %v3000
          %3593 = vmatprep.subr.bf16.mxu0 %v3005
          %3594 = vmatpush1.bf16.msra.mxu0 %v3004
          %3595 = vmatprep.subr.bf16.mxu0 %v3009
          %3596 = vmatpush1.bf16.msra.mxu0 %v3008
          %3597 = vmatprep.subr.bf16.mxu0 %v3013
          %3598 = vmatpush1.bf16.msra.mxu0 %v3012
          %3599 = vmatprep.subr.bf16.mxu0 %v3017
          %3600 = vmatpush1.bf16.msra.mxu0 %v3016
          %3601 = vmatprep.subr.bf16.mxu0 %v3021
          %3602 = vmatpush1.bf16.msra.mxu0 %v3020
          %3603 = vmatprep.subr.bf16.mxu0 %v3025
          %3604 = vmatpush1.bf16.msra.mxu0 %v3024
          %3605 = vmatprep.subr.bf16.mxu0 %v3029
          %3606 = vmatpush1.bf16.msra.mxu0 %v3028
          %3607 = vmatprep.subr.bf16.mxu0 %v3033
          %3608 = vmatpush1.bf16.msra.mxu0 %v3032
          %3609 = vmatprep.mubr.bf16.mxu0 %v1731
          %3610 = vmatmul.mubr.bf16.gmra.mrb[0].mxu0 %v1730
          %v3611 = vpop.f32.mrb[0].mxu0
          %v3612 = vadd.f32 %v3571, %v3611
          %v3613 = vpop.f32.mrb[0].mxu0
          %v3614 = vadd.f32 %v3573, %v3613
          %v3615 = vpop.f32.mrb[0].mxu0
          %v3616 = vpop.f32.mrb[0].mxu0
          %3617 = vdwg.mxu0
          %v3618 = vmax.f32 %v3448, 0.0
          %v3619 = vmax.f32 %v3450, 0.0
          %v3620 = vmax.f32 %v3612, 0.0
          %v3621 = vmax.f32 %v3614, 0.0
          %v3622 = vld [vmem:[%s589] sm:$0xff]
          %v3623 = vld [vmem:[%s589 + $0x8] sm:$0xff]
          %v3624 = vld [vmem:[%s589 + $0x10] sm:$0xff]
          %v3625 = vld [vmem:[%s589 + $0x18] sm:$0xff]
          %v3626 = vmul.f32 %v3618, %v3622
          %v3627 = vmul.f32 %v3619, %v3623
          %v3628 = vmul.f32 %v3620, %v3624
          %v3629 = vmul.f32 %v3621, %v3625
          %v3630 = vld [vmem:[%s594] sm:$0xff]
          %v3631 = vld [vmem:[%s594 + $0x8] sm:$0xff]
          %v3632 = vld [vmem:[%s594 + $0x10] sm:$0xff]
          %v3633 = vld [vmem:[%s594 + $0x18] sm:$0xff]
          %v3634 = vadd.f32 %v3626, %v3630
          %v3635 = vadd.f32 %v3627, %v3631
          %v3636 = vadd.f32 %v3628, %v3632
          %v3637 = vadd.f32 %v3629, %v3633
          %3638 = vst [vmem:[%s599] sm:$0xff] %v3634
          %3639 = vst [vmem:[%s599 + $0x8] sm:$0xff] %v3635
          %3640 = vst [vmem:[%s599 + $0x10] sm:$0xff] %v3636
          %3641 = vst [vmem:[%s599 + $0x18] sm:$0xff] %v3637
        $region80: #{concat_features_net.2} parent=55 // pred_fallthru
          _
        %p3642 = scmp.lt.s32.totalorder %s33, 1
        %s3643 = scalar_select %p3642, %s33, 1
        %s3644 = smul.addr %s3643, 4
        %s3645 = smul.addr %s3644, 8
        %s3646 = scalar_lea.vmem %s9, %s3645
        // Predicated region
        $region81: #{concat_features_net.2} parent=55 // pred_check
          %p3647 = pneg %p297
        $region82: #{concat_features_net.2} parent=55 // pred_check_branch
          %3649 = sbr.rel (%p3647) target = $region84
        $region83: #{concat_features_net.2} parent=55 // pred_region
          _
        $region84: #{concat_features_net.2} parent=55 // pred_fallthru
          _
      $region56: #{concat_features_net.2} parent=5 // pred_fallthru
        _
      %p3650 = scmp.le.s32.totalorder 2, %s24
      // Predicated region
      $region85: #{concat_features_net.2} parent=5 // pred_check
        %p3651 = pneg %p3650
      $region86: #{concat_features_net.2} parent=5 // pred_check_branch
        %3653 = sbr.rel (%p3651) target = $region88
      $region87: #{concat_features_net.2} parent=5 // pred_region
        %s3654 = ssub.s32 %s24, 2
        // Predicated region
        $region89: #{concat_features_net.2} parent=87 // pred_check
          %p3655 = pneg %p303
        $region90: #{concat_features_net.2} parent=87 // pred_check_branch
          %3657 = sbr.rel (%p3655) target = $region92
        $region91: #{concat_features_net.2} parent=87 // pred_region
          %p3658 = scmp.lt.s32.totalorder %s35, 1
          %s3659 = scalar_select %p3658, %s35, 1
          %s3660 = smul.addr %s3659, 4
          %s3661 = smul.addr %s3660, 8
          %s3662 = scalar_lea.vmem %s9, %s3661
        $region92: #{concat_features_net.2} parent=87 // pred_fallthru
          _
      $region88: #{concat_features_net.2} parent=5 // pred_fallthru
        _
    $region6: #{concat_features_net.2} parent=1 // loop_footer
      %s28 = sadd.s32 1, %s24
    $region7: #{concat_features_net.2} parent=1 // loop_footer_branch
      %23 = sbr.rel target = $region3
    $region8: #{concat_features_net.2} parent=1 // loop_exit
      _
    %3663 = vsyncpa [#allocation4], 1
    %s3664 = scalar_lea.sflag [#allocation4], 1
    %3665 = vsyncpa %s3664, 1
    %3666 = vsyncpa [#allocation6], 1
    %s3667 = scalar_lea.sflag [#allocation6], 1
    %3668 = vsyncpa %s3667, 1
    %3669 = vsyncpa [#allocation9], 1
    %s3670 = scalar_lea.sflag [#allocation9], 1
    %3671 = vsyncpa %s3670, 1

</llo_original>
